<compile_context>
chip_gen: v5e
topology: v5e:2x2
jax: 0.10.0
libtpu: 0.0.40
codegen_flags: <defaults>
</compile_context>

<pallas_src>
import functools

import jax
import jax.numpy as jnp
from jax import lax
from jax.experimental import pallas as pl
from jax.experimental.pallas import tpu as pltpu


# ------------------------------ fused kernel ------------------------------- #

def _decoder_kernel(
    x_ref, mem_ref, cbias_ref,
    lnp_ref,
    wqkv_s_ref, bqkv_s_ref, wo_s_ref, bo_s_ref,
    wq_c_ref, bq_c_ref, wkv_c_ref, bkv_c_ref, wo_c_ref, bo_c_ref,
    w1_ref, b1_ref, w2_ref, b2_ref,
    fng_ref, fnb_ref,
    o_ref,
    xs_ref, hbuf_ref,
    *, num_heads, ln_eps, final_eps,
):
    """One (batch block, decoder layer) grid step.

    grid = (B // Bt, depth).  Activations of the Bt batch elements persist in
    the VMEM scratch `xs_ref` across the sequential depth axis; each layer's
    bf16 weight slab is DMA'd once per grid step and reused for all Bt
    elements.
    """
    d = pl.program_id(1)
    Bt, T, D = xs_ref.shape
    S = mem_ref.shape[1]
    H = num_heads
    dk = D // H

    # Load the fresh input activations at the first layer of each batch block.
    @pl.when(d == 0)
    def _():
        xs_ref[...] = x_ref[...]

    def layer_norm(x, g, b, eps):
        mu = jnp.mean(x, axis=-1, keepdims=True)
        xc = x - mu
        var = jnp.mean(xc * xc, axis=-1, keepdims=True)
        return xc * lax.rsqrt(var + eps) * g + b

    def softmax_rows(s):
        m = jnp.max(s, axis=-1, keepdims=True)
        p = jnp.exp(s - m)
        r = pl.reciprocal(jnp.sum(p, axis=-1, keepdims=True), approx=True)
        return p * r

    # q @ k^T without materializing the transpose (contract dk of both sides).
    contract_last = (((1,), (1,)), ((), ()))
    bf16 = jnp.bfloat16
    f32 = jnp.float32

    lnp = lnp_ref[0]                         # (6, D) f32: [g0,b0,g1,b1,g2,b2]
    wqkv = wqkv_s_ref[0]; bqkv = bqkv_s_ref[0]
    wo_s = wo_s_ref[0]; bo_s = bo_s_ref[0]
    wq_c = wq_c_ref[0]; bq_c = bq_c_ref[0]
    wkv_c = wkv_c_ref[0]; bkv_c = bkv_c_ref[0]
    wo_c = wo_c_ref[0]; bo_c = bo_c_ref[0]
    w1 = w1_ref[0]; b1 = b1_ref[0]
    w2 = w2_ref[0]; b2 = b2_ref[0]

    for b in range(Bt):
        xs = xs_ref[b]                       # (T, D) f32 residual stream
        mem_b = mem_ref[b]                   # (S, D) bf16
        cbias = cbias_ref[b]                 # (T, S) f32: str_mat + pad mask

        # ---- sublayer 0: pre-norm multi-head self-attention + residual -----
        # TODO(synk): no causal / target-padding mask (matches assumed layer).
        y = layer_norm(xs, lnp[0:1, :], lnp[1:2, :], ln_eps).astype(bf16)
        qkv = jnp.dot(y, wqkv, preferred_element_type=f32) + bqkv   # (T, 3D)
        qkvb = qkv.astype(bf16)              # Q part already carries 1/sqrt(dk)
        for h in range(H):
            lo = h * dk
            qh = qkvb[:, lo:lo + dk]                      # (T, dk)
            kh = qkvb[:, D + lo:D + lo + dk]              # (T, dk)
            vh = qkvb[:, 2 * D + lo:2 * D + lo + dk]      # (T, dk)
            sh = lax.dot_general(qh, kh, contract_last,
                                 preferred_element_type=f32)        # (T, T)
            ph = softmax_rows(sh).astype(bf16)
            hbuf_ref[:, lo:lo + dk] = jnp.dot(ph, vh,
                                              preferred_element_type=f32)
        heads = hbuf_ref[...].astype(bf16)                # (T, D) all heads
        xs = xs + jnp.dot(heads, wo_s, preferred_element_type=f32) + bo_s

        # ---- sublayer 1: pre-norm cross-attention to mem + residual --------
        y = layer_norm(xs, lnp[2:3, :], lnp[3:4, :], ln_eps).astype(bf16)
        q = (jnp.dot(y, wq_c, preferred_element_type=f32) + bq_c).astype(bf16)
        kv = (jnp.dot(mem_b, wkv_c, preferred_element_type=f32)
              + bkv_c).astype(bf16)                       # (S, 2D)
        for h in range(H):
            lo = h * dk
            qh = q[:, lo:lo + dk]                         # (T, dk)
            kh = kv[:, lo:lo + dk]                        # (S, dk)
            vh = kv[:, D + lo:D + lo + dk]                # (S, dk)
            sh = lax.dot_general(qh, kh, contract_last,
                                 preferred_element_type=f32) + cbias  # (T, S)
            ph = softmax_rows(sh).astype(bf16)
            hbuf_ref[:, lo:lo + dk] = jnp.dot(ph, vh,
                                              preferred_element_type=f32)
        heads = hbuf_ref[...].astype(bf16)
        xs = xs + jnp.dot(heads, wo_c, preferred_element_type=f32) + bo_c

        # ---- sublayer 2: pre-norm position-wise feed-forward + residual ----
        y = layer_norm(xs, lnp[4:5, :], lnp[5:6, :], ln_eps).astype(bf16)
        hid = jnp.maximum(jnp.dot(y, w1, preferred_element_type=f32) + b1, 0.0)
        xs = xs + jnp.dot(hid.astype(bf16), w2,
                          preferred_element_type=f32) + b2

        xs_ref[b] = xs

        # ---- final nn.LayerNorm(features) after the last layer -------------
        @pl.when(d == pl.num_programs(1) - 1)
        def _():
            o_ref[b] = layer_norm(xs, fng_ref[...], fnb_ref[...], final_eps)


# ------------------------------ model wrapper ------------------------------ #

def decoder_forward(params, x, mem, str_mat, mem_pad_mask, num_heads,
                    block_batch=None):
    """x: [B,T,D], mem: [B,S,D], str_mat: [B,T,S], mem_pad_mask: [B,S] bool (True=pad)."""
    B, T, D = x.shape
    S = mem.shape[1]
    depth = params["wqkv_s"].shape[0]
    dff = params["w1"].shape[-1]
    assert D % num_heads == 0

    Bt = B if block_batch is None else block_batch
    assert B % Bt == 0
    nb = B // Bt

    # str_mat additive bias + key-padding mask folded into ONE tensor.
    cbias = (str_mat.astype(jnp.float32)
             + jnp.where(mem_pad_mask, -1e9, 0.0).astype(jnp.float32)[:, None, :])
    mem_b = mem.astype(jnp.bfloat16)        # only feeds the bf16 KV projection

    batch_map = lambda bb, d: (bb, 0, 0)    # per-batch-block, constant over depth
    layer_map = lambda bb, d: (d, 0, 0)     # per-layer weight slabs
    const_map = lambda bb, d: (0, 0)        # final-norm params

    kernel = functools.partial(_decoder_kernel, num_heads=num_heads,
                               ln_eps=1e-6, final_eps=1e-5)

    # Advisory cost estimate (flops / bytes) for XLA's scheduler.
    flops_layer = (2 * T * D * 3 * D + 4 * T * T * D + 2 * T * D * D       # self
                   + 2 * T * D * D + 2 * S * D * 2 * D + 4 * T * S * D
                   + 2 * T * D * D                                          # cross
                   + 4 * T * D * dff)                                       # ffn
    w_bytes_layer = 2 * (3 * D * D + D * D + D * D + 2 * D * D + D * D
                         + 2 * D * dff)
    cost = pl.CostEstimate(
        flops=int(B * depth * flops_layer),
        transcendentals=int(B * depth * (T * T + T * S)),
        bytes_accessed=int(nb * depth * w_bytes_layer
                           + 4 * (2 * B * T * D + B * T * S) + 2 * B * S * D),
    )

    return pl.pallas_call(
        kernel,
        out_shape=jax.ShapeDtypeStruct((B, T, D), jnp.float32),
        grid_spec=pltpu.PrefetchScalarGridSpec(
            num_scalar_prefetch=0,
            grid=(nb, depth),
            in_specs=[
                pl.BlockSpec((Bt, T, D), batch_map),       # x (f32)
                pl.BlockSpec((Bt, S, D), batch_map),       # mem (bf16)
                pl.BlockSpec((Bt, T, S), batch_map),       # str_mat + pad mask
                pl.BlockSpec((1, 6, D), layer_map),        # LN0/1/2 gamma, beta
                pl.BlockSpec((1, D, 3 * D), layer_map),    # self Wqkv (bf16, q pre-scaled)
                pl.BlockSpec((1, 1, 3 * D), layer_map),    # self bqkv
                pl.BlockSpec((1, D, D), layer_map),        # self Wo (bf16)
                pl.BlockSpec((1, 1, D), layer_map),        # self bo
                pl.BlockSpec((1, D, D), layer_map),        # cross Wq (bf16, pre-scaled)
                pl.BlockSpec((1, 1, D), layer_map),        # cross bq
                pl.BlockSpec((1, D, 2 * D), layer_map),    # cross Wkv (bf16)
                pl.BlockSpec((1, 1, 2 * D), layer_map),    # cross bkv
                pl.BlockSpec((1, D, D), layer_map),        # cross Wo (bf16)
                pl.BlockSpec((1, 1, D), layer_map),        # cross bo
                pl.BlockSpec((1, D, dff), layer_map),      # FFN W1 (bf16)
                pl.BlockSpec((1, 1, dff), layer_map),      # FFN b1
                pl.BlockSpec((1, dff, D), layer_map),      # FFN W2 (bf16)
                pl.BlockSpec((1, 1, D), layer_map),        # FFN b2
                pl.BlockSpec((1, D), const_map),           # final LN gamma
                pl.BlockSpec((1, D), const_map),           # final LN beta
            ],
            out_specs=pl.BlockSpec((Bt, T, D), batch_map),
            scratch_shapes=[
                pltpu.VMEM((Bt, T, D), jnp.float32),       # resident activations
                pltpu.VMEM((T, D), jnp.float32),           # head-output staging
            ],
        ),
        compiler_params=pltpu.CompilerParams(
            dimension_semantics=("parallel", "arbitrary"),
            vmem_limit_bytes=64 * 1024 * 1024,
        ),
        cost_estimate=cost,
    )(x.astype(jnp.float32), mem_b, cbias,
      params["lnp"],
      params["wqkv_s"], params["bqkv_s"], params["wo_s"], params["bo_s"],
      params["wq_c"], params["bq_c"], params["wkv_c"], params["bkv_c"],
      params["wo_c"], params["bo_c"],
      params["w1"], params["b1"], params["w2"], params["b2"],
      params["norm_g"], params["norm_b"])


# ------------------------------- param init -------------------------------- #

def init_params(key, depth, d_model, d_ff, num_heads):
    dk = d_model // num_heads
    scale = 1.0 / float(dk) ** 0.5

    def dense(k, fan_in, fan_out):
        w = 0.05 * jax.random.normal(k, (fan_in, fan_out), jnp.float32)
        b = jnp.zeros((1, fan_out), jnp.float32)
        return w, b

    wqkv_s, bqkv_s, wo_s, bo_s = [], [], [], []
    wq_c, bq_c, wkv_c, bkv_c, wo_c, bo_c = [], [], [], [], [], []
    w1, b1, w2, b2 = [], [], [], []
    for _ in range(depth):
        key, *ks = jax.random.split(key, 11)
        s_wq, s_bq = dense(ks[0], d_model, d_model)
        s_wk, s_bk = dense(ks[1], d_model, d_model)
        s_wv, s_bv = dense(ks[2], d_model, d_model)
        s_wo, s_bo = dense(ks[3], d_model, d_model)
        c_wq, c_bq = dense(ks[4], d_model, d_model)
        c_wk, c_bk = dense(ks[5], d_model, d_model)
        c_wv, c_bv = dense(ks[6], d_model, d_model)
        c_wo, c_bo = dense(ks[7], d_model, d_model)
        f_w1, f_b1 = dense(ks[8], d_model, d_ff)
        f_w2, f_b2 = dense(ks[9], d_ff, d_model)
        # Fold the 1/sqrt(dk) attention scale into the Q projections (exact).
        wqkv_s.append(jnp.concatenate([s_wq * scale, s_wk, s_wv], axis=1))
        bqkv_s.append(jnp.concatenate([s_bq * scale, s_bk, s_bv], axis=1))
        wo_s.append(s_wo); bo_s.append(s_bo)
        wq_c.append(c_wq * scale); bq_c.append(c_bq * scale)
        wkv_c.append(jnp.concatenate([c_wk, c_wv], axis=1))
        bkv_c.append(jnp.concatenate([c_bk, c_bv], axis=1))
        wo_c.append(c_wo); bo_c.append(c_bo)
        w1.append(f_w1); b1.append(f_b1)
        w2.append(f_w2); b2.append(f_b2)

    stack_w = lambda xs: jnp.stack(xs, axis=0).astype(jnp.bfloat16)  # MXU operands
    stack_b = lambda xs: jnp.stack(xs, axis=0)                       # f32 adds
    # Per-layer LN params packed as one (depth, 6, D) slab: [g0,b0,g1,b1,g2,b2].
    one_layer_ln = jnp.concatenate(
        [jnp.ones((1, d_model)), jnp.zeros((1, d_model)),
         jnp.ones((1, d_model)), jnp.zeros((1, d_model)),
         jnp.ones((1, d_model)), jnp.zeros((1, d_model))], axis=0)
    lnp = jnp.stack([one_layer_ln] * depth, axis=0).astype(jnp.float32)
    return {
        "lnp": lnp,
        "wqkv_s": stack_w(wqkv_s), "bqkv_s": stack_b(bqkv_s),
        "wo_s": stack_w(wo_s), "bo_s": stack_b(bo_s),
        "wq_c": stack_w(wq_c), "bq_c": stack_b(bq_c),
        "wkv_c": stack_w(wkv_c), "bkv_c": stack_b(bkv_c),
        "wo_c": stack_w(wo_c), "bo_c": stack_b(bo_c),
        "w1": stack_w(w1), "b1": stack_b(b1),
        "w2": stack_w(w2), "b2": stack_b(b2),
        "norm_g": jnp.ones((1, d_model), jnp.float32),
        "norm_b": jnp.zeros((1, d_model), jnp.float32),
    }


# ----------------------------------- main ----------------------------------- #

if __name__ == "__main__":
    B, T, S = 2, 8, 8          # batch, target seq, memory seq
    D, H, DFF = 128, 4, 256    # features, heads, ffn hidden
    DEPTH = 2

    key = jax.random.PRNGKey(0)
    kp, kx, km, ks = jax.random.split(key, 4)

    params = init_params(kp, DEPTH, D, DFF, H)
    x = jax.random.normal(kx, (B, T, D), jnp.float32)
    mem = jax.random.normal(km, (B, S, D), jnp.float32)
    str_mat = 0.1 * jax.random.normal(ks, (B, T, S), jnp.float32)
    # last 2 memory positions are padding (True = pad), key_padding_mask style
    mem_pad_mask = jnp.broadcast_to(jnp.arange(S) >= S - 2, (B, S))

    fwd = jax.jit(functools.partial(decoder_forward, num_heads=H))
    out = fwd(params, x, mem, str_mat, mem_pad_mask)
    out = jax.block_until_ready(out)

    assert out.shape == (B, T, D)
    assert bool(jnp.all(jnp.isfinite(out)))
    print("KERNEL_OK")
</pallas_src>

<mosaic_0001>
module attributes {stable_mosaic.version = 11 : i64} {
  func.func @_decoder_kernel(%arg0: i32, %arg1: i32, %arg2: memref<2x8x128xf32, #tpu.memory_space<vmem>>, %arg3: memref<2x8x128xbf16, #tpu.memory_space<vmem>>, %arg4: memref<2x8x8xf32, #tpu.memory_space<vmem>>, %arg5: memref<1x6x128xf32, #tpu.memory_space<vmem>>, %arg6: memref<1x128x384xbf16, #tpu.memory_space<vmem>>, %arg7: memref<1x1x384xf32, #tpu.memory_space<vmem>>, %arg8: memref<1x128x128xbf16, #tpu.memory_space<vmem>>, %arg9: memref<1x1x128xf32, #tpu.memory_space<vmem>>, %arg10: memref<1x128x128xbf16, #tpu.memory_space<vmem>>, %arg11: memref<1x1x128xf32, #tpu.memory_space<vmem>>, %arg12: memref<1x128x256xbf16, #tpu.memory_space<vmem>>, %arg13: memref<1x1x256xf32, #tpu.memory_space<vmem>>, %arg14: memref<1x128x128xbf16, #tpu.memory_space<vmem>>, %arg15: memref<1x1x128xf32, #tpu.memory_space<vmem>>, %arg16: memref<1x128x256xbf16, #tpu.memory_space<vmem>>, %arg17: memref<1x1x256xf32, #tpu.memory_space<vmem>>, %arg18: memref<1x256x128xbf16, #tpu.memory_space<vmem>>, %arg19: memref<1x1x128xf32, #tpu.memory_space<vmem>>, %arg20: memref<1x128xf32, #tpu.memory_space<vmem>>, %arg21: memref<1x128xf32, #tpu.memory_space<vmem>>, %arg22: memref<2x8x128xf32, #tpu.memory_space<vmem>>, %arg23: memref<2x8x128xf32, #tpu.memory_space<vmem>>, %arg24: memref<8x128xf32, #tpu.memory_space<vmem>>) attributes {dimension_semantics = [#tpu.dimension_semantics<parallel>, #tpu.dimension_semantics<arbitrary>], iteration_bounds = array<i64: 1, 2>, scalar_prefetch = 0 : i64, scratch_operands = 2 : i64, tpu.core_type = #tpu.core_type<tc>, window_params = [{transform_indices = @transform_0, window_bounds = array<i64: 2, 8, 128>}, {transform_indices = @transform_1, window_bounds = array<i64: 2, 8, 128>}, {transform_indices = @transform_2, window_bounds = array<i64: 2, 8, 8>}, {transform_indices = @transform_3, window_bounds = array<i64: 1, 6, 128>}, {transform_indices = @transform_4, window_bounds = array<i64: 1, 128, 384>}, {transform_indices = @transform_5, window_bounds = array<i64: 1, 1, 384>}, {transform_indices = @transform_6, window_bounds = array<i64: 1, 128, 128>}, {transform_indices = @transform_7, window_bounds = array<i64: 1, 1, 128>}, {transform_indices = @transform_8, window_bounds = array<i64: 1, 128, 128>}, {transform_indices = @transform_9, window_bounds = array<i64: 1, 1, 128>}, {transform_indices = @transform_10, window_bounds = array<i64: 1, 128, 256>}, {transform_indices = @transform_11, window_bounds = array<i64: 1, 1, 256>}, {transform_indices = @transform_12, window_bounds = array<i64: 1, 128, 128>}, {transform_indices = @transform_13, window_bounds = array<i64: 1, 1, 128>}, {transform_indices = @transform_14, window_bounds = array<i64: 1, 128, 256>}, {transform_indices = @transform_15, window_bounds = array<i64: 1, 1, 256>}, {transform_indices = @transform_16, window_bounds = array<i64: 1, 256, 128>}, {transform_indices = @transform_17, window_bounds = array<i64: 1, 1, 128>}, {pipeline_mode = #tpu.pipeline_mode<synchronous>, transform_indices = @transform_18, window_bounds = array<i64: 1, 128>}, {pipeline_mode = #tpu.pipeline_mode<synchronous>, transform_indices = @transform_19, window_bounds = array<i64: 1, 128>}, {transform_indices = @transform_20, window_bounds = array<i64: 2, 8, 128>}]} {
    %c0_i32 = arith.constant 0 : i32
    %0 = arith.cmpi eq, %arg1, %c0_i32 : i32
    %1 = arith.extui %0 : i1 to i32
    %c0_i32_0 = arith.constant 0 : i32
    %2 = arith.cmpi ne, %1, %c0_i32_0 : i32
    scf.if %2 {
      %c0_217 = arith.constant 0 : index
      %c0_218 = arith.constant 0 : index
      %c0_219 = arith.constant 0 : index
      %543 = vector.load %arg2[%c0_217, %c0_218, %c0_219] : memref<2x8x128xf32, #tpu.memory_space<vmem>>, vector<2x8x128xf32>
      %c0_220 = arith.constant 0 : index
      %c0_221 = arith.constant 0 : index
      %c0_222 = arith.constant 0 : index
      %544 = vector.load %arg23[%c0_220, %c0_221, %c0_222] : memref<2x8x128xf32, #tpu.memory_space<vmem>>, vector<2x8x128xf32>
      tpu.vector_store %arg23[%c0_220, %c0_221, %c0_222], %543 {strides = array<i32>} : memref<2x8x128xf32, #tpu.memory_space<vmem>>, vector<2x8x128xf32>,
    } else {
    }
    %c0 = arith.constant 0 : index
    %c0_1 = arith.constant 0 : index
    %c0_2 = arith.constant 0 : index
    %3 = vector.load %arg5[%c0, %c0_1, %c0_2] : memref<1x6x128xf32, #tpu.memory_space<vmem>>, vector<1x6x128xf32>
    %4 = vector.shape_cast %3 : vector<1x6x128xf32> to vector<6x128xf32>
    %c0_3 = arith.constant 0 : index
    %c0_4 = arith.constant 0 : index
    %c0_5 = arith.constant 0 : index
    %5 = vector.load %arg6[%c0_3, %c0_4, %c0_5] : memref<1x128x384xbf16, #tpu.memory_space<vmem>>, vector<1x128x384xbf16>
    %6 = vector.shape_cast %5 : vector<1x128x384xbf16> to vector<128x384xbf16>
    %c0_6 = arith.constant 0 : index
    %c0_7 = arith.constant 0 : index
    %c0_8 = arith.constant 0 : index
    %7 = vector.load %arg7[%c0_6, %c0_7, %c0_8] : memref<1x1x384xf32, #tpu.memory_space<vmem>>, vector<1x1x384xf32>
    %8 = vector.shape_cast %7 : vector<1x1x384xf32> to vector<1x384xf32>
    %c0_9 = arith.constant 0 : index
    %c0_10 = arith.constant 0 : index
    %c0_11 = arith.constant 0 : index
    %9 = vector.load %arg8[%c0_9, %c0_10, %c0_11] : memref<1x128x128xbf16, #tpu.memory_space<vmem>>, vector<1x128x128xbf16>
    %10 = vector.shape_cast %9 : vector<1x128x128xbf16> to vector<128x128xbf16>
    %c0_12 = arith.constant 0 : index
    %c0_13 = arith.constant 0 : index
    %c0_14 = arith.constant 0 : index
    %11 = vector.load %arg9[%c0_12, %c0_13, %c0_14] : memref<1x1x128xf32, #tpu.memory_space<vmem>>, vector<1x1x128xf32>
    %12 = vector.shape_cast %11 : vector<1x1x128xf32> to vector<1x128xf32>
    %c0_15 = arith.constant 0 : index
    %c0_16 = arith.constant 0 : index
    %c0_17 = arith.constant 0 : index
    %13 = vector.load %arg10[%c0_15, %c0_16, %c0_17] : memref<1x128x128xbf16, #tpu.memory_space<vmem>>, vector<1x128x128xbf16>
    %14 = vector.shape_cast %13 : vector<1x128x128xbf16> to vector<128x128xbf16>
    %c0_18 = arith.constant 0 : index
    %c0_19 = arith.constant 0 : index
    %c0_20 = arith.constant 0 : index
    %15 = vector.load %arg11[%c0_18, %c0_19, %c0_20] : memref<1x1x128xf32, #tpu.memory_space<vmem>>, vector<1x1x128xf32>
    %16 = vector.shape_cast %15 : vector<1x1x128xf32> to vector<1x128xf32>
    %c0_21 = arith.constant 0 : index
    %c0_22 = arith.constant 0 : index
    %c0_23 = arith.constant 0 : index
    %17 = vector.load %arg12[%c0_21, %c0_22, %c0_23] : memref<1x128x256xbf16, #tpu.memory_space<vmem>>, vector<1x128x256xbf16>
    %18 = vector.shape_cast %17 : vector<1x128x256xbf16> to vector<128x256xbf16>
    %c0_24 = arith.constant 0 : index
    %c0_25 = arith.constant 0 : index
    %c0_26 = arith.constant 0 : index
    %19 = vector.load %arg13[%c0_24, %c0_25, %c0_26] : memref<1x1x256xf32, #tpu.memory_space<vmem>>, vector<1x1x256xf32>
    %20 = vector.shape_cast %19 : vector<1x1x256xf32> to vector<1x256xf32>
    %c0_27 = arith.constant 0 : index
    %c0_28 = arith.constant 0 : index
    %c0_29 = arith.constant 0 : index
    %21 = vector.load %arg14[%c0_27, %c0_28, %c0_29] : memref<1x128x128xbf16, #tpu.memory_space<vmem>>, vector<1x128x128xbf16>
    %22 = vector.shape_cast %21 : vector<1x128x128xbf16> to vector<128x128xbf16>
    %c0_30 = arith.constant 0 : index
    %c0_31 = arith.constant 0 : index
    %c0_32 = arith.constant 0 : index
    %23 = vector.load %arg15[%c0_30, %c0_31, %c0_32] : memref<1x1x128xf32, #tpu.memory_space<vmem>>, vector<1x1x128xf32>
    %24 = vector.shape_cast %23 : vector<1x1x128xf32> to vector<1x128xf32>
    %c0_33 = arith.constant 0 : index
    %c0_34 = arith.constant 0 : index
    %c0_35 = arith.constant 0 : index
    %25 = vector.load %arg16[%c0_33, %c0_34, %c0_35] : memref<1x128x256xbf16, #tpu.memory_space<vmem>>, vector<1x128x256xbf16>
    %26 = vector.shape_cast %25 : vector<1x128x256xbf16> to vector<128x256xbf16>
    %c0_36 = arith.constant 0 : index
    %c0_37 = arith.constant 0 : index
    %c0_38 = arith.constant 0 : index
    %27 = vector.load %arg17[%c0_36, %c0_37, %c0_38] : memref<1x1x256xf32, #tpu.memory_space<vmem>>, vector<1x1x256xf32>
    %28 = vector.shape_cast %27 : vector<1x1x256xf32> to vector<1x256xf32>
    %c0_39 = arith.constant 0 : index
    %c0_40 = arith.constant 0 : index
    %c0_41 = arith.constant 0 : index
    %29 = vector.load %arg18[%c0_39, %c0_40, %c0_41] : memref<1x256x128xbf16, #tpu.memory_space<vmem>>, vector<1x256x128xbf16>
    %30 = vector.shape_cast %29 : vector<1x256x128xbf16> to vector<256x128xbf16>
    %c0_42 = arith.constant 0 : index
    %c0_43 = arith.constant 0 : index
    %c0_44 = arith.constant 0 : index
    %31 = vector.load %arg19[%c0_42, %c0_43, %c0_44] : memref<1x1x128xf32, #tpu.memory_space<vmem>>, vector<1x1x128xf32>
    %32 = vector.shape_cast %31 : vector<1x1x128xf32> to vector<1x128xf32>
    %c0_45 = arith.constant 0 : index
    %c0_46 = arith.constant 0 : index
    %c0_47 = arith.constant 0 : index
    %33 = vector.load %arg23[%c0_45, %c0_46, %c0_47] : memref<2x8x128xf32, #tpu.memory_space<vmem>>, vector<1x8x128xf32>
    %34 = vector.shape_cast %33 : vector<1x8x128xf32> to vector<8x128xf32>
    %c0_48 = arith.constant 0 : index
    %c0_49 = arith.constant 0 : index
    %c0_50 = arith.constant 0 : index
    %35 = vector.load %arg3[%c0_48, %c0_49, %c0_50] : memref<2x8x128xbf16, #tpu.memory_space<vmem>>, vector<1x8x128xbf16>
    %36 = vector.shape_cast %35 : vector<1x8x128xbf16> to vector<8x128xbf16>
    %c0_51 = arith.constant 0 : index
    %c0_52 = arith.constant 0 : index
    %c0_53 = arith.constant 0 : index
    %37 = vector.load %arg4[%c0_51, %c0_52, %c0_53] : memref<2x8x8xf32, #tpu.memory_space<vmem>>, vector<1x8x8xf32>
    %38 = vector.shape_cast %37 : vector<1x8x8xf32> to vector<8x8xf32>
    %39 = vector.extract_strided_slice %4 {offsets = [0, 0], sizes = [1, 128], strides = [1, 1]} : vector<6x128xf32> to vector<1x128xf32>
    %40 = vector.extract_strided_slice %4 {offsets = [1, 0], sizes = [1, 128], strides = [1, 1]} : vector<6x128xf32> to vector<1x128xf32>
    %cst = arith.constant dense<0.000000e+00> : vector<8xf32>
    %41 = vector.multi_reduction <add>, %34, %cst [1] : vector<8x128xf32> to vector<8xf32>
    %42 = vector.shape_cast %41 : vector<8xf32> to vector<8x1xf32>
    %cst_54 = arith.constant 1.280000e+02 : f32
    %43 = vector.broadcast %cst_54 : f32 to vector<8x1xf32>
    %44 = arith.divf %42, %43 : vector<8x1xf32>
    %45 = vector.broadcast %44 : vector<8x1xf32> to vector<8x128xf32>
    %46 = arith.subf %34, %45 : vector<8x128xf32>
    %47 = arith.mulf %46, %46 : vector<8x128xf32>
    %cst_55 = arith.constant dense<0.000000e+00> : vector<8xf32>
    %48 = vector.multi_reduction <add>, %47, %cst_55 [1] : vector<8x128xf32> to vector<8xf32>
    %49 = vector.shape_cast %48 : vector<8xf32> to vector<8x1xf32>
    %cst_56 = arith.constant 1.280000e+02 : f32
    %50 = vector.broadcast %cst_56 : f32 to vector<8x1xf32>
    %51 = arith.divf %49, %50 : vector<8x1xf32>
    %cst_57 = arith.constant 9.99999997E-7 : f32
    %52 = vector.broadcast %cst_57 : f32 to vector<8x1xf32>
    %53 = arith.addf %51, %52 : vector<8x1xf32>
    %54 = math.rsqrt %53 : vector<8x1xf32>
    %55 = vector.broadcast %54 : vector<8x1xf32> to vector<8x128xf32>
    %56 = arith.mulf %46, %55 : vector<8x128xf32>
    %57 = vector.broadcast %39 : vector<1x128xf32> to vector<8x128xf32>
    %58 = arith.mulf %56, %57 : vector<8x128xf32>
    %59 = vector.broadcast %40 : vector<1x128xf32> to vector<8x128xf32>
    %60 = arith.addf %58, %59 : vector<8x128xf32>
    %61 = arith.truncf %60 : vector<8x128xf32> to vector<8x128xbf16>
    %cst_58 = arith.constant dense<0.000000e+00> : vector<8x384xf32>
    %62 = tpu.matmul %61, %6, %cst_58 {dimension_numbers = #tpu.dot_dimension_numbers<[1], [0], [0], [1], [0, 0, 1, 1], [], []>} : vector<8x128xbf16>, vector<128x384xbf16>, vector<8x384xf32> -> vector<8x384xf32>
    %63 = vector.broadcast %8 : vector<1x384xf32> to vector<8x384xf32>
    %64 = arith.addf %62, %63 : vector<8x384xf32>
    %65 = arith.truncf %64 : vector<8x384xf32> to vector<8x384xbf16>
    %66 = vector.extract_strided_slice %65 {offsets = [0, 0], sizes = [8, 32], strides = [1, 1]} : vector<8x384xbf16> to vector<8x32xbf16>
    %67 = vector.extract_strided_slice %65 {offsets = [0, 128], sizes = [8, 32], strides = [1, 1]} : vector<8x384xbf16> to vector<8x32xbf16>
    %68 = vector.extract_strided_slice %65 {offsets = [0, 256], sizes = [8, 32], strides = [1, 1]} : vector<8x384xbf16> to vector<8x32xbf16>
    %cst_59 = arith.constant dense<0.000000e+00> : vector<8x8xf32>
    %69 = tpu.matmul %66, %67, %cst_59 {dimension_numbers = #tpu.dot_dimension_numbers<[1], [1], [0], [0], [0, 0, 1, 0], [], []>} : vector<8x32xbf16>, vector<8x32xbf16>, vector<8x8xf32> -> vector<8x8xf32>
    %cst_60 = arith.constant dense<0xFF800000> : vector<8xf32>
    %70 = vector.multi_reduction <maximumf>, %69, %cst_60 [1] : vector<8x8xf32> to vector<8xf32>
    %71 = vector.shape_cast %70 : vector<8xf32> to vector<8x1xf32>
    %72 = vector.broadcast %71 : vector<8x1xf32> to vector<8x8xf32>
    %73 = arith.subf %69, %72 : vector<8x8xf32>
    %74 = math.exp %73 : vector<8x8xf32>
    %cst_61 = arith.constant dense<0.000000e+00> : vector<8xf32>
    %75 = vector.multi_reduction <add>, %74, %cst_61 [1] : vector<8x8xf32> to vector<8xf32>
    %76 = vector.shape_cast %75 : vector<8xf32> to vector<8x1xf32>
    %77 = tpu.reciprocal %76 {approx = true} : vector<8x1xf32> -> vector<8x1xf32>
    %78 = vector.broadcast %77 : vector<8x1xf32> to vector<8x8xf32>
    %79 = arith.mulf %74, %78 : vector<8x8xf32>
    %80 = arith.truncf %79 : vector<8x8xf32> to vector<8x8xbf16>
    %cst_62 = arith.constant dense<0.000000e+00> : vector<8x32xf32>
    %81 = tpu.matmul %80, %68, %cst_62 {dimension_numbers = #tpu.dot_dimension_numbers<[1], [0], [0], [1], [0, 0, 1, 1], [], []>} : vector<8x8xbf16>, vector<8x32xbf16>, vector<8x32xf32> -> vector<8x32xf32>
    %c0_63 = arith.constant 0 : index
    %c0_64 = arith.constant 0 : index
    %82 = vector.load %arg24[%c0_63, %c0_64] : memref<8x128xf32, #tpu.memory_space<vmem>>, vector<8x32xf32>
    tpu.vector_store %arg24[%c0_63, %c0_64], %81 {strides = array<i32>} : memref<8x128xf32, #tpu.memory_space<vmem>>, vector<8x32xf32>,
    %83 = vector.extract_strided_slice %65 {offsets = [0, 32], sizes = [8, 32], strides = [1, 1]} : vector<8x384xbf16> to vector<8x32xbf16>
    %84 = vector.extract_strided_slice %65 {offsets = [0, 160], sizes = [8, 32], strides = [1, 1]} : vector<8x384xbf16> to vector<8x32xbf16>
    %85 = vector.extract_strided_slice %65 {offsets = [0, 288], sizes = [8, 32], strides = [1, 1]} : vector<8x384xbf16> to vector<8x32xbf16>
    %cst_65 = arith.constant dense<0.000000e+00> : vector<8x8xf32>
    %86 = tpu.matmul %83, %84, %cst_65 {dimension_numbers = #tpu.dot_dimension_numbers<[1], [1], [0], [0], [0, 0, 1, 0], [], []>} : vector<8x32xbf16>, vector<8x32xbf16>, vector<8x8xf32> -> vector<8x8xf32>
    %cst_66 = arith.constant dense<0xFF800000> : vector<8xf32>
    %87 = vector.multi_reduction <maximumf>, %86, %cst_66 [1] : vector<8x8xf32> to vector<8xf32>
    %88 = vector.shape_cast %87 : vector<8xf32> to vector<8x1xf32>
    %89 = vector.broadcast %88 : vector<8x1xf32> to vector<8x8xf32>
    %90 = arith.subf %86, %89 : vector<8x8xf32>
    %91 = math.exp %90 : vector<8x8xf32>
    %cst_67 = arith.constant dense<0.000000e+00> : vector<8xf32>
    %92 = vector.multi_reduction <add>, %91, %cst_67 [1] : vector<8x8xf32> to vector<8xf32>
    %93 = vector.shape_cast %92 : vector<8xf32> to vector<8x1xf32>
    %94 = tpu.reciprocal %93 {approx = true} : vector<8x1xf32> -> vector<8x1xf32>
    %95 = vector.broadcast %94 : vector<8x1xf32> to vector<8x8xf32>
    %96 = arith.mulf %91, %95 : vector<8x8xf32>
    %97 = arith.truncf %96 : vector<8x8xf32> to vector<8x8xbf16>
    %cst_68 = arith.constant dense<0.000000e+00> : vector<8x32xf32>
    %98 = tpu.matmul %97, %85, %cst_68 {dimension_numbers = #tpu.dot_dimension_numbers<[1], [0], [0], [1], [0, 0, 1, 1], [], []>} : vector<8x8xbf16>, vector<8x32xbf16>, vector<8x32xf32> -> vector<8x32xf32>
    %c0_69 = arith.constant 0 : index
    %c32 = arith.constant 32 : index
    %99 = vector.load %arg24[%c0_69, %c32] : memref<8x128xf32, #tpu.memory_space<vmem>>, vector<8x32xf32>
    tpu.vector_store %arg24[%c0_69, %c32], %98 {strides = array<i32>} : memref<8x128xf32, #tpu.memory_space<vmem>>, vector<8x32xf32>,
    %100 = vector.extract_strided_slice %65 {offsets = [0, 64], sizes = [8, 32], strides = [1, 1]} : vector<8x384xbf16> to vector<8x32xbf16>
    %101 = vector.extract_strided_slice %65 {offsets = [0, 192], sizes = [8, 32], strides = [1, 1]} : vector<8x384xbf16> to vector<8x32xbf16>
    %102 = vector.extract_strided_slice %65 {offsets = [0, 320], sizes = [8, 32], strides = [1, 1]} : vector<8x384xbf16> to vector<8x32xbf16>
    %cst_70 = arith.constant dense<0.000000e+00> : vector<8x8xf32>
    %103 = tpu.matmul %100, %101, %cst_70 {dimension_numbers = #tpu.dot_dimension_numbers<[1], [1], [0], [0], [0, 0, 1, 0], [], []>} : vector<8x32xbf16>, vector<8x32xbf16>, vector<8x8xf32> -> vector<8x8xf32>
    %cst_71 = arith.constant dense<0xFF800000> : vector<8xf32>
    %104 = vector.multi_reduction <maximumf>, %103, %cst_71 [1] : vector<8x8xf32> to vector<8xf32>
    %105 = vector.shape_cast %104 : vector<8xf32> to vector<8x1xf32>
    %106 = vector.broadcast %105 : vector<8x1xf32> to vector<8x8xf32>
    %107 = arith.subf %103, %106 : vector<8x8xf32>
    %108 = math.exp %107 : vector<8x8xf32>
    %cst_72 = arith.constant dense<0.000000e+00> : vector<8xf32>
    %109 = vector.multi_reduction <add>, %108, %cst_72 [1] : vector<8x8xf32> to vector<8xf32>
    %110 = vector.shape_cast %109 : vector<8xf32> to vector<8x1xf32>
    %111 = tpu.reciprocal %110 {approx = true} : vector<8x1xf32> -> vector<8x1xf32>
    %112 = vector.broadcast %111 : vector<8x1xf32> to vector<8x8xf32>
    %113 = arith.mulf %108, %112 : vector<8x8xf32>
    %114 = arith.truncf %113 : vector<8x8xf32> to vector<8x8xbf16>
    %cst_73 = arith.constant dense<0.000000e+00> : vector<8x32xf32>
    %115 = tpu.matmul %114, %102, %cst_73 {dimension_numbers = #tpu.dot_dimension_numbers<[1], [0], [0], [1], [0, 0, 1, 1], [], []>} : vector<8x8xbf16>, vector<8x32xbf16>, vector<8x32xf32> -> vector<8x32xf32>
    %c0_74 = arith.constant 0 : index
    %c64 = arith.constant 64 : index
    %116 = vector.load %arg24[%c0_74, %c64] : memref<8x128xf32, #tpu.memory_space<vmem>>, vector<8x32xf32>
    tpu.vector_store %arg24[%c0_74, %c64], %115 {strides = array<i32>} : memref<8x128xf32, #tpu.memory_space<vmem>>, vector<8x32xf32>,
    %117 = vector.extract_strided_slice %65 {offsets = [0, 96], sizes = [8, 32], strides = [1, 1]} : vector<8x384xbf16> to vector<8x32xbf16>
    %118 = vector.extract_strided_slice %65 {offsets = [0, 224], sizes = [8, 32], strides = [1, 1]} : vector<8x384xbf16> to vector<8x32xbf16>
    %119 = vector.extract_strided_slice %65 {offsets = [0, 352], sizes = [8, 32], strides = [1, 1]} : vector<8x384xbf16> to vector<8x32xbf16>
    %cst_75 = arith.constant dense<0.000000e+00> : vector<8x8xf32>
    %120 = tpu.matmul %117, %118, %cst_75 {dimension_numbers = #tpu.dot_dimension_numbers<[1], [1], [0], [0], [0, 0, 1, 0], [], []>} : vector<8x32xbf16>, vector<8x32xbf16>, vector<8x8xf32> -> vector<8x8xf32>
    %cst_76 = arith.constant dense<0xFF800000> : vector<8xf32>
    %121 = vector.multi_reduction <maximumf>, %120, %cst_76 [1] : vector<8x8xf32> to vector<8xf32>
    %122 = vector.shape_cast %121 : vector<8xf32> to vector<8x1xf32>
    %123 = vector.broadcast %122 : vector<8x1xf32> to vector<8x8xf32>
    %124 = arith.subf %120, %123 : vector<8x8xf32>
    %125 = math.exp %124 : vector<8x8xf32>
    %cst_77 = arith.constant dense<0.000000e+00> : vector<8xf32>
    %126 = vector.multi_reduction <add>, %125, %cst_77 [1] : vector<8x8xf32> to vector<8xf32>
    %127 = vector.shape_cast %126 : vector<8xf32> to vector<8x1xf32>
    %128 = tpu.reciprocal %127 {approx = true} : vector<8x1xf32> -> vector<8x1xf32>
    %129 = vector.broadcast %128 : vector<8x1xf32> to vector<8x8xf32>
    %130 = arith.mulf %125, %129 : vector<8x8xf32>
    %131 = arith.truncf %130 : vector<8x8xf32> to vector<8x8xbf16>
    %cst_78 = arith.constant dense<0.000000e+00> : vector<8x32xf32>
    %132 = tpu.matmul %131, %119, %cst_78 {dimension_numbers = #tpu.dot_dimension_numbers<[1], [0], [0], [1], [0, 0, 1, 1], [], []>} : vector<8x8xbf16>, vector<8x32xbf16>, vector<8x32xf32> -> vector<8x32xf32>
    %c0_79 = arith.constant 0 : index
    %c96 = arith.constant 96 : index
    %133 = vector.load %arg24[%c0_79, %c96] : memref<8x128xf32, #tpu.memory_space<vmem>>, vector<8x32xf32>
    tpu.vector_store %arg24[%c0_79, %c96], %132 {strides = array<i32>} : memref<8x128xf32, #tpu.memory_space<vmem>>, vector<8x32xf32>,
    %c0_80 = arith.constant 0 : index
    %c0_81 = arith.constant 0 : index
    %134 = vector.load %arg24[%c0_80, %c0_81] : memref<8x128xf32, #tpu.memory_space<vmem>>, vector<8x128xf32>
    %135 = arith.truncf %134 : vector<8x128xf32> to vector<8x128xbf16>
    %cst_82 = arith.constant dense<0.000000e+00> : vector<8x128xf32>
    %136 = tpu.matmul %135, %10, %cst_82 {dimension_numbers = #tpu.dot_dimension_numbers<[1], [0], [0], [1], [0, 0, 1, 1], [], []>} : vector<8x128xbf16>, vector<128x128xbf16>, vector<8x128xf32> -> vector<8x128xf32>
    %137 = arith.addf %34, %136 : vector<8x128xf32>
    %138 = vector.broadcast %12 : vector<1x128xf32> to vector<8x128xf32>
    %139 = arith.addf %137, %138 : vector<8x128xf32>
    %140 = vector.extract_strided_slice %4 {offsets = [2, 0], sizes = [1, 128], strides = [1, 1]} : vector<6x128xf32> to vector<1x128xf32>
    %141 = vector.extract_strided_slice %4 {offsets = [3, 0], sizes = [1, 128], strides = [1, 1]} : vector<6x128xf32> to vector<1x128xf32>
    %cst_83 = arith.constant dense<0.000000e+00> : vector<8xf32>
    %142 = vector.multi_reduction <add>, %139, %cst_83 [1] : vector<8x128xf32> to vector<8xf32>
    %143 = vector.shape_cast %142 : vector<8xf32> to vector<8x1xf32>
    %cst_84 = arith.constant 1.280000e+02 : f32
    %144 = vector.broadcast %cst_84 : f32 to vector<8x1xf32>
    %145 = arith.divf %143, %144 : vector<8x1xf32>
    %146 = vector.broadcast %145 : vector<8x1xf32> to vector<8x128xf32>
    %147 = arith.subf %139, %146 : vector<8x128xf32>
    %148 = arith.mulf %147, %147 : vector<8x128xf32>
    %cst_85 = arith.constant dense<0.000000e+00> : vector<8xf32>
    %149 = vector.multi_reduction <add>, %148, %cst_85 [1] : vector<8x128xf32> to vector<8xf32>
    %150 = vector.shape_cast %149 : vector<8xf32> to vector<8x1xf32>
    %cst_86 = arith.constant 1.280000e+02 : f32
    %151 = vector.broadcast %cst_86 : f32 to vector<8x1xf32>
    %152 = arith.divf %150, %151 : vector<8x1xf32>
    %cst_87 = arith.constant 9.99999997E-7 : f32
    %153 = vector.broadcast %cst_87 : f32 to vector<8x1xf32>
    %154 = arith.addf %152, %153 : vector<8x1xf32>
    %155 = math.rsqrt %154 : vector<8x1xf32>
    %156 = vector.broadcast %155 : vector<8x1xf32> to vector<8x128xf32>
    %157 = arith.mulf %147, %156 : vector<8x128xf32>
    %158 = vector.broadcast %140 : vector<1x128xf32> to vector<8x128xf32>
    %159 = arith.mulf %157, %158 : vector<8x128xf32>
    %160 = vector.broadcast %141 : vector<1x128xf32> to vector<8x128xf32>
    %161 = arith.addf %159, %160 : vector<8x128xf32>
    %162 = arith.truncf %161 : vector<8x128xf32> to vector<8x128xbf16>
    %cst_88 = arith.constant dense<0.000000e+00> : vector<8x128xf32>
    %163 = tpu.matmul %162, %14, %cst_88 {dimension_numbers = #tpu.dot_dimension_numbers<[1], [0], [0], [1], [0, 0, 1, 1], [], []>} : vector<8x128xbf16>, vector<128x128xbf16>, vector<8x128xf32> -> vector<8x128xf32>
    %164 = vector.broadcast %16 : vector<1x128xf32> to vector<8x128xf32>
    %165 = arith.addf %163, %164 : vector<8x128xf32>
    %166 = arith.truncf %165 : vector<8x128xf32> to vector<8x128xbf16>
    %cst_89 = arith.constant dense<0.000000e+00> : vector<8x256xf32>
    %167 = tpu.matmul %36, %18, %cst_89 {dimension_numbers = #tpu.dot_dimension_numbers<[1], [0], [0], [1], [0, 0, 1, 1], [], []>} : vector<8x128xbf16>, vector<128x256xbf16>, vector<8x256xf32> -> vector<8x256xf32>
    %168 = vector.broadcast %20 : vector<1x256xf32> to vector<8x256xf32>
    %169 = arith.addf %167, %168 : vector<8x256xf32>
    %170 = arith.truncf %169 : vector<8x256xf32> to vector<8x256xbf16>
    %171 = vector.extract_strided_slice %166 {offsets = [0, 0], sizes = [8, 32], strides = [1, 1]} : vector<8x128xbf16> to vector<8x32xbf16>
    %172 = vector.extract_strided_slice %170 {offsets = [0, 0], sizes = [8, 32], strides = [1, 1]} : vector<8x256xbf16> to vector<8x32xbf16>
    %173 = vector.extract_strided_slice %170 {offsets = [0, 128], sizes = [8, 32], strides = [1, 1]} : vector<8x256xbf16> to vector<8x32xbf16>
    %cst_90 = arith.constant dense<0.000000e+00> : vector<8x8xf32>
    %174 = tpu.matmul %171, %172, %cst_90 {dimension_numbers = #tpu.dot_dimension_numbers<[1], [1], [0], [0], [0, 0, 1, 0], [], []>} : vector<8x32xbf16>, vector<8x32xbf16>, vector<8x8xf32> -> vector<8x8xf32>
    %175 = arith.addf %174, %38 : vector<8x8xf32>
    %cst_91 = arith.constant dense<0xFF800000> : vector<8xf32>
    %176 = vector.multi_reduction <maximumf>, %175, %cst_91 [1] : vector<8x8xf32> to vector<8xf32>
    %177 = vector.shape_cast %176 : vector<8xf32> to vector<8x1xf32>
    %178 = vector.broadcast %177 : vector<8x1xf32> to vector<8x8xf32>
    %179 = arith.subf %175, %178 : vector<8x8xf32>
    %180 = math.exp %179 : vector<8x8xf32>
    %cst_92 = arith.constant dense<0.000000e+00> : vector<8xf32>
    %181 = vector.multi_reduction <add>, %180, %cst_92 [1] : vector<8x8xf32> to vector<8xf32>
    %182 = vector.shape_cast %181 : vector<8xf32> to vector<8x1xf32>
    %183 = tpu.reciprocal %182 {approx = true} : vector<8x1xf32> -> vector<8x1xf32>
    %184 = vector.broadcast %183 : vector<8x1xf32> to vector<8x8xf32>
    %185 = arith.mulf %180, %184 : vector<8x8xf32>
    %186 = arith.truncf %185 : vector<8x8xf32> to vector<8x8xbf16>
    %cst_93 = arith.constant dense<0.000000e+00> : vector<8x32xf32>
    %187 = tpu.matmul %186, %173, %cst_93 {dimension_numbers = #tpu.dot_dimension_numbers<[1], [0], [0], [1], [0, 0, 1, 1], [], []>} : vector<8x8xbf16>, vector<8x32xbf16>, vector<8x32xf32> -> vector<8x32xf32>
    %c0_94 = arith.constant 0 : index
    %c0_95 = arith.constant 0 : index
    %188 = vector.load %arg24[%c0_94, %c0_95] : memref<8x128xf32, #tpu.memory_space<vmem>>, vector<8x32xf32>
    tpu.vector_store %arg24[%c0_94, %c0_95], %187 {strides = array<i32>} : memref<8x128xf32, #tpu.memory_space<vmem>>, vector<8x32xf32>,
    %189 = vector.extract_strided_slice %166 {offsets = [0, 32], sizes = [8, 32], strides = [1, 1]} : vector<8x128xbf16> to vector<8x32xbf16>
    %190 = vector.extract_strided_slice %170 {offsets = [0, 32], sizes = [8, 32], strides = [1, 1]} : vector<8x256xbf16> to vector<8x32xbf16>
    %191 = vector.extract_strided_slice %170 {offsets = [0, 160], sizes = [8, 32], strides = [1, 1]} : vector<8x256xbf16> to vector<8x32xbf16>
    %cst_96 = arith.constant dense<0.000000e+00> : vector<8x8xf32>
    %192 = tpu.matmul %189, %190, %cst_96 {dimension_numbers = #tpu.dot_dimension_numbers<[1], [1], [0], [0], [0, 0, 1, 0], [], []>} : vector<8x32xbf16>, vector<8x32xbf16>, vector<8x8xf32> -> vector<8x8xf32>
    %193 = arith.addf %192, %38 : vector<8x8xf32>
    %cst_97 = arith.constant dense<0xFF800000> : vector<8xf32>
    %194 = vector.multi_reduction <maximumf>, %193, %cst_97 [1] : vector<8x8xf32> to vector<8xf32>
    %195 = vector.shape_cast %194 : vector<8xf32> to vector<8x1xf32>
    %196 = vector.broadcast %195 : vector<8x1xf32> to vector<8x8xf32>
    %197 = arith.subf %193, %196 : vector<8x8xf32>
    %198 = math.exp %197 : vector<8x8xf32>
    %cst_98 = arith.constant dense<0.000000e+00> : vector<8xf32>
    %199 = vector.multi_reduction <add>, %198, %cst_98 [1] : vector<8x8xf32> to vector<8xf32>
    %200 = vector.shape_cast %199 : vector<8xf32> to vector<8x1xf32>
    %201 = tpu.reciprocal %200 {approx = true} : vector<8x1xf32> -> vector<8x1xf32>
    %202 = vector.broadcast %201 : vector<8x1xf32> to vector<8x8xf32>
    %203 = arith.mulf %198, %202 : vector<8x8xf32>
    %204 = arith.truncf %203 : vector<8x8xf32> to vector<8x8xbf16>
    %cst_99 = arith.constant dense<0.000000e+00> : vector<8x32xf32>
    %205 = tpu.matmul %204, %191, %cst_99 {dimension_numbers = #tpu.dot_dimension_numbers<[1], [0], [0], [1], [0, 0, 1, 1], [], []>} : vector<8x8xbf16>, vector<8x32xbf16>, vector<8x32xf32> -> vector<8x32xf32>
    %c0_100 = arith.constant 0 : index
    %c32_101 = arith.constant 32 : index
    %206 = vector.load %arg24[%c0_100, %c32_101] : memref<8x128xf32, #tpu.memory_space<vmem>>, vector<8x32xf32>
    tpu.vector_store %arg24[%c0_100, %c32_101], %205 {strides = array<i32>} : memref<8x128xf32, #tpu.memory_space<vmem>>, vector<8x32xf32>,
    %207 = vector.extract_strided_slice %166 {offsets = [0, 64], sizes = [8, 32], strides = [1, 1]} : vector<8x128xbf16> to vector<8x32xbf16>
    %208 = vector.extract_strided_slice %170 {offsets = [0, 64], sizes = [8, 32], strides = [1, 1]} : vector<8x256xbf16> to vector<8x32xbf16>
    %209 = vector.extract_strided_slice %170 {offsets = [0, 192], sizes = [8, 32], strides = [1, 1]} : vector<8x256xbf16> to vector<8x32xbf16>
    %cst_102 = arith.constant dense<0.000000e+00> : vector<8x8xf32>
    %210 = tpu.matmul %207, %208, %cst_102 {dimension_numbers = #tpu.dot_dimension_numbers<[1], [1], [0], [0], [0, 0, 1, 0], [], []>} : vector<8x32xbf16>, vector<8x32xbf16>, vector<8x8xf32> -> vector<8x8xf32>
    %211 = arith.addf %210, %38 : vector<8x8xf32>
    %cst_103 = arith.constant dense<0xFF800000> : vector<8xf32>
    %212 = vector.multi_reduction <maximumf>, %211, %cst_103 [1] : vector<8x8xf32> to vector<8xf32>
    %213 = vector.shape_cast %212 : vector<8xf32> to vector<8x1xf32>
    %214 = vector.broadcast %213 : vector<8x1xf32> to vector<8x8xf32>
    %215 = arith.subf %211, %214 : vector<8x8xf32>
    %216 = math.exp %215 : vector<8x8xf32>
    %cst_104 = arith.constant dense<0.000000e+00> : vector<8xf32>
    %217 = vector.multi_reduction <add>, %216, %cst_104 [1] : vector<8x8xf32> to vector<8xf32>
    %218 = vector.shape_cast %217 : vector<8xf32> to vector<8x1xf32>
    %219 = tpu.reciprocal %218 {approx = true} : vector<8x1xf32> -> vector<8x1xf32>
    %220 = vector.broadcast %219 : vector<8x1xf32> to vector<8x8xf32>
    %221 = arith.mulf %216, %220 : vector<8x8xf32>
    %222 = arith.truncf %221 : vector<8x8xf32> to vector<8x8xbf16>
    %cst_105 = arith.constant dense<0.000000e+00> : vector<8x32xf32>
    %223 = tpu.matmul %222, %209, %cst_105 {dimension_numbers = #tpu.dot_dimension_numbers<[1], [0], [0], [1], [0, 0, 1, 1], [], []>} : vector<8x8xbf16>, vector<8x32xbf16>, vector<8x32xf32> -> vector<8x32xf32>
    %c0_106 = arith.constant 0 : index
    %c64_107 = arith.constant 64 : index
    %224 = vector.load %arg24[%c0_106, %c64_107] : memref<8x128xf32, #tpu.memory_space<vmem>>, vector<8x32xf32>
    tpu.vector_store %arg24[%c0_106, %c64_107], %223 {strides = array<i32>} : memref<8x128xf32, #tpu.memory_space<vmem>>, vector<8x32xf32>,
    %225 = vector.extract_strided_slice %166 {offsets = [0, 96], sizes = [8, 32], strides = [1, 1]} : vector<8x128xbf16> to vector<8x32xbf16>
    %226 = vector.extract_strided_slice %170 {offsets = [0, 96], sizes = [8, 32], strides = [1, 1]} : vector<8x256xbf16> to vector<8x32xbf16>
    %227 = vector.extract_strided_slice %170 {offsets = [0, 224], sizes = [8, 32], strides = [1, 1]} : vector<8x256xbf16> to vector<8x32xbf16>
    %cst_108 = arith.constant dense<0.000000e+00> : vector<8x8xf32>
    %228 = tpu.matmul %225, %226, %cst_108 {dimension_numbers = #tpu.dot_dimension_numbers<[1], [1], [0], [0], [0, 0, 1, 0], [], []>} : vector<8x32xbf16>, vector<8x32xbf16>, vector<8x8xf32> -> vector<8x8xf32>
    %229 = arith.addf %228, %38 : vector<8x8xf32>
    %cst_109 = arith.constant dense<0xFF800000> : vector<8xf32>
    %230 = vector.multi_reduction <maximumf>, %229, %cst_109 [1] : vector<8x8xf32> to vector<8xf32>
    %231 = vector.shape_cast %230 : vector<8xf32> to vector<8x1xf32>
    %232 = vector.broadcast %231 : vector<8x1xf32> to vector<8x8xf32>
    %233 = arith.subf %229, %232 : vector<8x8xf32>
    %234 = math.exp %233 : vector<8x8xf32>
    %cst_110 = arith.constant dense<0.000000e+00> : vector<8xf32>
    %235 = vector.multi_reduction <add>, %234, %cst_110 [1] : vector<8x8xf32> to vector<8xf32>
    %236 = vector.shape_cast %235 : vector<8xf32> to vector<8x1xf32>
    %237 = tpu.reciprocal %236 {approx = true} : vector<8x1xf32> -> vector<8x1xf32>
    %238 = vector.broadcast %237 : vector<8x1xf32> to vector<8x8xf32>
    %239 = arith.mulf %234, %238 : vector<8x8xf32>
    %240 = arith.truncf %239 : vector<8x8xf32> to vector<8x8xbf16>
    %cst_111 = arith.constant dense<0.000000e+00> : vector<8x32xf32>
    %241 = tpu.matmul %240, %227, %cst_111 {dimension_numbers = #tpu.dot_dimension_numbers<[1], [0], [0], [1], [0, 0, 1, 1], [], []>} : vector<8x8xbf16>, vector<8x32xbf16>, vector<8x32xf32> -> vector<8x32xf32>
    %c0_112 = arith.constant 0 : index
    %c96_113 = arith.constant 96 : index
    %242 = vector.load %arg24[%c0_112, %c96_113] : memref<8x128xf32, #tpu.memory_space<vmem>>, vector<8x32xf32>
    tpu.vector_store %arg24[%c0_112, %c96_113], %241 {strides = array<i32>} : memref<8x128xf32, #tpu.memory_space<vmem>>, vector<8x32xf32>,
    %c0_114 = arith.constant 0 : index
    %c0_115 = arith.constant 0 : index
    %243 = vector.load %arg24[%c0_114, %c0_115] : memref<8x128xf32, #tpu.memory_space<vmem>>, vector<8x128xf32>
    %244 = arith.truncf %243 : vector<8x128xf32> to vector<8x128xbf16>
    %cst_116 = arith.constant dense<0.000000e+00> : vector<8x128xf32>
    %245 = tpu.matmul %244, %22, %cst_116 {dimension_numbers = #tpu.dot_dimension_numbers<[1], [0], [0], [1], [0, 0, 1, 1], [], []>} : vector<8x128xbf16>, vector<128x128xbf16>, vector<8x128xf32> -> vector<8x128xf32>
    %246 = arith.addf %139, %245 : vector<8x128xf32>
    %247 = vector.broadcast %24 : vector<1x128xf32> to vector<8x128xf32>
    %248 = arith.addf %246, %247 : vector<8x128xf32>
    %249 = vector.extract_strided_slice %4 {offsets = [4, 0], sizes = [1, 128], strides = [1, 1]} : vector<6x128xf32> to vector<1x128xf32>
    %250 = vector.extract_strided_slice %4 {offsets = [5, 0], sizes = [1, 128], strides = [1, 1]} : vector<6x128xf32> to vector<1x128xf32>
    %cst_117 = arith.constant dense<0.000000e+00> : vector<8xf32>
    %251 = vector.multi_reduction <add>, %248, %cst_117 [1] : vector<8x128xf32> to vector<8xf32>
    %252 = vector.shape_cast %251 : vector<8xf32> to vector<8x1xf32>
    %cst_118 = arith.constant 1.280000e+02 : f32
    %253 = vector.broadcast %cst_118 : f32 to vector<8x1xf32>
    %254 = arith.divf %252, %253 : vector<8x1xf32>
    %255 = vector.broadcast %254 : vector<8x1xf32> to vector<8x128xf32>
    %256 = arith.subf %248, %255 : vector<8x128xf32>
    %257 = arith.mulf %256, %256 : vector<8x128xf32>
    %cst_119 = arith.constant dense<0.000000e+00> : vector<8xf32>
    %258 = vector.multi_reduction <add>, %257, %cst_119 [1] : vector<8x128xf32> to vector<8xf32>
    %259 = vector.shape_cast %258 : vector<8xf32> to vector<8x1xf32>
    %cst_120 = arith.constant 1.280000e+02 : f32
    %260 = vector.broadcast %cst_120 : f32 to vector<8x1xf32>
    %261 = arith.divf %259, %260 : vector<8x1xf32>
    %cst_121 = arith.constant 9.99999997E-7 : f32
    %262 = vector.broadcast %cst_121 : f32 to vector<8x1xf32>
    %263 = arith.addf %261, %262 : vector<8x1xf32>
    %264 = math.rsqrt %263 : vector<8x1xf32>
    %265 = vector.broadcast %264 : vector<8x1xf32> to vector<8x128xf32>
    %266 = arith.mulf %256, %265 : vector<8x128xf32>
    %267 = vector.broadcast %249 : vector<1x128xf32> to vector<8x128xf32>
    %268 = arith.mulf %266, %267 : vector<8x128xf32>
    %269 = vector.broadcast %250 : vector<1x128xf32> to vector<8x128xf32>
    %270 = arith.addf %268, %269 : vector<8x128xf32>
    %271 = arith.truncf %270 : vector<8x128xf32> to vector<8x128xbf16>
    %cst_122 = arith.constant dense<0.000000e+00> : vector<8x256xf32>
    %272 = tpu.matmul %271, %26, %cst_122 {dimension_numbers = #tpu.dot_dimension_numbers<[1], [0], [0], [1], [0, 0, 1, 1], [], []>} : vector<8x128xbf16>, vector<128x256xbf16>, vector<8x256xf32> -> vector<8x256xf32>
    %273 = vector.broadcast %28 : vector<1x256xf32> to vector<8x256xf32>
    %274 = arith.addf %272, %273 : vector<8x256xf32>
    %cst_123 = arith.constant 0.000000e+00 : f32
    %275 = vector.broadcast %cst_123 : f32 to vector<8x256xf32>
    %276 = arith.maximumf %274, %275 : vector<8x256xf32>
    %277 = arith.truncf %276 : vector<8x256xf32> to vector<8x256xbf16>
    %cst_124 = arith.constant dense<0.000000e+00> : vector<8x128xf32>
    %278 = tpu.matmul %277, %30, %cst_124 {dimension_numbers = #tpu.dot_dimension_numbers<[1], [0], [0], [1], [0, 0, 1, 1], [], []>} : vector<8x256xbf16>, vector<256x128xbf16>, vector<8x128xf32> -> vector<8x128xf32>
    %279 = arith.addf %248, %278 : vector<8x128xf32>
    %280 = vector.broadcast %32 : vector<1x128xf32> to vector<8x128xf32>
    %281 = arith.addf %279, %280 : vector<8x128xf32>
    %c0_125 = arith.constant 0 : index
    %c0_126 = arith.constant 0 : index
    %c0_127 = arith.constant 0 : index
    %282 = vector.load %arg23[%c0_125, %c0_126, %c0_127] : memref<2x8x128xf32, #tpu.memory_space<vmem>>, vector<1x8x128xf32>
    %283 = vector.shape_cast %282 : vector<1x8x128xf32> to vector<8x128xf32>
    %284 = vector.shape_cast %281 : vector<8x128xf32> to vector<1x8x128xf32>
    tpu.vector_store %arg23[%c0_125, %c0_126, %c0_127], %284 {strides = array<i32>} : memref<2x8x128xf32, #tpu.memory_space<vmem>>, vector<1x8x128xf32>,
    %c1_i32 = arith.constant 1 : i32
    %285 = arith.cmpi eq, %arg1, %c1_i32 : i32
    %286 = arith.extui %285 : i1 to i32
    %c0_i32_128 = arith.constant 0 : i32
    %287 = arith.cmpi ne, %286, %c0_i32_128 : i32
    scf.if %287 {
      %c0_217 = arith.constant 0 : index
      %c0_218 = arith.constant 0 : index
      %543 = vector.load %arg20[%c0_217, %c0_218] : memref<1x128xf32, #tpu.memory_space<vmem>>, vector<1x128xf32>
      %c0_219 = arith.constant 0 : index
      %c0_220 = arith.constant 0 : index
      %544 = vector.load %arg21[%c0_219, %c0_220] : memref<1x128xf32, #tpu.memory_space<vmem>>, vector<1x128xf32>
      %cst_221 = arith.constant dense<0.000000e+00> : vector<8xf32>
      %545 = vector.multi_reduction <add>, %281, %cst_221 [1] : vector<8x128xf32> to vector<8xf32>
      %546 = vector.shape_cast %545 : vector<8xf32> to vector<8x1xf32>
      %cst_222 = arith.constant 1.280000e+02 : f32
      %547 = vector.broadcast %cst_222 : f32 to vector<8x1xf32>
      %548 = arith.divf %546, %547 : vector<8x1xf32>
      %549 = vector.broadcast %548 : vector<8x1xf32> to vector<8x128xf32>
      %550 = arith.subf %281, %549 : vector<8x128xf32>
      %551 = arith.mulf %550, %550 : vector<8x128xf32>
      %cst_223 = arith.constant dense<0.000000e+00> : vector<8xf32>
      %552 = vector.multi_reduction <add>, %551, %cst_223 [1] : vector<8x128xf32> to vector<8xf32>
      %553 = vector.shape_cast %552 : vector<8xf32> to vector<8x1xf32>
      %cst_224 = arith.constant 1.280000e+02 : f32
      %554 = vector.broadcast %cst_224 : f32 to vector<8x1xf32>
      %555 = arith.divf %553, %554 : vector<8x1xf32>
      %cst_225 = arith.constant 9.99999974E-6 : f32
      %556 = vector.broadcast %cst_225 : f32 to vector<8x1xf32>
      %557 = arith.addf %555, %556 : vector<8x1xf32>
      %558 = math.rsqrt %557 : vector<8x1xf32>
      %559 = vector.broadcast %558 : vector<8x1xf32> to vector<8x128xf32>
      %560 = arith.mulf %550, %559 : vector<8x128xf32>
      %561 = vector.broadcast %543 : vector<1x128xf32> to vector<8x128xf32>
      %562 = arith.mulf %560, %561 : vector<8x128xf32>
      %563 = vector.broadcast %544 : vector<1x128xf32> to vector<8x128xf32>
      %564 = arith.addf %562, %563 : vector<8x128xf32>
      %c0_226 = arith.constant 0 : index
      %c0_227 = arith.constant 0 : index
      %c0_228 = arith.constant 0 : index
      %565 = vector.load %arg22[%c0_226, %c0_227, %c0_228] : memref<2x8x128xf32, #tpu.memory_space<vmem>>, vector<1x8x128xf32>
      %566 = vector.shape_cast %565 : vector<1x8x128xf32> to vector<8x128xf32>
      %567 = vector.shape_cast %564 : vector<8x128xf32> to vector<1x8x128xf32>
      tpu.vector_store %arg22[%c0_226, %c0_227, %c0_228], %567 {strides = array<i32>} : memref<2x8x128xf32, #tpu.memory_space<vmem>>, vector<1x8x128xf32>,
    } else {
    }
    %c1 = arith.constant 1 : index
    %c0_129 = arith.constant 0 : index
    %c0_130 = arith.constant 0 : index
    %288 = vector.load %arg23[%c1, %c0_129, %c0_130] : memref<2x8x128xf32, #tpu.memory_space<vmem>>, vector<1x8x128xf32>
    %289 = vector.shape_cast %288 : vector<1x8x128xf32> to vector<8x128xf32>
    %c1_131 = arith.constant 1 : index
    %c0_132 = arith.constant 0 : index
    %c0_133 = arith.constant 0 : index
    %290 = vector.load %arg3[%c1_131, %c0_132, %c0_133] : memref<2x8x128xbf16, #tpu.memory_space<vmem>>, vector<1x8x128xbf16>
    %291 = vector.shape_cast %290 : vector<1x8x128xbf16> to vector<8x128xbf16>
    %c1_134 = arith.constant 1 : index
    %c0_135 = arith.constant 0 : index
    %c0_136 = arith.constant 0 : index
    %292 = vector.load %arg4[%c1_134, %c0_135, %c0_136] : memref<2x8x8xf32, #tpu.memory_space<vmem>>, vector<1x8x8xf32>
    %293 = vector.shape_cast %292 : vector<1x8x8xf32> to vector<8x8xf32>
    %294 = vector.extract_strided_slice %4 {offsets = [0, 0], sizes = [1, 128], strides = [1, 1]} : vector<6x128xf32> to vector<1x128xf32>
    %295 = vector.extract_strided_slice %4 {offsets = [1, 0], sizes = [1, 128], strides = [1, 1]} : vector<6x128xf32> to vector<1x128xf32>
    %cst_137 = arith.constant dense<0.000000e+00> : vector<8xf32>
    %296 = vector.multi_reduction <add>, %289, %cst_137 [1] : vector<8x128xf32> to vector<8xf32>
    %297 = vector.shape_cast %296 : vector<8xf32> to vector<8x1xf32>
    %cst_138 = arith.constant 1.280000e+02 : f32
    %298 = vector.broadcast %cst_138 : f32 to vector<8x1xf32>
    %299 = arith.divf %297, %298 : vector<8x1xf32>
    %300 = vector.broadcast %299 : vector<8x1xf32> to vector<8x128xf32>
    %301 = arith.subf %289, %300 : vector<8x128xf32>
    %302 = arith.mulf %301, %301 : vector<8x128xf32>
    %cst_139 = arith.constant dense<0.000000e+00> : vector<8xf32>
    %303 = vector.multi_reduction <add>, %302, %cst_139 [1] : vector<8x128xf32> to vector<8xf32>
    %304 = vector.shape_cast %303 : vector<8xf32> to vector<8x1xf32>
    %cst_140 = arith.constant 1.280000e+02 : f32
    %305 = vector.broadcast %cst_140 : f32 to vector<8x1xf32>
    %306 = arith.divf %304, %305 : vector<8x1xf32>
    %cst_141 = arith.constant 9.99999997E-7 : f32
    %307 = vector.broadcast %cst_141 : f32 to vector<8x1xf32>
    %308 = arith.addf %306, %307 : vector<8x1xf32>
    %309 = math.rsqrt %308 : vector<8x1xf32>
    %310 = vector.broadcast %309 : vector<8x1xf32> to vector<8x128xf32>
    %311 = arith.mulf %301, %310 : vector<8x128xf32>
    %312 = vector.broadcast %294 : vector<1x128xf32> to vector<8x128xf32>
    %313 = arith.mulf %311, %312 : vector<8x128xf32>
    %314 = vector.broadcast %295 : vector<1x128xf32> to vector<8x128xf32>
    %315 = arith.addf %313, %314 : vector<8x128xf32>
    %316 = arith.truncf %315 : vector<8x128xf32> to vector<8x128xbf16>
    %cst_142 = arith.constant dense<0.000000e+00> : vector<8x384xf32>
    %317 = tpu.matmul %316, %6, %cst_142 {dimension_numbers = #tpu.dot_dimension_numbers<[1], [0], [0], [1], [0, 0, 1, 1], [], []>} : vector<8x128xbf16>, vector<128x384xbf16>, vector<8x384xf32> -> vector<8x384xf32>
    %318 = vector.broadcast %8 : vector<1x384xf32> to vector<8x384xf32>
    %319 = arith.addf %317, %318 : vector<8x384xf32>
    %320 = arith.truncf %319 : vector<8x384xf32> to vector<8x384xbf16>
    %321 = vector.extract_strided_slice %320 {offsets = [0, 0], sizes = [8, 32], strides = [1, 1]} : vector<8x384xbf16> to vector<8x32xbf16>
    %322 = vector.extract_strided_slice %320 {offsets = [0, 128], sizes = [8, 32], strides = [1, 1]} : vector<8x384xbf16> to vector<8x32xbf16>
    %323 = vector.extract_strided_slice %320 {offsets = [0, 256], sizes = [8, 32], strides = [1, 1]} : vector<8x384xbf16> to vector<8x32xbf16>
    %cst_143 = arith.constant dense<0.000000e+00> : vector<8x8xf32>
    %324 = tpu.matmul %321, %322, %cst_143 {dimension_numbers = #tpu.dot_dimension_numbers<[1], [1], [0], [0], [0, 0, 1, 0], [], []>} : vector<8x32xbf16>, vector<8x32xbf16>, vector<8x8xf32> -> vector<8x8xf32>
    %cst_144 = arith.constant dense<0xFF800000> : vector<8xf32>
    %325 = vector.multi_reduction <maximumf>, %324, %cst_144 [1] : vector<8x8xf32> to vector<8xf32>
    %326 = vector.shape_cast %325 : vector<8xf32> to vector<8x1xf32>
    %327 = vector.broadcast %326 : vector<8x1xf32> to vector<8x8xf32>
    %328 = arith.subf %324, %327 : vector<8x8xf32>
    %329 = math.exp %328 : vector<8x8xf32>
    %cst_145 = arith.constant dense<0.000000e+00> : vector<8xf32>
    %330 = vector.multi_reduction <add>, %329, %cst_145 [1] : vector<8x8xf32> to vector<8xf32>
    %331 = vector.shape_cast %330 : vector<8xf32> to vector<8x1xf32>
    %332 = tpu.reciprocal %331 {approx = true} : vector<8x1xf32> -> vector<8x1xf32>
    %333 = vector.broadcast %332 : vector<8x1xf32> to vector<8x8xf32>
    %334 = arith.mulf %329, %333 : vector<8x8xf32>
    %335 = arith.truncf %334 : vector<8x8xf32> to vector<8x8xbf16>
    %cst_146 = arith.constant dense<0.000000e+00> : vector<8x32xf32>
    %336 = tpu.matmul %335, %323, %cst_146 {dimension_numbers = #tpu.dot_dimension_numbers<[1], [0], [0], [1], [0, 0, 1, 1], [], []>} : vector<8x8xbf16>, vector<8x32xbf16>, vector<8x32xf32> -> vector<8x32xf32>
    %c0_147 = arith.constant 0 : index
    %c0_148 = arith.constant 0 : index
    %337 = vector.load %arg24[%c0_147, %c0_148] : memref<8x128xf32, #tpu.memory_space<vmem>>, vector<8x32xf32>
    tpu.vector_store %arg24[%c0_147, %c0_148], %336 {strides = array<i32>} : memref<8x128xf32, #tpu.memory_space<vmem>>, vector<8x32xf32>,
    %338 = vector.extract_strided_slice %320 {offsets = [0, 32], sizes = [8, 32], strides = [1, 1]} : vector<8x384xbf16> to vector<8x32xbf16>
    %339 = vector.extract_strided_slice %320 {offsets = [0, 160], sizes = [8, 32], strides = [1, 1]} : vector<8x384xbf16> to vector<8x32xbf16>
    %340 = vector.extract_strided_slice %320 {offsets = [0, 288], sizes = [8, 32], strides = [1, 1]} : vector<8x384xbf16> to vector<8x32xbf16>
    %cst_149 = arith.constant dense<0.000000e+00> : vector<8x8xf32>
    %341 = tpu.matmul %338, %339, %cst_149 {dimension_numbers = #tpu.dot_dimension_numbers<[1], [1], [0], [0], [0, 0, 1, 0], [], []>} : vector<8x32xbf16>, vector<8x32xbf16>, vector<8x8xf32> -> vector<8x8xf32>
    %cst_150 = arith.constant dense<0xFF800000> : vector<8xf32>
    %342 = vector.multi_reduction <maximumf>, %341, %cst_150 [1] : vector<8x8xf32> to vector<8xf32>
    %343 = vector.shape_cast %342 : vector<8xf32> to vector<8x1xf32>
    %344 = vector.broadcast %343 : vector<8x1xf32> to vector<8x8xf32>
    %345 = arith.subf %341, %344 : vector<8x8xf32>
    %346 = math.exp %345 : vector<8x8xf32>
    %cst_151 = arith.constant dense<0.000000e+00> : vector<8xf32>
    %347 = vector.multi_reduction <add>, %346, %cst_151 [1] : vector<8x8xf32> to vector<8xf32>
    %348 = vector.shape_cast %347 : vector<8xf32> to vector<8x1xf32>
    %349 = tpu.reciprocal %348 {approx = true} : vector<8x1xf32> -> vector<8x1xf32>
    %350 = vector.broadcast %349 : vector<8x1xf32> to vector<8x8xf32>
    %351 = arith.mulf %346, %350 : vector<8x8xf32>
    %352 = arith.truncf %351 : vector<8x8xf32> to vector<8x8xbf16>
    %cst_152 = arith.constant dense<0.000000e+00> : vector<8x32xf32>
    %353 = tpu.matmul %352, %340, %cst_152 {dimension_numbers = #tpu.dot_dimension_numbers<[1], [0], [0], [1], [0, 0, 1, 1], [], []>} : vector<8x8xbf16>, vector<8x32xbf16>, vector<8x32xf32> -> vector<8x32xf32>
    %c0_153 = arith.constant 0 : index
    %c32_154 = arith.constant 32 : index
    %354 = vector.load %arg24[%c0_153, %c32_154] : memref<8x128xf32, #tpu.memory_space<vmem>>, vector<8x32xf32>
    tpu.vector_store %arg24[%c0_153, %c32_154], %353 {strides = array<i32>} : memref<8x128xf32, #tpu.memory_space<vmem>>, vector<8x32xf32>,
    %355 = vector.extract_strided_slice %320 {offsets = [0, 64], sizes = [8, 32], strides = [1, 1]} : vector<8x384xbf16> to vector<8x32xbf16>
    %356 = vector.extract_strided_slice %320 {offsets = [0, 192], sizes = [8, 32], strides = [1, 1]} : vector<8x384xbf16> to vector<8x32xbf16>
    %357 = vector.extract_strided_slice %320 {offsets = [0, 320], sizes = [8, 32], strides = [1, 1]} : vector<8x384xbf16> to vector<8x32xbf16>
    %cst_155 = arith.constant dense<0.000000e+00> : vector<8x8xf32>
    %358 = tpu.matmul %355, %356, %cst_155 {dimension_numbers = #tpu.dot_dimension_numbers<[1], [1], [0], [0], [0, 0, 1, 0], [], []>} : vector<8x32xbf16>, vector<8x32xbf16>, vector<8x8xf32> -> vector<8x8xf32>
    %cst_156 = arith.constant dense<0xFF800000> : vector<8xf32>
    %359 = vector.multi_reduction <maximumf>, %358, %cst_156 [1] : vector<8x8xf32> to vector<8xf32>
    %360 = vector.shape_cast %359 : vector<8xf32> to vector<8x1xf32>
    %361 = vector.broadcast %360 : vector<8x1xf32> to vector<8x8xf32>
    %362 = arith.subf %358, %361 : vector<8x8xf32>
    %363 = math.exp %362 : vector<8x8xf32>
    %cst_157 = arith.constant dense<0.000000e+00> : vector<8xf32>
    %364 = vector.multi_reduction <add>, %363, %cst_157 [1] : vector<8x8xf32> to vector<8xf32>
    %365 = vector.shape_cast %364 : vector<8xf32> to vector<8x1xf32>
    %366 = tpu.reciprocal %365 {approx = true} : vector<8x1xf32> -> vector<8x1xf32>
    %367 = vector.broadcast %366 : vector<8x1xf32> to vector<8x8xf32>
    %368 = arith.mulf %363, %367 : vector<8x8xf32>
    %369 = arith.truncf %368 : vector<8x8xf32> to vector<8x8xbf16>
    %cst_158 = arith.constant dense<0.000000e+00> : vector<8x32xf32>
    %370 = tpu.matmul %369, %357, %cst_158 {dimension_numbers = #tpu.dot_dimension_numbers<[1], [0], [0], [1], [0, 0, 1, 1], [], []>} : vector<8x8xbf16>, vector<8x32xbf16>, vector<8x32xf32> -> vector<8x32xf32>
    %c0_159 = arith.constant 0 : index
    %c64_160 = arith.constant 64 : index
    %371 = vector.load %arg24[%c0_159, %c64_160] : memref<8x128xf32, #tpu.memory_space<vmem>>, vector<8x32xf32>
    tpu.vector_store %arg24[%c0_159, %c64_160], %370 {strides = array<i32>} : memref<8x128xf32, #tpu.memory_space<vmem>>, vector<8x32xf32>,
    %372 = vector.extract_strided_slice %320 {offsets = [0, 96], sizes = [8, 32], strides = [1, 1]} : vector<8x384xbf16> to vector<8x32xbf16>
    %373 = vector.extract_strided_slice %320 {offsets = [0, 224], sizes = [8, 32], strides = [1, 1]} : vector<8x384xbf16> to vector<8x32xbf16>
    %374 = vector.extract_strided_slice %320 {offsets = [0, 352], sizes = [8, 32], strides = [1, 1]} : vector<8x384xbf16> to vector<8x32xbf16>
    %cst_161 = arith.constant dense<0.000000e+00> : vector<8x8xf32>
    %375 = tpu.matmul %372, %373, %cst_161 {dimension_numbers = #tpu.dot_dimension_numbers<[1], [1], [0], [0], [0, 0, 1, 0], [], []>} : vector<8x32xbf16>, vector<8x32xbf16>, vector<8x8xf32> -> vector<8x8xf32>
    %cst_162 = arith.constant dense<0xFF800000> : vector<8xf32>
    %376 = vector.multi_reduction <maximumf>, %375, %cst_162 [1] : vector<8x8xf32> to vector<8xf32>
    %377 = vector.shape_cast %376 : vector<8xf32> to vector<8x1xf32>
    %378 = vector.broadcast %377 : vector<8x1xf32> to vector<8x8xf32>
    %379 = arith.subf %375, %378 : vector<8x8xf32>
    %380 = math.exp %379 : vector<8x8xf32>
    %cst_163 = arith.constant dense<0.000000e+00> : vector<8xf32>
    %381 = vector.multi_reduction <add>, %380, %cst_163 [1] : vector<8x8xf32> to vector<8xf32>
    %382 = vector.shape_cast %381 : vector<8xf32> to vector<8x1xf32>
    %383 = tpu.reciprocal %382 {approx = true} : vector<8x1xf32> -> vector<8x1xf32>
    %384 = vector.broadcast %383 : vector<8x1xf32> to vector<8x8xf32>
    %385 = arith.mulf %380, %384 : vector<8x8xf32>
    %386 = arith.truncf %385 : vector<8x8xf32> to vector<8x8xbf16>
    %cst_164 = arith.constant dense<0.000000e+00> : vector<8x32xf32>
    %387 = tpu.matmul %386, %374, %cst_164 {dimension_numbers = #tpu.dot_dimension_numbers<[1], [0], [0], [1], [0, 0, 1, 1], [], []>} : vector<8x8xbf16>, vector<8x32xbf16>, vector<8x32xf32> -> vector<8x32xf32>
    %c0_165 = arith.constant 0 : index
    %c96_166 = arith.constant 96 : index
    %388 = vector.load %arg24[%c0_165, %c96_166] : memref<8x128xf32, #tpu.memory_space<vmem>>, vector<8x32xf32>
    tpu.vector_store %arg24[%c0_165, %c96_166], %387 {strides = array<i32>} : memref<8x128xf32, #tpu.memory_space<vmem>>, vector<8x32xf32>,
    %c0_167 = arith.constant 0 : index
    %c0_168 = arith.constant 0 : index
    %389 = vector.load %arg24[%c0_167, %c0_168] : memref<8x128xf32, #tpu.memory_space<vmem>>, vector<8x128xf32>
    %390 = arith.truncf %389 : vector<8x128xf32> to vector<8x128xbf16>
    %cst_169 = arith.constant dense<0.000000e+00> : vector<8x128xf32>
    %391 = tpu.matmul %390, %10, %cst_169 {dimension_numbers = #tpu.dot_dimension_numbers<[1], [0], [0], [1], [0, 0, 1, 1], [], []>} : vector<8x128xbf16>, vector<128x128xbf16>, vector<8x128xf32> -> vector<8x128xf32>
    %392 = arith.addf %289, %391 : vector<8x128xf32>
    %393 = vector.broadcast %12 : vector<1x128xf32> to vector<8x128xf32>
    %394 = arith.addf %392, %393 : vector<8x128xf32>
    %395 = vector.extract_strided_slice %4 {offsets = [2, 0], sizes = [1, 128], strides = [1, 1]} : vector<6x128xf32> to vector<1x128xf32>
    %396 = vector.extract_strided_slice %4 {offsets = [3, 0], sizes = [1, 128], strides = [1, 1]} : vector<6x128xf32> to vector<1x128xf32>
    %cst_170 = arith.constant dense<0.000000e+00> : vector<8xf32>
    %397 = vector.multi_reduction <add>, %394, %cst_170 [1] : vector<8x128xf32> to vector<8xf32>
    %398 = vector.shape_cast %397 : vector<8xf32> to vector<8x1xf32>
    %cst_171 = arith.constant 1.280000e+02 : f32
    %399 = vector.broadcast %cst_171 : f32 to vector<8x1xf32>
    %400 = arith.divf %398, %399 : vector<8x1xf32>
    %401 = vector.broadcast %400 : vector<8x1xf32> to vector<8x128xf32>
    %402 = arith.subf %394, %401 : vector<8x128xf32>
    %403 = arith.mulf %402, %402 : vector<8x128xf32>
    %cst_172 = arith.constant dense<0.000000e+00> : vector<8xf32>
    %404 = vector.multi_reduction <add>, %403, %cst_172 [1] : vector<8x128xf32> to vector<8xf32>
    %405 = vector.shape_cast %404 : vector<8xf32> to vector<8x1xf32>
    %cst_173 = arith.constant 1.280000e+02 : f32
    %406 = vector.broadcast %cst_173 : f32 to vector<8x1xf32>
    %407 = arith.divf %405, %406 : vector<8x1xf32>
    %cst_174 = arith.constant 9.99999997E-7 : f32
    %408 = vector.broadcast %cst_174 : f32 to vector<8x1xf32>
    %409 = arith.addf %407, %408 : vector<8x1xf32>
    %410 = math.rsqrt %409 : vector<8x1xf32>
    %411 = vector.broadcast %410 : vector<8x1xf32> to vector<8x128xf32>
    %412 = arith.mulf %402, %411 : vector<8x128xf32>
    %413 = vector.broadcast %395 : vector<1x128xf32> to vector<8x128xf32>
    %414 = arith.mulf %412, %413 : vector<8x128xf32>
    %415 = vector.broadcast %396 : vector<1x128xf32> to vector<8x128xf32>
    %416 = arith.addf %414, %415 : vector<8x128xf32>
    %417 = arith.truncf %416 : vector<8x128xf32> to vector<8x128xbf16>
    %cst_175 = arith.constant dense<0.000000e+00> : vector<8x128xf32>
    %418 = tpu.matmul %417, %14, %cst_175 {dimension_numbers = #tpu.dot_dimension_numbers<[1], [0], [0], [1], [0, 0, 1, 1], [], []>} : vector<8x128xbf16>, vector<128x128xbf16>, vector<8x128xf32> -> vector<8x128xf32>
    %419 = vector.broadcast %16 : vector<1x128xf32> to vector<8x128xf32>
    %420 = arith.addf %418, %419 : vector<8x128xf32>
    %421 = arith.truncf %420 : vector<8x128xf32> to vector<8x128xbf16>
    %cst_176 = arith.constant dense<0.000000e+00> : vector<8x256xf32>
    %422 = tpu.matmul %291, %18, %cst_176 {dimension_numbers = #tpu.dot_dimension_numbers<[1], [0], [0], [1], [0, 0, 1, 1], [], []>} : vector<8x128xbf16>, vector<128x256xbf16>, vector<8x256xf32> -> vector<8x256xf32>
    %423 = vector.broadcast %20 : vector<1x256xf32> to vector<8x256xf32>
    %424 = arith.addf %422, %423 : vector<8x256xf32>
    %425 = arith.truncf %424 : vector<8x256xf32> to vector<8x256xbf16>
    %426 = vector.extract_strided_slice %421 {offsets = [0, 0], sizes = [8, 32], strides = [1, 1]} : vector<8x128xbf16> to vector<8x32xbf16>
    %427 = vector.extract_strided_slice %425 {offsets = [0, 0], sizes = [8, 32], strides = [1, 1]} : vector<8x256xbf16> to vector<8x32xbf16>
    %428 = vector.extract_strided_slice %425 {offsets = [0, 128], sizes = [8, 32], strides = [1, 1]} : vector<8x256xbf16> to vector<8x32xbf16>
    %cst_177 = arith.constant dense<0.000000e+00> : vector<8x8xf32>
    %429 = tpu.matmul %426, %427, %cst_177 {dimension_numbers = #tpu.dot_dimension_numbers<[1], [1], [0], [0], [0, 0, 1, 0], [], []>} : vector<8x32xbf16>, vector<8x32xbf16>, vector<8x8xf32> -> vector<8x8xf32>
    %430 = arith.addf %429, %293 : vector<8x8xf32>
    %cst_178 = arith.constant dense<0xFF800000> : vector<8xf32>
    %431 = vector.multi_reduction <maximumf>, %430, %cst_178 [1] : vector<8x8xf32> to vector<8xf32>
    %432 = vector.shape_cast %431 : vector<8xf32> to vector<8x1xf32>
    %433 = vector.broadcast %432 : vector<8x1xf32> to vector<8x8xf32>
    %434 = arith.subf %430, %433 : vector<8x8xf32>
    %435 = math.exp %434 : vector<8x8xf32>
    %cst_179 = arith.constant dense<0.000000e+00> : vector<8xf32>
    %436 = vector.multi_reduction <add>, %435, %cst_179 [1] : vector<8x8xf32> to vector<8xf32>
    %437 = vector.shape_cast %436 : vector<8xf32> to vector<8x1xf32>
    %438 = tpu.reciprocal %437 {approx = true} : vector<8x1xf32> -> vector<8x1xf32>
    %439 = vector.broadcast %438 : vector<8x1xf32> to vector<8x8xf32>
    %440 = arith.mulf %435, %439 : vector<8x8xf32>
    %441 = arith.truncf %440 : vector<8x8xf32> to vector<8x8xbf16>
    %cst_180 = arith.constant dense<0.000000e+00> : vector<8x32xf32>
    %442 = tpu.matmul %441, %428, %cst_180 {dimension_numbers = #tpu.dot_dimension_numbers<[1], [0], [0], [1], [0, 0, 1, 1], [], []>} : vector<8x8xbf16>, vector<8x32xbf16>, vector<8x32xf32> -> vector<8x32xf32>
    %c0_181 = arith.constant 0 : index
    %c0_182 = arith.constant 0 : index
    %443 = vector.load %arg24[%c0_181, %c0_182] : memref<8x128xf32, #tpu.memory_space<vmem>>, vector<8x32xf32>
    tpu.vector_store %arg24[%c0_181, %c0_182], %442 {strides = array<i32>} : memref<8x128xf32, #tpu.memory_space<vmem>>, vector<8x32xf32>,
    %444 = vector.extract_strided_slice %421 {offsets = [0, 32], sizes = [8, 32], strides = [1, 1]} : vector<8x128xbf16> to vector<8x32xbf16>
    %445 = vector.extract_strided_slice %425 {offsets = [0, 32], sizes = [8, 32], strides = [1, 1]} : vector<8x256xbf16> to vector<8x32xbf16>
    %446 = vector.extract_strided_slice %425 {offsets = [0, 160], sizes = [8, 32], strides = [1, 1]} : vector<8x256xbf16> to vector<8x32xbf16>
    %cst_183 = arith.constant dense<0.000000e+00> : vector<8x8xf32>
    %447 = tpu.matmul %444, %445, %cst_183 {dimension_numbers = #tpu.dot_dimension_numbers<[1], [1], [0], [0], [0, 0, 1, 0], [], []>} : vector<8x32xbf16>, vector<8x32xbf16>, vector<8x8xf32> -> vector<8x8xf32>
    %448 = arith.addf %447, %293 : vector<8x8xf32>
    %cst_184 = arith.constant dense<0xFF800000> : vector<8xf32>
    %449 = vector.multi_reduction <maximumf>, %448, %cst_184 [1] : vector<8x8xf32> to vector<8xf32>
    %450 = vector.shape_cast %449 : vector<8xf32> to vector<8x1xf32>
    %451 = vector.broadcast %450 : vector<8x1xf32> to vector<8x8xf32>
    %452 = arith.subf %448, %451 : vector<8x8xf32>
    %453 = math.exp %452 : vector<8x8xf32>
    %cst_185 = arith.constant dense<0.000000e+00> : vector<8xf32>
    %454 = vector.multi_reduction <add>, %453, %cst_185 [1] : vector<8x8xf32> to vector<8xf32>
    %455 = vector.shape_cast %454 : vector<8xf32> to vector<8x1xf32>
    %456 = tpu.reciprocal %455 {approx = true} : vector<8x1xf32> -> vector<8x1xf32>
    %457 = vector.broadcast %456 : vector<8x1xf32> to vector<8x8xf32>
    %458 = arith.mulf %453, %457 : vector<8x8xf32>
    %459 = arith.truncf %458 : vector<8x8xf32> to vector<8x8xbf16>
    %cst_186 = arith.constant dense<0.000000e+00> : vector<8x32xf32>
    %460 = tpu.matmul %459, %446, %cst_186 {dimension_numbers = #tpu.dot_dimension_numbers<[1], [0], [0], [1], [0, 0, 1, 1], [], []>} : vector<8x8xbf16>, vector<8x32xbf16>, vector<8x32xf32> -> vector<8x32xf32>
    %c0_187 = arith.constant 0 : index
    %c32_188 = arith.constant 32 : index
    %461 = vector.load %arg24[%c0_187, %c32_188] : memref<8x128xf32, #tpu.memory_space<vmem>>, vector<8x32xf32>
    tpu.vector_store %arg24[%c0_187, %c32_188], %460 {strides = array<i32>} : memref<8x128xf32, #tpu.memory_space<vmem>>, vector<8x32xf32>,
    %462 = vector.extract_strided_slice %421 {offsets = [0, 64], sizes = [8, 32], strides = [1, 1]} : vector<8x128xbf16> to vector<8x32xbf16>
    %463 = vector.extract_strided_slice %425 {offsets = [0, 64], sizes = [8, 32], strides = [1, 1]} : vector<8x256xbf16> to vector<8x32xbf16>
    %464 = vector.extract_strided_slice %425 {offsets = [0, 192], sizes = [8, 32], strides = [1, 1]} : vector<8x256xbf16> to vector<8x32xbf16>
    %cst_189 = arith.constant dense<0.000000e+00> : vector<8x8xf32>
    %465 = tpu.matmul %462, %463, %cst_189 {dimension_numbers = #tpu.dot_dimension_numbers<[1], [1], [0], [0], [0, 0, 1, 0], [], []>} : vector<8x32xbf16>, vector<8x32xbf16>, vector<8x8xf32> -> vector<8x8xf32>
    %466 = arith.addf %465, %293 : vector<8x8xf32>
    %cst_190 = arith.constant dense<0xFF800000> : vector<8xf32>
    %467 = vector.multi_reduction <maximumf>, %466, %cst_190 [1] : vector<8x8xf32> to vector<8xf32>
    %468 = vector.shape_cast %467 : vector<8xf32> to vector<8x1xf32>
    %469 = vector.broadcast %468 : vector<8x1xf32> to vector<8x8xf32>
    %470 = arith.subf %466, %469 : vector<8x8xf32>
    %471 = math.exp %470 : vector<8x8xf32>
    %cst_191 = arith.constant dense<0.000000e+00> : vector<8xf32>
    %472 = vector.multi_reduction <add>, %471, %cst_191 [1] : vector<8x8xf32> to vector<8xf32>
    %473 = vector.shape_cast %472 : vector<8xf32> to vector<8x1xf32>
    %474 = tpu.reciprocal %473 {approx = true} : vector<8x1xf32> -> vector<8x1xf32>
    %475 = vector.broadcast %474 : vector<8x1xf32> to vector<8x8xf32>
    %476 = arith.mulf %471, %475 : vector<8x8xf32>
    %477 = arith.truncf %476 : vector<8x8xf32> to vector<8x8xbf16>
    %cst_192 = arith.constant dense<0.000000e+00> : vector<8x32xf32>
    %478 = tpu.matmul %477, %464, %cst_192 {dimension_numbers = #tpu.dot_dimension_numbers<[1], [0], [0], [1], [0, 0, 1, 1], [], []>} : vector<8x8xbf16>, vector<8x32xbf16>, vector<8x32xf32> -> vector<8x32xf32>
    %c0_193 = arith.constant 0 : index
    %c64_194 = arith.constant 64 : index
    %479 = vector.load %arg24[%c0_193, %c64_194] : memref<8x128xf32, #tpu.memory_space<vmem>>, vector<8x32xf32>
    tpu.vector_store %arg24[%c0_193, %c64_194], %478 {strides = array<i32>} : memref<8x128xf32, #tpu.memory_space<vmem>>, vector<8x32xf32>,
    %480 = vector.extract_strided_slice %421 {offsets = [0, 96], sizes = [8, 32], strides = [1, 1]} : vector<8x128xbf16> to vector<8x32xbf16>
    %481 = vector.extract_strided_slice %425 {offsets = [0, 96], sizes = [8, 32], strides = [1, 1]} : vector<8x256xbf16> to vector<8x32xbf16>
    %482 = vector.extract_strided_slice %425 {offsets = [0, 224], sizes = [8, 32], strides = [1, 1]} : vector<8x256xbf16> to vector<8x32xbf16>
    %cst_195 = arith.constant dense<0.000000e+00> : vector<8x8xf32>
    %483 = tpu.matmul %480, %481, %cst_195 {dimension_numbers = #tpu.dot_dimension_numbers<[1], [1], [0], [0], [0, 0, 1, 0], [], []>} : vector<8x32xbf16>, vector<8x32xbf16>, vector<8x8xf32> -> vector<8x8xf32>
    %484 = arith.addf %483, %293 : vector<8x8xf32>
    %cst_196 = arith.constant dense<0xFF800000> : vector<8xf32>
    %485 = vector.multi_reduction <maximumf>, %484, %cst_196 [1] : vector<8x8xf32> to vector<8xf32>
    %486 = vector.shape_cast %485 : vector<8xf32> to vector<8x1xf32>
    %487 = vector.broadcast %486 : vector<8x1xf32> to vector<8x8xf32>
    %488 = arith.subf %484, %487 : vector<8x8xf32>
    %489 = math.exp %488 : vector<8x8xf32>
    %cst_197 = arith.constant dense<0.000000e+00> : vector<8xf32>
    %490 = vector.multi_reduction <add>, %489, %cst_197 [1] : vector<8x8xf32> to vector<8xf32>
    %491 = vector.shape_cast %490 : vector<8xf32> to vector<8x1xf32>
    %492 = tpu.reciprocal %491 {approx = true} : vector<8x1xf32> -> vector<8x1xf32>
    %493 = vector.broadcast %492 : vector<8x1xf32> to vector<8x8xf32>
    %494 = arith.mulf %489, %493 : vector<8x8xf32>
    %495 = arith.truncf %494 : vector<8x8xf32> to vector<8x8xbf16>
    %cst_198 = arith.constant dense<0.000000e+00> : vector<8x32xf32>
    %496 = tpu.matmul %495, %482, %cst_198 {dimension_numbers = #tpu.dot_dimension_numbers<[1], [0], [0], [1], [0, 0, 1, 1], [], []>} : vector<8x8xbf16>, vector<8x32xbf16>, vector<8x32xf32> -> vector<8x32xf32>
    %c0_199 = arith.constant 0 : index
    %c96_200 = arith.constant 96 : index
    %497 = vector.load %arg24[%c0_199, %c96_200] : memref<8x128xf32, #tpu.memory_space<vmem>>, vector<8x32xf32>
    tpu.vector_store %arg24[%c0_199, %c96_200], %496 {strides = array<i32>} : memref<8x128xf32, #tpu.memory_space<vmem>>, vector<8x32xf32>,
    %c0_201 = arith.constant 0 : index
    %c0_202 = arith.constant 0 : index
    %498 = vector.load %arg24[%c0_201, %c0_202] : memref<8x128xf32, #tpu.memory_space<vmem>>, vector<8x128xf32>
    %499 = arith.truncf %498 : vector<8x128xf32> to vector<8x128xbf16>
    %cst_203 = arith.constant dense<0.000000e+00> : vector<8x128xf32>
    %500 = tpu.matmul %499, %22, %cst_203 {dimension_numbers = #tpu.dot_dimension_numbers<[1], [0], [0], [1], [0, 0, 1, 1], [], []>} : vector<8x128xbf16>, vector<128x128xbf16>, vector<8x128xf32> -> vector<8x128xf32>
    %501 = arith.addf %394, %500 : vector<8x128xf32>
    %502 = vector.broadcast %24 : vector<1x128xf32> to vector<8x128xf32>
    %503 = arith.addf %501, %502 : vector<8x128xf32>
    %504 = vector.extract_strided_slice %4 {offsets = [4, 0], sizes = [1, 128], strides = [1, 1]} : vector<6x128xf32> to vector<1x128xf32>
    %505 = vector.extract_strided_slice %4 {offsets = [5, 0], sizes = [1, 128], strides = [1, 1]} : vector<6x128xf32> to vector<1x128xf32>
    %cst_204 = arith.constant dense<0.000000e+00> : vector<8xf32>
    %506 = vector.multi_reduction <add>, %503, %cst_204 [1] : vector<8x128xf32> to vector<8xf32>
    %507 = vector.shape_cast %506 : vector<8xf32> to vector<8x1xf32>
    %cst_205 = arith.constant 1.280000e+02 : f32
    %508 = vector.broadcast %cst_205 : f32 to vector<8x1xf32>
    %509 = arith.divf %507, %508 : vector<8x1xf32>
    %510 = vector.broadcast %509 : vector<8x1xf32> to vector<8x128xf32>
    %511 = arith.subf %503, %510 : vector<8x128xf32>
    %512 = arith.mulf %511, %511 : vector<8x128xf32>
    %cst_206 = arith.constant dense<0.000000e+00> : vector<8xf32>
    %513 = vector.multi_reduction <add>, %512, %cst_206 [1] : vector<8x128xf32> to vector<8xf32>
    %514 = vector.shape_cast %513 : vector<8xf32> to vector<8x1xf32>
    %cst_207 = arith.constant 1.280000e+02 : f32
    %515 = vector.broadcast %cst_207 : f32 to vector<8x1xf32>
    %516 = arith.divf %514, %515 : vector<8x1xf32>
    %cst_208 = arith.constant 9.99999997E-7 : f32
    %517 = vector.broadcast %cst_208 : f32 to vector<8x1xf32>
    %518 = arith.addf %516, %517 : vector<8x1xf32>
    %519 = math.rsqrt %518 : vector<8x1xf32>
    %520 = vector.broadcast %519 : vector<8x1xf32> to vector<8x128xf32>
    %521 = arith.mulf %511, %520 : vector<8x128xf32>
    %522 = vector.broadcast %504 : vector<1x128xf32> to vector<8x128xf32>
    %523 = arith.mulf %521, %522 : vector<8x128xf32>
    %524 = vector.broadcast %505 : vector<1x128xf32> to vector<8x128xf32>
    %525 = arith.addf %523, %524 : vector<8x128xf32>
    %526 = arith.truncf %525 : vector<8x128xf32> to vector<8x128xbf16>
    %cst_209 = arith.constant dense<0.000000e+00> : vector<8x256xf32>
    %527 = tpu.matmul %526, %26, %cst_209 {dimension_numbers = #tpu.dot_dimension_numbers<[1], [0], [0], [1], [0, 0, 1, 1], [], []>} : vector<8x128xbf16>, vector<128x256xbf16>, vector<8x256xf32> -> vector<8x256xf32>
    %528 = vector.broadcast %28 : vector<1x256xf32> to vector<8x256xf32>
    %529 = arith.addf %527, %528 : vector<8x256xf32>
    %cst_210 = arith.constant 0.000000e+00 : f32
    %530 = vector.broadcast %cst_210 : f32 to vector<8x256xf32>
    %531 = arith.maximumf %529, %530 : vector<8x256xf32>
    %532 = arith.truncf %531 : vector<8x256xf32> to vector<8x256xbf16>
    %cst_211 = arith.constant dense<0.000000e+00> : vector<8x128xf32>
    %533 = tpu.matmul %532, %30, %cst_211 {dimension_numbers = #tpu.dot_dimension_numbers<[1], [0], [0], [1], [0, 0, 1, 1], [], []>} : vector<8x256xbf16>, vector<256x128xbf16>, vector<8x128xf32> -> vector<8x128xf32>
    %534 = arith.addf %503, %533 : vector<8x128xf32>
    %535 = vector.broadcast %32 : vector<1x128xf32> to vector<8x128xf32>
    %536 = arith.addf %534, %535 : vector<8x128xf32>
    %c1_212 = arith.constant 1 : index
    %c0_213 = arith.constant 0 : index
    %c0_214 = arith.constant 0 : index
    %537 = vector.load %arg23[%c1_212, %c0_213, %c0_214] : memref<2x8x128xf32, #tpu.memory_space<vmem>>, vector<1x8x128xf32>
    %538 = vector.shape_cast %537 : vector<1x8x128xf32> to vector<8x128xf32>
    %539 = vector.shape_cast %536 : vector<8x128xf32> to vector<1x8x128xf32>
    tpu.vector_store %arg23[%c1_212, %c0_213, %c0_214], %539 {strides = array<i32>} : memref<2x8x128xf32, #tpu.memory_space<vmem>>, vector<1x8x128xf32>,
    %c1_i32_215 = arith.constant 1 : i32
    %540 = arith.cmpi eq, %arg1, %c1_i32_215 : i32
    %541 = arith.extui %540 : i1 to i32
    %c0_i32_216 = arith.constant 0 : i32
    %542 = arith.cmpi ne, %541, %c0_i32_216 : i32
    scf.if %542 {
      %c0_217 = arith.constant 0 : index
      %c0_218 = arith.constant 0 : index
      %543 = vector.load %arg20[%c0_217, %c0_218] : memref<1x128xf32, #tpu.memory_space<vmem>>, vector<1x128xf32>
      %c0_219 = arith.constant 0 : index
      %c0_220 = arith.constant 0 : index
      %544 = vector.load %arg21[%c0_219, %c0_220] : memref<1x128xf32, #tpu.memory_space<vmem>>, vector<1x128xf32>
      %cst_221 = arith.constant dense<0.000000e+00> : vector<8xf32>
      %545 = vector.multi_reduction <add>, %536, %cst_221 [1] : vector<8x128xf32> to vector<8xf32>
      %546 = vector.shape_cast %545 : vector<8xf32> to vector<8x1xf32>
      %cst_222 = arith.constant 1.280000e+02 : f32
      %547 = vector.broadcast %cst_222 : f32 to vector<8x1xf32>
      %548 = arith.divf %546, %547 : vector<8x1xf32>
      %549 = vector.broadcast %548 : vector<8x1xf32> to vector<8x128xf32>
      %550 = arith.subf %536, %549 : vector<8x128xf32>
      %551 = arith.mulf %550, %550 : vector<8x128xf32>
      %cst_223 = arith.constant dense<0.000000e+00> : vector<8xf32>
      %552 = vector.multi_reduction <add>, %551, %cst_223 [1] : vector<8x128xf32> to vector<8xf32>
      %553 = vector.shape_cast %552 : vector<8xf32> to vector<8x1xf32>
      %cst_224 = arith.constant 1.280000e+02 : f32
      %554 = vector.broadcast %cst_224 : f32 to vector<8x1xf32>
      %555 = arith.divf %553, %554 : vector<8x1xf32>
      %cst_225 = arith.constant 9.99999974E-6 : f32
      %556 = vector.broadcast %cst_225 : f32 to vector<8x1xf32>
      %557 = arith.addf %555, %556 : vector<8x1xf32>
      %558 = math.rsqrt %557 : vector<8x1xf32>
      %559 = vector.broadcast %558 : vector<8x1xf32> to vector<8x128xf32>
      %560 = arith.mulf %550, %559 : vector<8x128xf32>
      %561 = vector.broadcast %543 : vector<1x128xf32> to vector<8x128xf32>
      %562 = arith.mulf %560, %561 : vector<8x128xf32>
      %563 = vector.broadcast %544 : vector<1x128xf32> to vector<8x128xf32>
      %564 = arith.addf %562, %563 : vector<8x128xf32>
      %c1_226 = arith.constant 1 : index
      %c0_227 = arith.constant 0 : index
      %c0_228 = arith.constant 0 : index
      %565 = vector.load %arg22[%c1_226, %c0_227, %c0_228] : memref<2x8x128xf32, #tpu.memory_space<vmem>>, vector<1x8x128xf32>
      %566 = vector.shape_cast %565 : vector<1x8x128xf32> to vector<8x128xf32>
      %567 = vector.shape_cast %564 : vector<8x128xf32> to vector<1x8x128xf32>
      tpu.vector_store %arg22[%c1_226, %c0_227, %c0_228], %567 {strides = array<i32>} : memref<2x8x128xf32, #tpu.memory_space<vmem>>, vector<1x8x128xf32>,
    } else {
    }
    return
  }
  func.func @transform_0(%arg0: i32, %arg1: i32) -> (i32, i32, i32) {
    %c0_i32 = arith.constant 0 : i32
    %c0_i32_0 = arith.constant 0 : i32
    %c0_i32_1 = arith.constant 0 : i32
    return %arg0, %c0_i32, %c0_i32_0 : i32, i32, i32
  }
  func.func @transform_1(%arg0: i32, %arg1: i32) -> (i32, i32, i32) {
    %c0_i32 = arith.constant 0 : i32
    %c0_i32_0 = arith.constant 0 : i32
    %c0_i32_1 = arith.constant 0 : i32
    return %arg0, %c0_i32, %c0_i32_0 : i32, i32, i32
  }
  func.func @transform_2(%arg0: i32, %arg1: i32) -> (i32, i32, i32) {
    %c0_i32 = arith.constant 0 : i32
    %c0_i32_0 = arith.constant 0 : i32
    %c0_i32_1 = arith.constant 0 : i32
    return %arg0, %c0_i32, %c0_i32_0 : i32, i32, i32
  }
  func.func @transform_3(%arg0: i32, %arg1: i32) -> (i32, i32, i32) {
    %c0_i32 = arith.constant 0 : i32
    %c0_i32_0 = arith.constant 0 : i32
    %c0_i32_1 = arith.constant 0 : i32
    return %arg1, %c0_i32, %c0_i32_0 : i32, i32, i32
  }
  func.func @transform_4(%arg0: i32, %arg1: i32) -> (i32, i32, i32) {
    %c0_i32 = arith.constant 0 : i32
    %c0_i32_0 = arith.constant 0 : i32
    %c0_i32_1 = arith.constant 0 : i32
    return %arg1, %c0_i32, %c0_i32_0 : i32, i32, i32
  }
  func.func @transform_5(%arg0: i32, %arg1: i32) -> (i32, i32, i32) {
    %c0_i32 = arith.constant 0 : i32
    %c0_i32_0 = arith.constant 0 : i32
    %c0_i32_1 = arith.constant 0 : i32
    return %arg1, %c0_i32, %c0_i32_0 : i32, i32, i32
  }
  func.func @transform_6(%arg0: i32, %arg1: i32) -> (i32, i32, i32) {
    %c0_i32 = arith.constant 0 : i32
    %c0_i32_0 = arith.constant 0 : i32
    %c0_i32_1 = arith.constant 0 : i32
    return %arg1, %c0_i32, %c0_i32_0 : i32, i32, i32
  }
  func.func @transform_7(%arg0: i32, %arg1: i32) -> (i32, i32, i32) {
    %c0_i32 = arith.constant 0 : i32
    %c0_i32_0 = arith.constant 0 : i32
    %c0_i32_1 = arith.constant 0 : i32
    return %arg1, %c0_i32, %c0_i32_0 : i32, i32, i32
  }
  func.func @transform_8(%arg0: i32, %arg1: i32) -> (i32, i32, i32) {
    %c0_i32 = arith.constant 0 : i32
    %c0_i32_0 = arith.constant 0 : i32
    %c0_i32_1 = arith.constant 0 : i32
    return %arg1, %c0_i32, %c0_i32_0 : i32, i32, i32
  }
  func.func @transform_9(%arg0: i32, %arg1: i32) -> (i32, i32, i32) {
    %c0_i32 = arith.constant 0 : i32
    %c0_i32_0 = arith.constant 0 : i32
    %c0_i32_1 = arith.constant 0 : i32
    return %arg1, %c0_i32, %c0_i32_0 : i32, i32, i32
  }
  func.func @transform_10(%arg0: i32, %arg1: i32) -> (i32, i32, i32) {
    %c0_i32 = arith.constant 0 : i32
    %c0_i32_0 = arith.constant 0 : i32
    %c0_i32_1 = arith.constant 0 : i32
    return %arg1, %c0_i32, %c0_i32_0 : i32, i32, i32
  }
  func.func @transform_11(%arg0: i32, %arg1: i32) -> (i32, i32, i32) {
    %c0_i32 = arith.constant 0 : i32
    %c0_i32_0 = arith.constant 0 : i32
    %c0_i32_1 = arith.constant 0 : i32
    return %arg1, %c0_i32, %c0_i32_0 : i32, i32, i32
  }
  func.func @transform_12(%arg0: i32, %arg1: i32) -> (i32, i32, i32) {
    %c0_i32 = arith.constant 0 : i32
    %c0_i32_0 = arith.constant 0 : i32
    %c0_i32_1 = arith.constant 0 : i32
    return %arg1, %c0_i32, %c0_i32_0 : i32, i32, i32
  }
  func.func @transform_13(%arg0: i32, %arg1: i32) -> (i32, i32, i32) {
    %c0_i32 = arith.constant 0 : i32
    %c0_i32_0 = arith.constant 0 : i32
    %c0_i32_1 = arith.constant 0 : i32
    return %arg1, %c0_i32, %c0_i32_0 : i32, i32, i32
  }
  func.func @transform_14(%arg0: i32, %arg1: i32) -> (i32, i32, i32) {
    %c0_i32 = arith.constant 0 : i32
    %c0_i32_0 = arith.constant 0 : i32
    %c0_i32_1 = arith.constant 0 : i32
    return %arg1, %c0_i32, %c0_i32_0 : i32, i32, i32
  }
  func.func @transform_15(%arg0: i32, %arg1: i32) -> (i32, i32, i32) {
    %c0_i32 = arith.constant 0 : i32
    %c0_i32_0 = arith.constant 0 : i32
    %c0_i32_1 = arith.constant 0 : i32
    return %arg1, %c0_i32, %c0_i32_0 : i32, i32, i32
  }
  func.func @transform_16(%arg0: i32, %arg1: i32) -> (i32, i32, i32) {
    %c0_i32 = arith.constant 0 : i32
    %c0_i32_0 = arith.constant 0 : i32
    %c0_i32_1 = arith.constant 0 : i32
    return %arg1, %c0_i32, %c0_i32_0 : i32, i32, i32
  }
  func.func @transform_17(%arg0: i32, %arg1: i32) -> (i32, i32, i32) {
    %c0_i32 = arith.constant 0 : i32
    %c0_i32_0 = arith.constant 0 : i32
    %c0_i32_1 = arith.constant 0 : i32
    return %arg1, %c0_i32, %c0_i32_0 : i32, i32, i32
  }
  func.func @transform_18(%arg0: i32, %arg1: i32) -> (i32, i32) {
    %c0_i32 = arith.constant 0 : i32
    %c0_i32_0 = arith.constant 0 : i32
    %c0_i32_1 = arith.constant 0 : i32
    return %c0_i32, %c0_i32_0 : i32, i32
  }
  func.func @transform_19(%arg0: i32, %arg1: i32) -> (i32, i32) {
    %c0_i32 = arith.constant 0 : i32
    %c0_i32_0 = arith.constant 0 : i32
    %c0_i32_1 = arith.constant 0 : i32
    return %c0_i32, %c0_i32_0 : i32, i32
  }
  func.func @transform_20(%arg0: i32, %arg1: i32) -> (i32, i32, i32) {
    %c0_i32 = arith.constant 0 : i32
    %c0_i32_0 = arith.constant 0 : i32
    %c0_i32_1 = arith.constant 0 : i32
    return %arg0, %c0_i32, %c0_i32_0 : i32, i32, i32
  }
}

</mosaic_0001>

<llo_original>
// kernel: decoder_forward.1
$region0: #{decoder_forward.1}
  #allocation0 [shape = 'u32[]', space=smem, size = 0x4, offset = 0x4, fixed_abs, tag = 'smem constant byte address 0x4 - core index']
  #allocation1 [shape = 'u32[72,128]{1,0:T(1,128)}', space=vmem, size = 0x9000, scoped, tag = 'internal scratch']
  #allocation2 [shape = 'f32[2,8,128]{2,1,0:T(8,128)}', space=vmem, size = 0x2000, scoped, tag = 'scratch operand']
  #allocation3 [shape = 'f32[8,128]{1,0:T(8,128)}', space=vmem, size = 0x1000, scoped, tag = 'scratch operand']
  %s0 = inlined_call_operand.vmem [shape: f32[2,8,128], index: 0, kind: input, shape index: {}]
  %s1 = inlined_call_operand.vmem [shape: bf16[2,8,128], index: 1, kind: input, shape index: {}]
  %s2 = inlined_call_operand.vmem [shape: f32[2,8,8], index: 2, kind: input, shape index: {}]
  %s3 = inlined_call_operand.vmem [shape: f32[2,6,128], index: 3, kind: input, shape index: {}]
  %s4 = inlined_call_operand.hbm [shape: bf16[2,128,384], index: 4, kind: input, shape index: {}]
  %s5 = inlined_call_operand.vmem [shape: f32[2,1,384], index: 5, kind: input, shape index: {}]
  %s6 = inlined_call_operand.hbm [shape: bf16[2,128,128], index: 6, kind: input, shape index: {}]
  %s7 = inlined_call_operand.vmem [shape: f32[2,1,128], index: 7, kind: input, shape index: {}]
  %s8 = inlined_call_operand.hbm [shape: bf16[2,128,128], index: 8, kind: input, shape index: {}]
  %s9 = inlined_call_operand.vmem [shape: f32[2,1,128], index: 9, kind: input, shape index: {}]
  %s10 = inlined_call_operand.hbm [shape: bf16[2,128,256], index: 10, kind: input, shape index: {}]
  %s11 = inlined_call_operand.vmem [shape: f32[2,1,256], index: 11, kind: input, shape index: {}]
  %s12 = inlined_call_operand.hbm [shape: bf16[2,128,128], index: 12, kind: input, shape index: {}]
  %s13 = inlined_call_operand.vmem [shape: f32[2,1,128], index: 13, kind: input, shape index: {}]
  %s14 = inlined_call_operand.hbm [shape: bf16[2,128,256], index: 14, kind: input, shape index: {}]
  %s15 = inlined_call_operand.vmem [shape: f32[2,1,256], index: 15, kind: input, shape index: {}]
  %s16 = inlined_call_operand.hbm [shape: bf16[2,256,128], index: 16, kind: input, shape index: {}]
  %s17 = inlined_call_operand.vmem [shape: f32[2,1,128], index: 17, kind: input, shape index: {}]
  %s18 = inlined_call_operand.vmem [shape: f32[1,128], index: 18, kind: input, shape index: {}]
  %s19 = inlined_call_operand.vmem [shape: f32[1,128], index: 19, kind: input, shape index: {}]
  %s20 = inlined_call_operand.hbm [shape: f32[2,8,128], index: 20, kind: output, shape index: {}]
  %s21 = sld [smem:[#allocation0]]
  $region153: #{decoder_forward.1} parent=0
    _
  %s23 = ssub.s32 1, %s21
  %s24 = scalar_select 0, %s23, %s21
  $region1: #{decoder_forward.1} parent=0
    #allocation4 [shape = 'u8[196608]{0}', space=vmem, size = 0x30000, scoped, tag = 'input window, operand 4']
    #allocation5 [shape = 's32[2]{0}', space=sflag, size = 0x8, scoped, tag = 'scoped memory for decoder_forward.1']
    #allocation6 [shape = 's32[2]{0}', space=sflag, size = 0x8, scoped, tag = 'scoped memory for decoder_forward.1']
    #allocation7 [shape = 'u8[65536]{0}', space=vmem, size = 0x10000, scoped, tag = 'input window, operand 6']
    #allocation8 [shape = 's32[2]{0}', space=sflag, size = 0x8, scoped, tag = 'scoped memory for decoder_forward.1']
    #allocation9 [shape = 'u8[65536]{0}', space=vmem, size = 0x10000, scoped, tag = 'input window, operand 8']
    #allocation10 [shape = 'u8[131072]{0}', space=vmem, size = 0x20000, scoped, tag = 'input window, operand 10']
    #allocation11 [shape = 's32[2]{0}', space=sflag, size = 0x8, scoped, tag = 'scoped memory for decoder_forward.1']
    #allocation12 [shape = 'u8[65536]{0}', space=vmem, size = 0x10000, scoped, tag = 'input window, operand 12']
    #allocation13 [shape = 'u8[131072]{0}', space=vmem, size = 0x20000, scoped, tag = 'input window, operand 14']
    #allocation14 [shape = 's32[2]{0}', space=sflag, size = 0x8, scoped, tag = 'scoped memory for decoder_forward.1']
    #allocation15 [shape = 'u8[131072]{0}', space=vmem, size = 0x20000, scoped, tag = 'input window, operand 16']
    #allocation16 [shape = 'u8[8192]{0}', space=vmem, size = 0x2000, scoped, tag = 'output window, operand 0, single buffered']
    %25 = vsyncpa [#allocation5], 0
    %s26 = scalar_lea.sflag [#allocation5], 1
    %27 = vsyncpa %s26, 0
    %28 = vsyncpa [#allocation8], 0
    %s29 = scalar_lea.sflag [#allocation8], 1
    %30 = vsyncpa %s29, 0
    %31 = vsyncpa [#allocation11], 0
    %s32 = scalar_lea.sflag [#allocation11], 1
    %33 = vsyncpa %s32, 0
    %34 = vsyncpa [#allocation14], 0
    %s35 = scalar_lea.sflag [#allocation14], 1
    %36 = vsyncpa %s35, 0
    %37 = vsyncpa [#allocation6], 0
    loop: start=0, step=1, limit=4
    $region2: #{decoder_forward.1} parent=1 // loop_pre_header
      _
    $region3: #{decoder_forward.1} parent=1 // loop_header
      %s39 = sphi 0, %s43
      %p40 = scmp.ge.s32.totalorder %s39, 4
      %s46 = sphi 0, %s58
      %s47 = sphi 0, %s54
      %s48 = sphi 0, %s46
      %s49 = sphi 0, %s47
      %s50 = sphi 0, %s48
      %s51 = sphi 0, %s49
      %s61 = sphi 0, %s63
      %s64 = sphi 0, %s61
      %s65 = sphi 0, %s64
      %s81 = sphi 0, %s65
      %s87 = sphi 0, %s89
      %s90 = sphi 0, %s87
      %s91 = sphi 0, %s90
      %s107 = sphi 0, %s91
      %s113 = sphi 0, %s115
      %s116 = sphi 0, %s113
      %s117 = sphi 0, %s116
      %s133 = sphi 0, %s117
      %s139 = sphi 0, %s141
      %s142 = sphi 0, %s139
      %s143 = sphi 0, %s142
      %s159 = sphi 0, %s143
      %s165 = sphi 0, %s167
      %s168 = sphi 0, %s165
      %s169 = sphi 0, %s168
      %s185 = sphi 0, %s169
      %s191 = sphi 0, %s193
      %s194 = sphi 0, %s191
      %s195 = sphi 0, %s194
      %s211 = sphi 0, %s195
      %s217 = sphi 0, %s219
      %s220 = sphi 0, %s217
      %s221 = sphi 0, %s220
      %s237 = sphi 0, %s221
      %s243 = sphi 0, %s245
      %s246 = sphi 0, %s243
      %s247 = sphi 0, %s246
      %s263 = sphi 0, %s247
      %s269 = sphi 0, %s271
      %s272 = sphi 0, %s269
      %s273 = sphi 0, %s272
      %s289 = sphi 0, %s273
      %s295 = sphi 0, %s297
      %s298 = sphi 0, %s295
      %s299 = sphi 0, %s298
      %s315 = sphi 0, %s299
      %s321 = sphi 0, %s323
      %s324 = sphi 0, %s321
      %s325 = sphi 0, %s324
      %s341 = sphi 0, %s325
      %s347 = sphi 0, %s349
      %s350 = sphi 0, %s347
      %s351 = sphi 0, %s350
      %s367 = sphi 0, %s351
      %s373 = sphi 0, %s375
      %s376 = sphi 0, %s373
      %s377 = sphi 0, %s376
      %s393 = sphi 0, %s377
      %s399 = sphi 0, %s401
      %s402 = sphi 0, %s399
      %s403 = sphi 0, %s402
      %s419 = sphi 0, %s403
      %s425 = sphi 0, %s427
      %s428 = sphi 0, %s425
      %s429 = sphi 0, %s428
      %s445 = sphi 0, %s429
      %s451 = sphi 0, %s453
      %s454 = sphi 0, %s451
      %s455 = sphi 0, %s454
      %s471 = sphi 0, %s455
      %s477 = sphi 0, %s479
      %s480 = sphi 0, %s477
      %s481 = sphi 0, %s480
      %s497 = sphi 0, %s481
      %s503 = sphi 0, %s505
      %s506 = sphi 0, %s503
      %s507 = sphi 0, %s506
      %s523 = sphi 0, %s507
      %s527 = sphi 0, %s527
      %s529 = sphi 0, %s527
      %s530 = sphi 0, %s529
      %s544 = sphi 0, %s530
      %s548 = sphi 0, %s548
      %s550 = sphi 0, %s548
      %s551 = sphi 0, %s550
      %s565 = sphi 0, %s551
      %s571 = sphi 0, %s573
      %s574 = sphi 0, %s571
      %s575 = sphi 0, %s574
      %s591 = sphi 0, %s575
    $region4: #{decoder_forward.1} parent=1 // loop_header_branch
      %42 = sbr.rel (%p40) target = $region8
    $region5: #{decoder_forward.1} parent=1 // loop_body
      %s44 = ssub.s32 %s39, 1
      %s45 = ssub.s32 %s39, 2
      %s52 = sadd.s32 1, %s47
      %p53 = scmp.ge.s32.totalorder %s52, 2
      %s54 = scalar_select %p53, 0, %s52
      %s55 = sadd.s32 1, %s46
      %s56 = scalar_select %p53, %s55, %s46
      %p57 = scmp.ge.s32.totalorder %s56, 1
      %s58 = scalar_select %p57, 0, %s56
      %s59 = ssub.s32 %s46, %s58
      %p60 = scmp.eq.s32.totalorder %s59, 0
      %s62 = sadd.s32 %s61, 1
      %s63 = scalar_select %p60, %s61, %s62
      %p66 = pneg %p60
      %p67 = scmp.eq.s32.totalorder %s39, 1
      %p68 = por %p66, %p67
      %p69 = scmp.ne.s32.totalorder %s61, %s64
      %p70 = scmp.eq.s32.totalorder %s39, 0
      %p71 = por %p69, %p70
      %p72 = scmp.ne.s32.totalorder %s61, %s64
      %p73 = scmp.eq.s32.totalorder %s44, 1
      %p74 = por %p72, %p73
      %p75 = scmp.ne.s32.totalorder %s64, %s65
      %p76 = scmp.eq.s32.totalorder %s44, 0
      %p77 = por %p75, %p76
      %p78 = scmp.ne.s32.totalorder %s64, %s65
      %p79 = scmp.eq.s32.totalorder %s45, 1
      %p80 = por %p78, %p79
      %p82 = scmp.ne.s32.totalorder %s65, %s81
      %p83 = scmp.eq.s32.totalorder %s45, 0
      %p84 = por %p82, %p83
      %s85 = ssub.s32 %s46, %s58
      %p86 = scmp.eq.s32.totalorder %s85, 0
      %s88 = sadd.s32 %s87, 1
      %s89 = scalar_select %p86, %s87, %s88
      %p92 = pneg %p86
      %p93 = scmp.eq.s32.totalorder %s39, 1
      %p94 = por %p92, %p93
      %p95 = scmp.ne.s32.totalorder %s87, %s90
      %p96 = scmp.eq.s32.totalorder %s39, 0
      %p97 = por %p95, %p96
      %p98 = scmp.ne.s32.totalorder %s87, %s90
      %p99 = scmp.eq.s32.totalorder %s44, 1
      %p100 = por %p98, %p99
      %p101 = scmp.ne.s32.totalorder %s90, %s91
      %p102 = scmp.eq.s32.totalorder %s44, 0
      %p103 = por %p101, %p102
      %p104 = scmp.ne.s32.totalorder %s90, %s91
      %p105 = scmp.eq.s32.totalorder %s45, 1
      %p106 = por %p104, %p105
      %p108 = scmp.ne.s32.totalorder %s91, %s107
      %p109 = scmp.eq.s32.totalorder %s45, 0
      %p110 = por %p108, %p109
      %s111 = ssub.s32 %s46, %s58
      %p112 = scmp.eq.s32.totalorder %s111, 0
      %s114 = sadd.s32 %s113, 1
      %s115 = scalar_select %p112, %s113, %s114
      %p118 = pneg %p112
      %p119 = scmp.eq.s32.totalorder %s39, 1
      %p120 = por %p118, %p119
      %p121 = scmp.ne.s32.totalorder %s113, %s116
      %p122 = scmp.eq.s32.totalorder %s39, 0
      %p123 = por %p121, %p122
      %p124 = scmp.ne.s32.totalorder %s113, %s116
      %p125 = scmp.eq.s32.totalorder %s44, 1
      %p126 = por %p124, %p125
      %p127 = scmp.ne.s32.totalorder %s116, %s117
      %p128 = scmp.eq.s32.totalorder %s44, 0
      %p129 = por %p127, %p128
      %p130 = scmp.ne.s32.totalorder %s116, %s117
      %p131 = scmp.eq.s32.totalorder %s45, 1
      %p132 = por %p130, %p131
      %p134 = scmp.ne.s32.totalorder %s117, %s133
      %p135 = scmp.eq.s32.totalorder %s45, 0
      %p136 = por %p134, %p135
      %s137 = ssub.s32 %s47, %s54
      %p138 = scmp.eq.s32.totalorder %s137, 0
      %s140 = sadd.s32 %s139, 1
      %s141 = scalar_select %p138, %s139, %s140
      %p144 = pneg %p138
      %p145 = scmp.eq.s32.totalorder %s39, 1
      %p146 = por %p144, %p145
      %p147 = scmp.ne.s32.totalorder %s139, %s142
      %p148 = scmp.eq.s32.totalorder %s39, 0
      %p149 = por %p147, %p148
      %p150 = scmp.ne.s32.totalorder %s139, %s142
      %p151 = scmp.eq.s32.totalorder %s44, 1
      %p152 = por %p150, %p151
      %p153 = scmp.ne.s32.totalorder %s142, %s143
      %p154 = scmp.eq.s32.totalorder %s44, 0
      %p155 = por %p153, %p154
      %p156 = scmp.ne.s32.totalorder %s142, %s143
      %p157 = scmp.eq.s32.totalorder %s45, 1
      %p158 = por %p156, %p157
      %p160 = scmp.ne.s32.totalorder %s143, %s159
      %p161 = scmp.eq.s32.totalorder %s45, 0
      %p162 = por %p160, %p161
      %s163 = ssub.s32 %s47, %s54
      %p164 = scmp.eq.s32.totalorder %s163, 0
      %s166 = sadd.s32 %s165, 1
      %s167 = scalar_select %p164, %s165, %s166
      %p170 = pneg %p164
      %p171 = scmp.eq.s32.totalorder %s39, 1
      %p172 = por %p170, %p171
      %p173 = scmp.ne.s32.totalorder %s165, %s168
      %p174 = scmp.eq.s32.totalorder %s39, 0
      %p175 = por %p173, %p174
      %p176 = scmp.ne.s32.totalorder %s165, %s168
      %p177 = scmp.eq.s32.totalorder %s44, 1
      %p178 = por %p176, %p177
      %p179 = scmp.ne.s32.totalorder %s168, %s169
      %p180 = scmp.eq.s32.totalorder %s44, 0
      %p181 = por %p179, %p180
      %p182 = scmp.ne.s32.totalorder %s168, %s169
      %p183 = scmp.eq.s32.totalorder %s45, 1
      %p184 = por %p182, %p183
      %p186 = scmp.ne.s32.totalorder %s169, %s185
      %p187 = scmp.eq.s32.totalorder %s45, 0
      %p188 = por %p186, %p187
      %s189 = ssub.s32 %s47, %s54
      %p190 = scmp.eq.s32.totalorder %s189, 0
      %s192 = sadd.s32 %s191, 1
      %s193 = scalar_select %p190, %s191, %s192
      %p196 = pneg %p190
      %p197 = scmp.eq.s32.totalorder %s39, 1
      %p198 = por %p196, %p197
      %p199 = scmp.ne.s32.totalorder %s191, %s194
      %p200 = scmp.eq.s32.totalorder %s39, 0
      %p201 = por %p199, %p200
      %p202 = scmp.ne.s32.totalorder %s191, %s194
      %p203 = scmp.eq.s32.totalorder %s44, 1
      %p204 = por %p202, %p203
      %p205 = scmp.ne.s32.totalorder %s194, %s195
      %p206 = scmp.eq.s32.totalorder %s44, 0
      %p207 = por %p205, %p206
      %p208 = scmp.ne.s32.totalorder %s194, %s195
      %p209 = scmp.eq.s32.totalorder %s45, 1
      %p210 = por %p208, %p209
      %p212 = scmp.ne.s32.totalorder %s195, %s211
      %p213 = scmp.eq.s32.totalorder %s45, 0
      %p214 = por %p212, %p213
      %s215 = ssub.s32 %s47, %s54
      %p216 = scmp.eq.s32.totalorder %s215, 0
      %s218 = sadd.s32 %s217, 1
      %s219 = scalar_select %p216, %s217, %s218
      %p222 = pneg %p216
      %p223 = scmp.eq.s32.totalorder %s39, 1
      %p224 = por %p222, %p223
      %p225 = scmp.ne.s32.totalorder %s217, %s220
      %p226 = scmp.eq.s32.totalorder %s39, 0
      %p227 = por %p225, %p226
      %p228 = scmp.ne.s32.totalorder %s217, %s220
      %p229 = scmp.eq.s32.totalorder %s44, 1
      %p230 = por %p228, %p229
      %p231 = scmp.ne.s32.totalorder %s220, %s221
      %p232 = scmp.eq.s32.totalorder %s44, 0
      %p233 = por %p231, %p232
      %p234 = scmp.ne.s32.totalorder %s220, %s221
      %p235 = scmp.eq.s32.totalorder %s45, 1
      %p236 = por %p234, %p235
      %p238 = scmp.ne.s32.totalorder %s221, %s237
      %p239 = scmp.eq.s32.totalorder %s45, 0
      %p240 = por %p238, %p239
      %s241 = ssub.s32 %s47, %s54
      %p242 = scmp.eq.s32.totalorder %s241, 0
      %s244 = sadd.s32 %s243, 1
      %s245 = scalar_select %p242, %s243, %s244
      %p248 = pneg %p242
      %p249 = scmp.eq.s32.totalorder %s39, 1
      %p250 = por %p248, %p249
      %p251 = scmp.ne.s32.totalorder %s243, %s246
      %p252 = scmp.eq.s32.totalorder %s39, 0
      %p253 = por %p251, %p252
      %p254 = scmp.ne.s32.totalorder %s243, %s246
      %p255 = scmp.eq.s32.totalorder %s44, 1
      %p256 = por %p254, %p255
      %p257 = scmp.ne.s32.totalorder %s246, %s247
      %p258 = scmp.eq.s32.totalorder %s44, 0
      %p259 = por %p257, %p258
      %p260 = scmp.ne.s32.totalorder %s246, %s247
      %p261 = scmp.eq.s32.totalorder %s45, 1
      %p262 = por %p260, %p261
      %p264 = scmp.ne.s32.totalorder %s247, %s263
      %p265 = scmp.eq.s32.totalorder %s45, 0
      %p266 = por %p264, %p265
      %s267 = ssub.s32 %s47, %s54
      %p268 = scmp.eq.s32.totalorder %s267, 0
      %s270 = sadd.s32 %s269, 1
      %s271 = scalar_select %p268, %s269, %s270
      %p274 = pneg %p268
      %p275 = scmp.eq.s32.totalorder %s39, 1
      %p276 = por %p274, %p275
      %p277 = scmp.ne.s32.totalorder %s269, %s272
      %p278 = scmp.eq.s32.totalorder %s39, 0
      %p279 = por %p277, %p278
      %p280 = scmp.ne.s32.totalorder %s269, %s272
      %p281 = scmp.eq.s32.totalorder %s44, 1
      %p282 = por %p280, %p281
      %p283 = scmp.ne.s32.totalorder %s272, %s273
      %p284 = scmp.eq.s32.totalorder %s44, 0
      %p285 = por %p283, %p284
      %p286 = scmp.ne.s32.totalorder %s272, %s273
      %p287 = scmp.eq.s32.totalorder %s45, 1
      %p288 = por %p286, %p287
      %p290 = scmp.ne.s32.totalorder %s273, %s289
      %p291 = scmp.eq.s32.totalorder %s45, 0
      %p292 = por %p290, %p291
      %s293 = ssub.s32 %s47, %s54
      %p294 = scmp.eq.s32.totalorder %s293, 0
      %s296 = sadd.s32 %s295, 1
      %s297 = scalar_select %p294, %s295, %s296
      %p300 = pneg %p294
      %p301 = scmp.eq.s32.totalorder %s39, 1
      %p302 = por %p300, %p301
      %p303 = scmp.ne.s32.totalorder %s295, %s298
      %p304 = scmp.eq.s32.totalorder %s39, 0
      %p305 = por %p303, %p304
      %p306 = scmp.ne.s32.totalorder %s295, %s298
      %p307 = scmp.eq.s32.totalorder %s44, 1
      %p308 = por %p306, %p307
      %p309 = scmp.ne.s32.totalorder %s298, %s299
      %p310 = scmp.eq.s32.totalorder %s44, 0
      %p311 = por %p309, %p310
      %p312 = scmp.ne.s32.totalorder %s298, %s299
      %p313 = scmp.eq.s32.totalorder %s45, 1
      %p314 = por %p312, %p313
      %p316 = scmp.ne.s32.totalorder %s299, %s315
      %p317 = scmp.eq.s32.totalorder %s45, 0
      %p318 = por %p316, %p317
      %s319 = ssub.s32 %s47, %s54
      %p320 = scmp.eq.s32.totalorder %s319, 0
      %s322 = sadd.s32 %s321, 1
      %s323 = scalar_select %p320, %s321, %s322
      %p326 = pneg %p320
      %p327 = scmp.eq.s32.totalorder %s39, 1
      %p328 = por %p326, %p327
      %p329 = scmp.ne.s32.totalorder %s321, %s324
      %p330 = scmp.eq.s32.totalorder %s39, 0
      %p331 = por %p329, %p330
      %p332 = scmp.ne.s32.totalorder %s321, %s324
      %p333 = scmp.eq.s32.totalorder %s44, 1
      %p334 = por %p332, %p333
      %p335 = scmp.ne.s32.totalorder %s324, %s325
      %p336 = scmp.eq.s32.totalorder %s44, 0
      %p337 = por %p335, %p336
      %p338 = scmp.ne.s32.totalorder %s324, %s325
      %p339 = scmp.eq.s32.totalorder %s45, 1
      %p340 = por %p338, %p339
      %p342 = scmp.ne.s32.totalorder %s325, %s341
      %p343 = scmp.eq.s32.totalorder %s45, 0
      %p344 = por %p342, %p343
      %s345 = ssub.s32 %s47, %s54
      %p346 = scmp.eq.s32.totalorder %s345, 0
      %s348 = sadd.s32 %s347, 1
      %s349 = scalar_select %p346, %s347, %s348
      %p352 = pneg %p346
      %p353 = scmp.eq.s32.totalorder %s39, 1
      %p354 = por %p352, %p353
      %p355 = scmp.ne.s32.totalorder %s347, %s350
      %p356 = scmp.eq.s32.totalorder %s39, 0
      %p357 = por %p355, %p356
      %p358 = scmp.ne.s32.totalorder %s347, %s350
      %p359 = scmp.eq.s32.totalorder %s44, 1
      %p360 = por %p358, %p359
      %p361 = scmp.ne.s32.totalorder %s350, %s351
      %p362 = scmp.eq.s32.totalorder %s44, 0
      %p363 = por %p361, %p362
      %p364 = scmp.ne.s32.totalorder %s350, %s351
      %p365 = scmp.eq.s32.totalorder %s45, 1
      %p366 = por %p364, %p365
      %p368 = scmp.ne.s32.totalorder %s351, %s367
      %p369 = scmp.eq.s32.totalorder %s45, 0
      %p370 = por %p368, %p369
      %s371 = ssub.s32 %s47, %s54
      %p372 = scmp.eq.s32.totalorder %s371, 0
      %s374 = sadd.s32 %s373, 1
      %s375 = scalar_select %p372, %s373, %s374
      %p378 = pneg %p372
      %p379 = scmp.eq.s32.totalorder %s39, 1
      %p380 = por %p378, %p379
      %p381 = scmp.ne.s32.totalorder %s373, %s376
      %p382 = scmp.eq.s32.totalorder %s39, 0
      %p383 = por %p381, %p382
      %p384 = scmp.ne.s32.totalorder %s373, %s376
      %p385 = scmp.eq.s32.totalorder %s44, 1
      %p386 = por %p384, %p385
      %p387 = scmp.ne.s32.totalorder %s376, %s377
      %p388 = scmp.eq.s32.totalorder %s44, 0
      %p389 = por %p387, %p388
      %p390 = scmp.ne.s32.totalorder %s376, %s377
      %p391 = scmp.eq.s32.totalorder %s45, 1
      %p392 = por %p390, %p391
      %p394 = scmp.ne.s32.totalorder %s377, %s393
      %p395 = scmp.eq.s32.totalorder %s45, 0
      %p396 = por %p394, %p395
      %s397 = ssub.s32 %s47, %s54
      %p398 = scmp.eq.s32.totalorder %s397, 0
      %s400 = sadd.s32 %s399, 1
      %s401 = scalar_select %p398, %s399, %s400
      %p404 = pneg %p398
      %p405 = scmp.eq.s32.totalorder %s39, 1
      %p406 = por %p404, %p405
      %p407 = scmp.ne.s32.totalorder %s399, %s402
      %p408 = scmp.eq.s32.totalorder %s39, 0
      %p409 = por %p407, %p408
      %p410 = scmp.ne.s32.totalorder %s399, %s402
      %p411 = scmp.eq.s32.totalorder %s44, 1
      %p412 = por %p410, %p411
      %p413 = scmp.ne.s32.totalorder %s402, %s403
      %p414 = scmp.eq.s32.totalorder %s44, 0
      %p415 = por %p413, %p414
      %p416 = scmp.ne.s32.totalorder %s402, %s403
      %p417 = scmp.eq.s32.totalorder %s45, 1
      %p418 = por %p416, %p417
      %p420 = scmp.ne.s32.totalorder %s403, %s419
      %p421 = scmp.eq.s32.totalorder %s45, 0
      %p422 = por %p420, %p421
      %s423 = ssub.s32 %s47, %s54
      %p424 = scmp.eq.s32.totalorder %s423, 0
      %s426 = sadd.s32 %s425, 1
      %s427 = scalar_select %p424, %s425, %s426
      %p430 = pneg %p424
      %p431 = scmp.eq.s32.totalorder %s39, 1
      %p432 = por %p430, %p431
      %p433 = scmp.ne.s32.totalorder %s425, %s428
      %p434 = scmp.eq.s32.totalorder %s39, 0
      %p435 = por %p433, %p434
      %p436 = scmp.ne.s32.totalorder %s425, %s428
      %p437 = scmp.eq.s32.totalorder %s44, 1
      %p438 = por %p436, %p437
      %p439 = scmp.ne.s32.totalorder %s428, %s429
      %p440 = scmp.eq.s32.totalorder %s44, 0
      %p441 = por %p439, %p440
      %p442 = scmp.ne.s32.totalorder %s428, %s429
      %p443 = scmp.eq.s32.totalorder %s45, 1
      %p444 = por %p442, %p443
      %p446 = scmp.ne.s32.totalorder %s429, %s445
      %p447 = scmp.eq.s32.totalorder %s45, 0
      %p448 = por %p446, %p447
      %s449 = ssub.s32 %s47, %s54
      %p450 = scmp.eq.s32.totalorder %s449, 0
      %s452 = sadd.s32 %s451, 1
      %s453 = scalar_select %p450, %s451, %s452
      %p456 = pneg %p450
      %p457 = scmp.eq.s32.totalorder %s39, 1
      %p458 = por %p456, %p457
      %p459 = scmp.ne.s32.totalorder %s451, %s454
      %p460 = scmp.eq.s32.totalorder %s39, 0
      %p461 = por %p459, %p460
      %p462 = scmp.ne.s32.totalorder %s451, %s454
      %p463 = scmp.eq.s32.totalorder %s44, 1
      %p464 = por %p462, %p463
      %p465 = scmp.ne.s32.totalorder %s454, %s455
      %p466 = scmp.eq.s32.totalorder %s44, 0
      %p467 = por %p465, %p466
      %p468 = scmp.ne.s32.totalorder %s454, %s455
      %p469 = scmp.eq.s32.totalorder %s45, 1
      %p470 = por %p468, %p469
      %p472 = scmp.ne.s32.totalorder %s455, %s471
      %p473 = scmp.eq.s32.totalorder %s45, 0
      %p474 = por %p472, %p473
      %s475 = ssub.s32 %s47, %s54
      %p476 = scmp.eq.s32.totalorder %s475, 0
      %s478 = sadd.s32 %s477, 1
      %s479 = scalar_select %p476, %s477, %s478
      %p482 = pneg %p476
      %p483 = scmp.eq.s32.totalorder %s39, 1
      %p484 = por %p482, %p483
      %p485 = scmp.ne.s32.totalorder %s477, %s480
      %p486 = scmp.eq.s32.totalorder %s39, 0
      %p487 = por %p485, %p486
      %p488 = scmp.ne.s32.totalorder %s477, %s480
      %p489 = scmp.eq.s32.totalorder %s44, 1
      %p490 = por %p488, %p489
      %p491 = scmp.ne.s32.totalorder %s480, %s481
      %p492 = scmp.eq.s32.totalorder %s44, 0
      %p493 = por %p491, %p492
      %p494 = scmp.ne.s32.totalorder %s480, %s481
      %p495 = scmp.eq.s32.totalorder %s45, 1
      %p496 = por %p494, %p495
      %p498 = scmp.ne.s32.totalorder %s481, %s497
      %p499 = scmp.eq.s32.totalorder %s45, 0
      %p500 = por %p498, %p499
      %s501 = ssub.s32 %s47, %s54
      %p502 = scmp.eq.s32.totalorder %s501, 0
      %s504 = sadd.s32 %s503, 1
      %s505 = scalar_select %p502, %s503, %s504
      %p508 = pneg %p502
      %p509 = scmp.eq.s32.totalorder %s39, 1
      %p510 = por %p508, %p509
      %p511 = scmp.ne.s32.totalorder %s503, %s506
      %p512 = scmp.eq.s32.totalorder %s39, 0
      %p513 = por %p511, %p512
      %p514 = scmp.ne.s32.totalorder %s503, %s506
      %p515 = scmp.eq.s32.totalorder %s44, 1
      %p516 = por %p514, %p515
      %p517 = scmp.ne.s32.totalorder %s506, %s507
      %p518 = scmp.eq.s32.totalorder %s44, 0
      %p519 = por %p517, %p518
      %p520 = scmp.ne.s32.totalorder %s506, %s507
      %p521 = scmp.eq.s32.totalorder %s45, 1
      %p522 = por %p520, %p521
      %p524 = scmp.ne.s32.totalorder %s507, %s523
      %p525 = scmp.eq.s32.totalorder %s45, 0
      %p526 = por %p524, %p525
      %s528 = sadd.s32 %s527, 1
      %p531 = scmp.eq.s32.totalorder %s39, 1
      %p532 = scmp.ne.s32.totalorder %s527, %s529
      %p533 = scmp.eq.s32.totalorder %s39, 0
      %p534 = por %p532, %p533
      %p535 = scmp.ne.s32.totalorder %s527, %s529
      %p536 = scmp.eq.s32.totalorder %s44, 1
      %p537 = por %p535, %p536
      %p538 = scmp.ne.s32.totalorder %s529, %s530
      %p539 = scmp.eq.s32.totalorder %s44, 0
      %p540 = por %p538, %p539
      %p541 = scmp.ne.s32.totalorder %s529, %s530
      %p542 = scmp.eq.s32.totalorder %s45, 1
      %p543 = por %p541, %p542
      %p545 = scmp.ne.s32.totalorder %s530, %s544
      %p546 = scmp.eq.s32.totalorder %s45, 0
      %p547 = por %p545, %p546
      %s549 = sadd.s32 %s548, 1
      %p552 = scmp.eq.s32.totalorder %s39, 1
      %p553 = scmp.ne.s32.totalorder %s548, %s550
      %p554 = scmp.eq.s32.totalorder %s39, 0
      %p555 = por %p553, %p554
      %p556 = scmp.ne.s32.totalorder %s548, %s550
      %p557 = scmp.eq.s32.totalorder %s44, 1
      %p558 = por %p556, %p557
      %p559 = scmp.ne.s32.totalorder %s550, %s551
      %p560 = scmp.eq.s32.totalorder %s44, 0
      %p561 = por %p559, %p560
      %p562 = scmp.ne.s32.totalorder %s550, %s551
      %p563 = scmp.eq.s32.totalorder %s45, 1
      %p564 = por %p562, %p563
      %p566 = scmp.ne.s32.totalorder %s551, %s565
      %p567 = scmp.eq.s32.totalorder %s45, 0
      %p568 = por %p566, %p567
      %s569 = ssub.s32 %s46, %s58
      %p570 = scmp.eq.s32.totalorder %s569, 0
      %s572 = sadd.s32 %s571, 1
      %s573 = scalar_select %p570, %s571, %s572
      %p576 = pneg %p570
      %p577 = scmp.eq.s32.totalorder %s39, 1
      %p578 = por %p576, %p577
      %p579 = scmp.ne.s32.totalorder %s571, %s574
      %p580 = scmp.eq.s32.totalorder %s39, 0
      %p581 = por %p579, %p580
      %p582 = scmp.ne.s32.totalorder %s571, %s574
      %p583 = scmp.eq.s32.totalorder %s44, 1
      %p584 = por %p582, %p583
      %p585 = scmp.ne.s32.totalorder %s574, %s575
      %p586 = scmp.eq.s32.totalorder %s44, 0
      %p587 = por %p585, %p586
      %p588 = scmp.ne.s32.totalorder %s574, %s575
      %p589 = scmp.eq.s32.totalorder %s45, 1
      %p590 = por %p588, %p589
      %p592 = scmp.ne.s32.totalorder %s575, %s591
      %p593 = scmp.eq.s32.totalorder %s45, 0
      %p594 = por %p592, %p593
      %p595 = scmp.le.s32.totalorder 1, %s39
      %p596 = scmp.lt.s32.totalorder %s39, 3
      %p597 = pnand %p595, %p596
      %p598 = pneg %p597
      // Predicated region
      $region9: #{decoder_forward.1} parent=5 // pred_check
        _
      $region10: #{decoder_forward.1} parent=5 // pred_check_branch
        %600 = sbr.rel (%p597) target = $region12
      $region11: #{decoder_forward.1} parent=5 // pred_region
        %s601 = ssub.s32 %s39, 1
        // Predicated region
        $region13: #{decoder_forward.1} parent=11 // pred_check
          %p602 = pneg %p77
        $region14: #{decoder_forward.1} parent=11 // pred_check_branch
          %604 = sbr.rel (%p602) target = $region16
        $region15: #{decoder_forward.1} parent=11 // pred_region
          %s605 = smul.u32 2, %s48
          %p606 = scmp.lt.s32.totalorder %s605, 1
          %s607 = scalar_select %p606, %s605, 1
          %s608 = smul.addr %s607, 8
          %s609 = scalar_lea.vmem %s0, %s608
          %s610 = smul.u32 2, %s48
        $region16: #{decoder_forward.1} parent=11 // pred_fallthru
          _
        // Predicated region
        $region17: #{decoder_forward.1} parent=11 // pred_check
          %p611 = pneg %p103
        $region18: #{decoder_forward.1} parent=11 // pred_check_branch
          %613 = sbr.rel (%p611) target = $region20
        $region19: #{decoder_forward.1} parent=11 // pred_region
          %s614 = smul.u32 2, %s48
          %p615 = scmp.lt.s32.totalorder %s614, 1
          %s616 = scalar_select %p615, %s614, 1
          %s617 = smul.addr %s616, 4
          %s618 = scalar_lea.vmem %s1, %s617
          %s619 = smul.u32 2, %s48
        $region20: #{decoder_forward.1} parent=11 // pred_fallthru
          _
        // Predicated region
        $region21: #{decoder_forward.1} parent=11 // pred_check
          %p620 = pneg %p129
        $region22: #{decoder_forward.1} parent=11 // pred_check_branch
          %622 = sbr.rel (%p620) target = $region24
        $region23: #{decoder_forward.1} parent=11 // pred_region
          %s623 = smul.u32 2, %s48
          %p624 = scmp.lt.s32.totalorder %s623, 1
          %s625 = scalar_select %p624, %s623, 1
          %s626 = smul.addr %s625, 8
          %s627 = scalar_lea.vmem %s2, %s626
          %s628 = smul.u32 2, %s48
        $region24: #{decoder_forward.1} parent=11 // pred_fallthru
          _
        // Predicated region
        $region25: #{decoder_forward.1} parent=11 // pred_check
          %p629 = pneg %p540
        $region26: #{decoder_forward.1} parent=11 // pred_check_branch
          %631 = sbr.rel (%p629) target = $region28
        $region27: #{decoder_forward.1} parent=11 // pred_region
          _
        $region28: #{decoder_forward.1} parent=11 // pred_fallthru
          _
        // Predicated region
        $region29: #{decoder_forward.1} parent=11 // pred_check
          %p632 = pneg %p561
        $region30: #{decoder_forward.1} parent=11 // pred_check_branch
          %634 = sbr.rel (%p632) target = $region32
        $region31: #{decoder_forward.1} parent=11 // pred_region
          _
        $region32: #{decoder_forward.1} parent=11 // pred_fallthru
          _
      $region12: #{decoder_forward.1} parent=5 // pred_fallthru
        _
      %p635 = scmp.lt.s32.totalorder %s39, 2
      // Predicated region
      $region33: #{decoder_forward.1} parent=5 // pred_check
        %p636 = pneg %p635
      $region34: #{decoder_forward.1} parent=5 // pred_check_branch
        %638 = sbr.rel (%p636) target = $region36
      $region35: #{decoder_forward.1} parent=5 // pred_region
        // Predicated region
        $region37: #{decoder_forward.1} parent=35 // pred_check
          %p639 = pneg %p149
        $region38: #{decoder_forward.1} parent=35 // pred_check_branch
          %641 = sbr.rel (%p639) target = $region40
        $region39: #{decoder_forward.1} parent=35 // pred_region
          %p642 = scmp.lt.s32.totalorder %s47, 1
          %s643 = scalar_select %p642, %s47, 1
          %s644 = smul.addr %s643, 8
          %s645 = scalar_lea.vmem %s3, %s644
        $region40: #{decoder_forward.1} parent=35 // pred_fallthru
          _
        // Predicated region
        $region41: #{decoder_forward.1} parent=35 // pred_check
          %p646 = pneg %p175
        $region42: #{decoder_forward.1} parent=35 // pred_check_branch
          %648 = sbr.rel (%p646) target = $region44
        $region43: #{decoder_forward.1} parent=35 // pred_region
          %s649 = sand.u32 %s165, 1
          %s650 = scalar_lea.sflag [#allocation5], %s649
          %s651 = sand.u32 %s165, 1
          %s652 = smul.addr %s651, 192
          %s653 = scalar_lea.vmem [#allocation4], %s652
          %655 = vsyncadd %s650, 0
          %s656 = smul.addr %s47, 48
          %s657 = smul.addr %s656, 4
          %s658 = scalar_lea.hbm %s4, %s657
          %s659 = sshll.u32 %s658, 4
          %s660 = int_to_ptr.hbm [resolvable:$true] %s659
          %s661 = sshll.u32 %s653, 4
          %s662 = int_to_ptr.vmem [resolvable:$true] %s661
          %667 = dma.hbm_to_vmem [thread:$0]  %s660, 3072, %s662, %s650, 192, 192, 12
        $region44: #{decoder_forward.1} parent=35 // pred_fallthru
          _
        // Predicated region
        $region45: #{decoder_forward.1} parent=35 // pred_check
          %p668 = pneg %p201
        $region46: #{decoder_forward.1} parent=35 // pred_check_branch
          %670 = sbr.rel (%p668) target = $region48
        $region47: #{decoder_forward.1} parent=35 // pred_region
          %p671 = scmp.lt.s32.totalorder %s47, 1
          %s672 = scalar_select %p671, %s47, 1
          %s673 = smul.addr %s672, 3
          %s674 = scalar_lea.vmem %s5, %s673
        $region48: #{decoder_forward.1} parent=35 // pred_fallthru
          _
        // Predicated region
        $region49: #{decoder_forward.1} parent=35 // pred_check
          %p675 = pneg %p227
        $region50: #{decoder_forward.1} parent=35 // pred_check_branch
          %677 = sbr.rel (%p675) target = $region52
        $region51: #{decoder_forward.1} parent=35 // pred_region
          %s678 = sand.u32 %s39, 1
          %s679 = scalar_lea.sflag [#allocation8], %s678
          %s680 = sand.u32 %s217, 1
          %s681 = smul.addr %s680, 64
          %s682 = scalar_lea.vmem [#allocation7], %s681
          %684 = vsyncadd %s679, 0
          %s685 = smul.addr %s47, 16
          %s686 = smul.addr %s685, 4
          %s687 = scalar_lea.hbm %s6, %s686
          %s688 = sshll.u32 %s687, 4
          %s689 = int_to_ptr.hbm [resolvable:$true] %s688
          %s690 = sshll.u32 %s682, 4
          %s691 = int_to_ptr.vmem [resolvable:$true] %s690
          %696 = dma.hbm_to_vmem [thread:$0]  %s689, 1024, %s691, %s679, 64, 64, 4
        $region52: #{decoder_forward.1} parent=35 // pred_fallthru
          _
        // Predicated region
        $region53: #{decoder_forward.1} parent=35 // pred_check
          %p697 = pneg %p253
        $region54: #{decoder_forward.1} parent=35 // pred_check_branch
          %699 = sbr.rel (%p697) target = $region56
        $region55: #{decoder_forward.1} parent=35 // pred_region
          %p700 = scmp.lt.s32.totalorder %s47, 1
          %s701 = scalar_select %p700, %s47, 1
          %s702 = scalar_lea.vmem %s7, %s701
        $region56: #{decoder_forward.1} parent=35 // pred_fallthru
          _
        // Predicated region
        $region57: #{decoder_forward.1} parent=35 // pred_check
          %p703 = pneg %p279
        $region58: #{decoder_forward.1} parent=35 // pred_check_branch
          %705 = sbr.rel (%p703) target = $region60
        $region59: #{decoder_forward.1} parent=35 // pred_region
          %s706 = sand.u32 %s39, 1
          %s707 = scalar_lea.sflag [#allocation8], %s706
          %s708 = sand.u32 %s269, 1
          %s709 = smul.addr %s708, 64
          %s710 = scalar_lea.vmem [#allocation9], %s709
          %712 = vsyncadd %s707, 0
          %s713 = smul.addr %s47, 16
          %s714 = smul.addr %s713, 4
          %s715 = scalar_lea.hbm %s8, %s714
          %s716 = sshll.u32 %s715, 4
          %s717 = int_to_ptr.hbm [resolvable:$true] %s716
          %s718 = sshll.u32 %s710, 4
          %s719 = int_to_ptr.vmem [resolvable:$true] %s718
          %724 = dma.hbm_to_vmem [thread:$0]  %s717, 1024, %s719, %s707, 64, 64, 4
        $region60: #{decoder_forward.1} parent=35 // pred_fallthru
          _
        // Predicated region
        $region61: #{decoder_forward.1} parent=35 // pred_check
          %p725 = pneg %p305
        $region62: #{decoder_forward.1} parent=35 // pred_check_branch
          %727 = sbr.rel (%p725) target = $region64
        $region63: #{decoder_forward.1} parent=35 // pred_region
          %p728 = scmp.lt.s32.totalorder %s47, 1
          %s729 = scalar_select %p728, %s47, 1
          %s730 = scalar_lea.vmem %s9, %s729
        $region64: #{decoder_forward.1} parent=35 // pred_fallthru
          _
        // Predicated region
        $region65: #{decoder_forward.1} parent=35 // pred_check
          %p731 = pneg %p331
        $region66: #{decoder_forward.1} parent=35 // pred_check_branch
          %733 = sbr.rel (%p731) target = $region68
        $region67: #{decoder_forward.1} parent=35 // pred_region
          %s734 = sand.u32 %s39, 1
          %s735 = scalar_lea.sflag [#allocation11], %s734
          %s736 = sand.u32 %s321, 1
          %s737 = smul.addr %s736, 128
          %s738 = scalar_lea.vmem [#allocation10], %s737
          %740 = vsyncadd %s735, 0
          %s741 = smul.addr %s47, 32
          %s742 = smul.addr %s741, 4
          %s743 = scalar_lea.hbm %s10, %s742
          %s744 = sshll.u32 %s743, 4
          %s745 = int_to_ptr.hbm [resolvable:$true] %s744
          %s746 = sshll.u32 %s738, 4
          %s747 = int_to_ptr.vmem [resolvable:$true] %s746
          %752 = dma.hbm_to_vmem [thread:$0]  %s745, 2048, %s747, %s735, 128, 128, 8
        $region68: #{decoder_forward.1} parent=35 // pred_fallthru
          _
        // Predicated region
        $region69: #{decoder_forward.1} parent=35 // pred_check
          %p753 = pneg %p357
        $region70: #{decoder_forward.1} parent=35 // pred_check_branch
          %755 = sbr.rel (%p753) target = $region72
        $region71: #{decoder_forward.1} parent=35 // pred_region
          %p756 = scmp.lt.s32.totalorder %s47, 1
          %s757 = scalar_select %p756, %s47, 1
          %s758 = smul.addr %s757, 2
          %s759 = scalar_lea.vmem %s11, %s758
        $region72: #{decoder_forward.1} parent=35 // pred_fallthru
          _
        // Predicated region
        $region73: #{decoder_forward.1} parent=35 // pred_check
          %p760 = pneg %p383
        $region74: #{decoder_forward.1} parent=35 // pred_check_branch
          %762 = sbr.rel (%p760) target = $region76
        $region75: #{decoder_forward.1} parent=35 // pred_region
          %s763 = sand.u32 %s39, 1
          %s764 = scalar_lea.sflag [#allocation11], %s763
          %s765 = sand.u32 %s373, 1
          %s766 = smul.addr %s765, 64
          %s767 = scalar_lea.vmem [#allocation12], %s766
          %769 = vsyncadd %s764, 0
          %s770 = smul.addr %s47, 16
          %s771 = smul.addr %s770, 4
          %s772 = scalar_lea.hbm %s12, %s771
          %s773 = sshll.u32 %s772, 4
          %s774 = int_to_ptr.hbm [resolvable:$true] %s773
          %s775 = sshll.u32 %s767, 4
          %s776 = int_to_ptr.vmem [resolvable:$true] %s775
          %781 = dma.hbm_to_vmem [thread:$0]  %s774, 1024, %s776, %s764, 64, 64, 4
        $region76: #{decoder_forward.1} parent=35 // pred_fallthru
          _
        // Predicated region
        $region77: #{decoder_forward.1} parent=35 // pred_check
          %p782 = pneg %p409
        $region78: #{decoder_forward.1} parent=35 // pred_check_branch
          %784 = sbr.rel (%p782) target = $region80
        $region79: #{decoder_forward.1} parent=35 // pred_region
          %p785 = scmp.lt.s32.totalorder %s47, 1
          %s786 = scalar_select %p785, %s47, 1
          %s787 = scalar_lea.vmem %s13, %s786
        $region80: #{decoder_forward.1} parent=35 // pred_fallthru
          _
        // Predicated region
        $region81: #{decoder_forward.1} parent=35 // pred_check
          %p788 = pneg %p435
        $region82: #{decoder_forward.1} parent=35 // pred_check_branch
          %790 = sbr.rel (%p788) target = $region84
        $region83: #{decoder_forward.1} parent=35 // pred_region
          %s791 = sand.u32 %s39, 1
          %s792 = scalar_lea.sflag [#allocation14], %s791
          %s793 = sand.u32 %s425, 1
          %s794 = smul.addr %s793, 128
          %s795 = scalar_lea.vmem [#allocation13], %s794
          %797 = vsyncadd %s792, 0
          %s798 = smul.addr %s47, 32
          %s799 = smul.addr %s798, 4
          %s800 = scalar_lea.hbm %s14, %s799
          %s801 = sshll.u32 %s800, 4
          %s802 = int_to_ptr.hbm [resolvable:$true] %s801
          %s803 = sshll.u32 %s795, 4
          %s804 = int_to_ptr.vmem [resolvable:$true] %s803
          %809 = dma.hbm_to_vmem [thread:$0]  %s802, 2048, %s804, %s792, 128, 128, 8
        $region84: #{decoder_forward.1} parent=35 // pred_fallthru
          _
        // Predicated region
        $region85: #{decoder_forward.1} parent=35 // pred_check
          %p810 = pneg %p461
        $region86: #{decoder_forward.1} parent=35 // pred_check_branch
          %812 = sbr.rel (%p810) target = $region88
        $region87: #{decoder_forward.1} parent=35 // pred_region
          %p813 = scmp.lt.s32.totalorder %s47, 1
          %s814 = scalar_select %p813, %s47, 1
          %s815 = smul.addr %s814, 2
          %s816 = scalar_lea.vmem %s15, %s815
        $region88: #{decoder_forward.1} parent=35 // pred_fallthru
          _
        // Predicated region
        $region89: #{decoder_forward.1} parent=35 // pred_check
          %p817 = pneg %p487
        $region90: #{decoder_forward.1} parent=35 // pred_check_branch
          %819 = sbr.rel (%p817) target = $region92
        $region91: #{decoder_forward.1} parent=35 // pred_region
          %s820 = sand.u32 %s39, 1
          %s821 = scalar_lea.sflag [#allocation14], %s820
          %s822 = sand.u32 %s477, 1
          %s823 = smul.addr %s822, 128
          %s824 = scalar_lea.vmem [#allocation15], %s823
          %826 = vsyncadd %s821, 0
          %s827 = smul.addr %s47, 32
          %s828 = smul.addr %s827, 4
          %s829 = scalar_lea.hbm %s16, %s828
          %s830 = sshll.u32 %s829, 4
          %s831 = int_to_ptr.hbm [resolvable:$true] %s830
          %s832 = sshll.u32 %s824, 4
          %s833 = int_to_ptr.vmem [resolvable:$true] %s832
          %838 = dma.hbm_to_vmem [thread:$0]  %s831, 2048, %s833, %s821, 64, 64, 4
        $region92: #{decoder_forward.1} parent=35 // pred_fallthru
          _
        // Predicated region
        $region93: #{decoder_forward.1} parent=35 // pred_check
          %p839 = pneg %p513
        $region94: #{decoder_forward.1} parent=35 // pred_check_branch
          %841 = sbr.rel (%p839) target = $region96
        $region95: #{decoder_forward.1} parent=35 // pred_region
          %p842 = scmp.lt.s32.totalorder %s47, 1
          %s843 = scalar_select %p842, %s47, 1
          %s844 = scalar_lea.vmem %s17, %s843
        $region96: #{decoder_forward.1} parent=35 // pred_fallthru
          _
      $region36: #{decoder_forward.1} parent=5 // pred_fallthru
        _
      %p845 = scmp.le.s32.totalorder 1, %s39
      %p846 = scmp.lt.s32.totalorder %s39, 3
      %p847 = pnand %p845, %p846
      %p848 = pneg %p847
      // Predicated region
      $region97: #{decoder_forward.1} parent=5 // pred_check
        _
      $region98: #{decoder_forward.1} parent=5 // pred_check_branch
        %850 = sbr.rel (%p847) target = $region100
      $region99: #{decoder_forward.1} parent=5 // pred_region
        %s851 = ssub.s32 %s39, 1
        %s852 = sand.u32 %s168, 1
        %s853 = scalar_lea.sflag [#allocation5], %s852
        %s854 = sand.u32 %s168, 1
        %s855 = smul.addr %s854, 192
        %s856 = scalar_lea.vmem [#allocation4], %s855
        // Predicated region
        $region101: #{decoder_forward.1} parent=99 // pred_check
          %p857 = pneg %p181
        $region102: #{decoder_forward.1} parent=99 // pred_check_branch
          %859 = sbr.rel (%p857) target = $region104
        $region103: #{decoder_forward.1} parent=99 // pred_region
          %861 = dma.done %s853, 3072
        $region104: #{decoder_forward.1} parent=99 // pred_fallthru
          _
        %s862 = sand.u32 %s44, 1
        %s863 = scalar_lea.sflag [#allocation8], %s862
        %s864 = sand.u32 %s220, 1
        %s865 = smul.addr %s864, 64
        %s866 = scalar_lea.vmem [#allocation7], %s865
        // Predicated region
        $region105: #{decoder_forward.1} parent=99 // pred_check
          %p867 = pneg %p233
        $region106: #{decoder_forward.1} parent=99 // pred_check_branch
          %869 = sbr.rel (%p867) target = $region108
        $region107: #{decoder_forward.1} parent=99 // pred_region
          %871 = dma.done %s863, 1024
        $region108: #{decoder_forward.1} parent=99 // pred_fallthru
          _
        %s872 = sand.u32 %s44, 1
        %s873 = scalar_lea.sflag [#allocation8], %s872
        %s874 = sand.u32 %s272, 1
        %s875 = smul.addr %s874, 64
        %s876 = scalar_lea.vmem [#allocation9], %s875
        // Predicated region
        $region109: #{decoder_forward.1} parent=99 // pred_check
          %p877 = pneg %p285
        $region110: #{decoder_forward.1} parent=99 // pred_check_branch
          %879 = sbr.rel (%p877) target = $region112
        $region111: #{decoder_forward.1} parent=99 // pred_region
          %881 = dma.done %s873, 1024
        $region112: #{decoder_forward.1} parent=99 // pred_fallthru
          _
        %s882 = sand.u32 %s44, 1
        %s883 = scalar_lea.sflag [#allocation11], %s882
        %s884 = sand.u32 %s324, 1
        %s885 = smul.addr %s884, 128
        %s886 = scalar_lea.vmem [#allocation10], %s885
        // Predicated region
        $region113: #{decoder_forward.1} parent=99 // pred_check
          %p887 = pneg %p337
        $region114: #{decoder_forward.1} parent=99 // pred_check_branch
          %889 = sbr.rel (%p887) target = $region116
        $region115: #{decoder_forward.1} parent=99 // pred_region
          %891 = dma.done %s883, 2048
        $region116: #{decoder_forward.1} parent=99 // pred_fallthru
          _
        %s892 = sand.u32 %s44, 1
        %s893 = scalar_lea.sflag [#allocation11], %s892
        %s894 = sand.u32 %s376, 1
        %s895 = smul.addr %s894, 64
        %s896 = scalar_lea.vmem [#allocation12], %s895
        // Predicated region
        $region117: #{decoder_forward.1} parent=99 // pred_check
          %p897 = pneg %p389
        $region118: #{decoder_forward.1} parent=99 // pred_check_branch
          %899 = sbr.rel (%p897) target = $region120
        $region119: #{decoder_forward.1} parent=99 // pred_region
          %901 = dma.done %s893, 1024
        $region120: #{decoder_forward.1} parent=99 // pred_fallthru
          _
        %s902 = sand.u32 %s44, 1
        %s903 = scalar_lea.sflag [#allocation14], %s902
        %s904 = sand.u32 %s428, 1
        %s905 = smul.addr %s904, 128
        %s906 = scalar_lea.vmem [#allocation13], %s905
        // Predicated region
        $region121: #{decoder_forward.1} parent=99 // pred_check
          %p907 = pneg %p441
        $region122: #{decoder_forward.1} parent=99 // pred_check_branch
          %909 = sbr.rel (%p907) target = $region124
        $region123: #{decoder_forward.1} parent=99 // pred_region
          %911 = dma.done %s903, 2048
        $region124: #{decoder_forward.1} parent=99 // pred_fallthru
          _
        %s912 = sand.u32 %s44, 1
        %s913 = scalar_lea.sflag [#allocation14], %s912
        %s914 = sand.u32 %s480, 1
        %s915 = smul.addr %s914, 128
        %s916 = scalar_lea.vmem [#allocation15], %s915
        // Predicated region
        $region125: #{decoder_forward.1} parent=99 // pred_check
          %p917 = pneg %p493
        $region126: #{decoder_forward.1} parent=99 // pred_check_branch
          %919 = sbr.rel (%p917) target = $region128
        $region127: #{decoder_forward.1} parent=99 // pred_region
          %921 = dma.done %s913, 2048
        $region128: #{decoder_forward.1} parent=99 // pred_fallthru
          _
        %s922 = smul.u32 2, %s48
        %p923 = scmp.lt.s32.totalorder %s922, 1
        %s924 = scalar_select %p923, %s922, 1
        %s925 = smul.addr %s924, 8
        %s926 = scalar_lea.vmem %s0, %s925
        %p927 = pneg %p77
        %p928 = pneg %p74
        %s929 = smul.u32 2, %s48
        %p930 = scmp.lt.s32.totalorder %s929, 1
        %s931 = scalar_select %p930, %s929, 1
        %s932 = smul.addr %s931, 4
        %s933 = scalar_lea.vmem %s1, %s932
        %p934 = pneg %p103
        %p935 = pneg %p100
        %s936 = smul.u32 2, %s48
        %p937 = scmp.lt.s32.totalorder %s936, 1
        %s938 = scalar_select %p937, %s936, 1
        %s939 = smul.addr %s938, 8
        %s940 = scalar_lea.vmem %s2, %s939
        %p941 = pneg %p129
        %p942 = pneg %p126
        %p943 = scmp.lt.s32.totalorder %s49, 1
        %s944 = scalar_select %p943, %s49, 1
        %s945 = smul.addr %s944, 8
        %s946 = scalar_lea.vmem %s3, %s945
        %p947 = pneg %p155
        %p948 = pneg %p152
        %s949 = sand.u32 %s168, 1
        %s950 = scalar_lea.sflag [#allocation5], %s949
        %s951 = sand.u32 %s168, 1
        %s952 = smul.addr %s951, 192
        %s953 = scalar_lea.vmem [#allocation4], %s952
        %p954 = pneg %p181
        %p955 = pneg %p178
        %p956 = scmp.lt.s32.totalorder %s49, 1
        %s957 = scalar_select %p956, %s49, 1
        %s958 = smul.addr %s957, 3
        %s959 = scalar_lea.vmem %s5, %s958
        %p960 = pneg %p207
        %p961 = pneg %p204
        %s962 = sand.u32 %s44, 1
        %s963 = scalar_lea.sflag [#allocation8], %s962
        %s964 = sand.u32 %s220, 1
        %s965 = smul.addr %s964, 64
        %s966 = scalar_lea.vmem [#allocation7], %s965
        %p967 = pneg %p233
        %p968 = pneg %p230
        %p969 = scmp.lt.s32.totalorder %s49, 1
        %s970 = scalar_select %p969, %s49, 1
        %s971 = scalar_lea.vmem %s7, %s970
        %p972 = pneg %p259
        %p973 = pneg %p256
        %s974 = sand.u32 %s44, 1
        %s975 = scalar_lea.sflag [#allocation8], %s974
        %s976 = sand.u32 %s272, 1
        %s977 = smul.addr %s976, 64
        %s978 = scalar_lea.vmem [#allocation9], %s977
        %p979 = pneg %p285
        %p980 = pneg %p282
        %p981 = scmp.lt.s32.totalorder %s49, 1
        %s982 = scalar_select %p981, %s49, 1
        %s983 = scalar_lea.vmem %s9, %s982
        %p984 = pneg %p311
        %p985 = pneg %p308
        %s986 = sand.u32 %s44, 1
        %s987 = scalar_lea.sflag [#allocation11], %s986
        %s988 = sand.u32 %s324, 1
        %s989 = smul.addr %s988, 128
        %s990 = scalar_lea.vmem [#allocation10], %s989
        %p991 = pneg %p337
        %p992 = pneg %p334
        %p993 = scmp.lt.s32.totalorder %s49, 1
        %s994 = scalar_select %p993, %s49, 1
        %s995 = smul.addr %s994, 2
        %s996 = scalar_lea.vmem %s11, %s995
        %p997 = pneg %p363
        %p998 = pneg %p360
        %s999 = sand.u32 %s44, 1
        %s1000 = scalar_lea.sflag [#allocation11], %s999
        %s1001 = sand.u32 %s376, 1
        %s1002 = smul.addr %s1001, 64
        %s1003 = scalar_lea.vmem [#allocation12], %s1002
        %p1004 = pneg %p389
        %p1005 = pneg %p386
        %p1006 = scmp.lt.s32.totalorder %s49, 1
        %s1007 = scalar_select %p1006, %s49, 1
        %s1008 = scalar_lea.vmem %s13, %s1007
        %p1009 = pneg %p415
        %p1010 = pneg %p412
        %s1011 = sand.u32 %s44, 1
        %s1012 = scalar_lea.sflag [#allocation14], %s1011
        %s1013 = sand.u32 %s428, 1
        %s1014 = smul.addr %s1013, 128
        %s1015 = scalar_lea.vmem [#allocation13], %s1014
        %p1016 = pneg %p441
        %p1017 = pneg %p438
        %p1018 = scmp.lt.s32.totalorder %s49, 1
        %s1019 = scalar_select %p1018, %s49, 1
        %s1020 = smul.addr %s1019, 2
        %s1021 = scalar_lea.vmem %s15, %s1020
        %p1022 = pneg %p467
        %p1023 = pneg %p464
        %s1024 = sand.u32 %s44, 1
        %s1025 = scalar_lea.sflag [#allocation14], %s1024
        %s1026 = sand.u32 %s480, 1
        %s1027 = smul.addr %s1026, 128
        %s1028 = scalar_lea.vmem [#allocation15], %s1027
        %p1029 = pneg %p493
        %p1030 = pneg %p490
        %p1031 = scmp.lt.s32.totalorder %s49, 1
        %s1032 = scalar_select %p1031, %s49, 1
        %s1033 = scalar_lea.vmem %s17, %s1032
        %p1034 = pneg %p519
        %p1035 = pneg %p516
        %p1036 = pneg %p540
        %p1037 = pneg %p537
        %p1038 = pneg %p561
        %p1039 = pneg %p558
        %p1040 = pneg %p587
        %p1041 = pneg %p584
        %s1042 = smul.u32 2, %s48
        %p1043 = scmp.lt.s32.totalorder %s1042, 1
        %s1044 = scalar_select %p1043, %s1042, 1
        %s1045 = smul.addr %s1044, 8
        %s1046 = scalar_lea.vmem %s0, %s1045
        %s1047 = smul.u32 2, %s48
        %s1048 = smul.u32 2, %s48
        %p1049 = scmp.lt.s32.totalorder %s1048, 1
        %s1050 = scalar_select %p1049, %s1048, 1
        %s1051 = smul.addr %s1050, 4
        %s1052 = scalar_lea.vmem %s1, %s1051
        %s1053 = smul.u32 2, %s48
        %s1054 = smul.u32 2, %s48
        %p1055 = scmp.lt.s32.totalorder %s1054, 1
        %s1056 = scalar_select %p1055, %s1054, 1
        %s1057 = smul.addr %s1056, 8
        %s1058 = scalar_lea.vmem %s2, %s1057
        %s1059 = smul.u32 2, %s48
        %p1060 = scmp.lt.s32.totalorder %s49, 1
        %s1061 = scalar_select %p1060, %s49, 1
        %s1062 = smul.addr %s1061, 8
        %s1063 = scalar_lea.vmem %s3, %s1062
        %p1064 = scmp.lt.s32.totalorder %s49, 1
        %s1065 = scalar_select %p1064, %s49, 1
        %s1066 = smul.addr %s1065, 3
        %s1067 = scalar_lea.vmem %s5, %s1066
        %p1068 = scmp.lt.s32.totalorder %s49, 1
        %s1069 = scalar_select %p1068, %s49, 1
        %s1070 = scalar_lea.vmem %s7, %s1069
        %p1071 = scmp.lt.s32.totalorder %s49, 1
        %s1072 = scalar_select %p1071, %s49, 1
        %s1073 = scalar_lea.vmem %s9, %s1072
        %p1074 = scmp.lt.s32.totalorder %s49, 1
        %s1075 = scalar_select %p1074, %s49, 1
        %s1076 = smul.addr %s1075, 2
        %s1077 = scalar_lea.vmem %s11, %s1076
        %p1078 = scmp.lt.s32.totalorder %s49, 1
        %s1079 = scalar_select %p1078, %s49, 1
        %s1080 = scalar_lea.vmem %s13, %s1079
        %p1081 = scmp.lt.s32.totalorder %s49, 1
        %s1082 = scalar_select %p1081, %s49, 1
        %s1083 = smul.addr %s1082, 2
        %s1084 = scalar_lea.vmem %s15, %s1083
        %p1085 = scmp.lt.s32.totalorder %s49, 1
        %s1086 = scalar_select %p1085, %s49, 1
        %s1087 = scalar_lea.vmem %s17, %s1086
        %s1088 = smul.u32 2, %s48
        %p1090 = scmp.eq.s32.totalorder %s49, 0
        // Predicated region
        $region129: #{decoder_forward.1} parent=99 // pred_check
          %p1091 = pneg %p1090
        $region130: #{decoder_forward.1} parent=99 // pred_check_branch
          %1093 = sbr.rel (%p1091) target = $region132
        $region131: #{decoder_forward.1} parent=99 // pred_region
          %v1094 = vld [vmem:[%s1046] sm:$0xff]
          %v1095 = vld [vmem:[%s1046 + $0x8] sm:$0xff]
          %1096 = vst [vmem:[#allocation2] sm:$0xff] %v1094
          %1097 = vst [vmem:[#allocation2 + $0x8] sm:$0xff] %v1095
        $region132: #{decoder_forward.1} parent=99 // pred_fallthru
          _
        %v1098 = vld [vmem:[%s1063] sm:$0x3f]
        %v1099 = vld [vmem:[%s856] sm:$0xff]
        %v1100 = vld [vmem:[%s856 + $0x8] sm:$0xf]
        %v1101 = vld [vmem:[%s856 + $0xc] sm:$0xff]
        %v1102 = vld [vmem:[%s856 + $0x14] sm:$0xf]
        %v1103 = vld [vmem:[%s856 + $0x18] sm:$0xff]
        %v1104 = vld [vmem:[%s856 + $0x20] sm:$0xf]
        %v1105 = vld [vmem:[%s856 + $0x24] sm:$0xff]
        %v1106 = vld [vmem:[%s856 + $0x2c] sm:$0xf]
        %v1107 = vld [vmem:[%s856 + $0x30] sm:$0xff]
        %v1108 = vld [vmem:[%s856 + $0x38] sm:$0xf]
        %v1109 = vld [vmem:[%s856 + $0x3c] sm:$0xff]
        %v1110 = vld [vmem:[%s856 + $0x44] sm:$0xf]
        %v1111 = vld [vmem:[%s856 + $0x48] sm:$0xff]
        %v1112 = vld [vmem:[%s856 + $0x50] sm:$0xf]
        %v1113 = vld [vmem:[%s856 + $0x54] sm:$0xff]
        %v1114 = vld [vmem:[%s856 + $0x5c] sm:$0xf]
        %v1115 = vld [vmem:[%s856 + $0x60] sm:$0xff]
        %v1116 = vld [vmem:[%s856 + $0x68] sm:$0xf]
        %v1117 = vld [vmem:[%s856 + $0x6c] sm:$0xff]
        %v1118 = vld [vmem:[%s856 + $0x74] sm:$0xf]
        %v1119 = vld [vmem:[%s856 + $0x78] sm:$0xff]
        %v1120 = vld [vmem:[%s856 + $0x80] sm:$0xf]
        %v1121 = vld [vmem:[%s856 + $0x84] sm:$0xff]
        %v1122 = vld [vmem:[%s856 + $0x8c] sm:$0xf]
        %v1123 = vld [vmem:[%s856 + $0x90] sm:$0xff]
        %v1124 = vld [vmem:[%s856 + $0x98] sm:$0xf]
        %v1125 = vld [vmem:[%s856 + $0x9c] sm:$0xff]
        %v1126 = vld [vmem:[%s856 + $0xa4] sm:$0xf]
        %v1127 = vld [vmem:[%s856 + $0xa8] sm:$0xff]
        %v1128 = vld [vmem:[%s856 + $0xb0] sm:$0xf]
        %v1129 = vld [vmem:[%s856 + $0xb4] sm:$0xff]
        %v1130 = vld [vmem:[%s856 + $0xbc] sm:$0xf]
        %v1131 = vld [vmem:[%s1067] sm:$0x7]
        %v1132 = vld [vmem:[%s866] sm:$0xf]
        %v1133 = vld [vmem:[%s866 + $0x4] sm:$0xf]
        %v1134 = vld [vmem:[%s866 + $0x8] sm:$0xf]
        %v1135 = vld [vmem:[%s866 + $0xc] sm:$0xf]
        %v1136 = vld [vmem:[%s866 + $0x10] sm:$0xf]
        %v1137 = vld [vmem:[%s866 + $0x14] sm:$0xf]
        %v1138 = vld [vmem:[%s866 + $0x18] sm:$0xf]
        %v1139 = vld [vmem:[%s866 + $0x1c] sm:$0xf]
        %v1140 = vld [vmem:[%s866 + $0x20] sm:$0xf]
        %v1141 = vld [vmem:[%s866 + $0x24] sm:$0xf]
        %v1142 = vld [vmem:[%s866 + $0x28] sm:$0xf]
        %v1143 = vld [vmem:[%s866 + $0x2c] sm:$0xf]
        %v1144 = vld [vmem:[%s866 + $0x30] sm:$0xf]
        %v1145 = vld [vmem:[%s866 + $0x34] sm:$0xf]
        %v1146 = vld [vmem:[%s866 + $0x38] sm:$0xf]
        %v1147 = vld [vmem:[%s866 + $0x3c] sm:$0xf]
        %v1148 = vld [vmem:[%s1070] sm:$0x1]
        %v1149 = vld [vmem:[%s876] sm:$0xf]
        %v1150 = vld [vmem:[%s876 + $0x4] sm:$0xf]
        %v1151 = vld [vmem:[%s876 + $0x8] sm:$0xf]
        %v1152 = vld [vmem:[%s876 + $0xc] sm:$0xf]
        %v1153 = vld [vmem:[%s876 + $0x10] sm:$0xf]
        %v1154 = vld [vmem:[%s876 + $0x14] sm:$0xf]
        %v1155 = vld [vmem:[%s876 + $0x18] sm:$0xf]
        %v1156 = vld [vmem:[%s876 + $0x1c] sm:$0xf]
        %v1157 = vld [vmem:[%s876 + $0x20] sm:$0xf]
        %v1158 = vld [vmem:[%s876 + $0x24] sm:$0xf]
        %v1159 = vld [vmem:[%s876 + $0x28] sm:$0xf]
        %v1160 = vld [vmem:[%s876 + $0x2c] sm:$0xf]
        %v1161 = vld [vmem:[%s876 + $0x30] sm:$0xf]
        %v1162 = vld [vmem:[%s876 + $0x34] sm:$0xf]
        %v1163 = vld [vmem:[%s876 + $0x38] sm:$0xf]
        %v1164 = vld [vmem:[%s876 + $0x3c] sm:$0xf]
        %v1165 = vld [vmem:[%s1073] sm:$0x1]
        %v1166 = vld [vmem:[%s886] sm:$0xff]
        %v1167 = vld [vmem:[%s886 + $0x8] sm:$0xff]
        %v1168 = vld [vmem:[%s886 + $0x10] sm:$0xff]
        %v1169 = vld [vmem:[%s886 + $0x18] sm:$0xff]
        %v1170 = vld [vmem:[%s886 + $0x20] sm:$0xff]
        %v1171 = vld [vmem:[%s886 + $0x28] sm:$0xff]
        %v1172 = vld [vmem:[%s886 + $0x30] sm:$0xff]
        %v1173 = vld [vmem:[%s886 + $0x38] sm:$0xff]
        %v1174 = vld [vmem:[%s886 + $0x40] sm:$0xff]
        %v1175 = vld [vmem:[%s886 + $0x48] sm:$0xff]
        %v1176 = vld [vmem:[%s886 + $0x50] sm:$0xff]
        %v1177 = vld [vmem:[%s886 + $0x58] sm:$0xff]
        %v1178 = vld [vmem:[%s886 + $0x60] sm:$0xff]
        %v1179 = vld [vmem:[%s886 + $0x68] sm:$0xff]
        %v1180 = vld [vmem:[%s886 + $0x70] sm:$0xff]
        %v1181 = vld [vmem:[%s886 + $0x78] sm:$0xff]
        %v1182 = vld [vmem:[%s1077] sm:$0x3]
        %v1183 = vld [vmem:[%s896] sm:$0xf]
        %v1184 = vld [vmem:[%s896 + $0x4] sm:$0xf]
        %v1185 = vld [vmem:[%s896 + $0x8] sm:$0xf]
        %v1186 = vld [vmem:[%s896 + $0xc] sm:$0xf]
        %v1187 = vld [vmem:[%s896 + $0x10] sm:$0xf]
        %v1188 = vld [vmem:[%s896 + $0x14] sm:$0xf]
        %v1189 = vld [vmem:[%s896 + $0x18] sm:$0xf]
        %v1190 = vld [vmem:[%s896 + $0x1c] sm:$0xf]
        %v1191 = vld [vmem:[%s896 + $0x20] sm:$0xf]
        %v1192 = vld [vmem:[%s896 + $0x24] sm:$0xf]
        %v1193 = vld [vmem:[%s896 + $0x28] sm:$0xf]
        %v1194 = vld [vmem:[%s896 + $0x2c] sm:$0xf]
        %v1195 = vld [vmem:[%s896 + $0x30] sm:$0xf]
        %v1196 = vld [vmem:[%s896 + $0x34] sm:$0xf]
        %v1197 = vld [vmem:[%s896 + $0x38] sm:$0xf]
        %v1198 = vld [vmem:[%s896 + $0x3c] sm:$0xf]
        %v1199 = vld [vmem:[%s1080] sm:$0x1]
        %v1200 = vld [vmem:[%s906] sm:$0xff]
        %v1201 = vld [vmem:[%s906 + $0x8] sm:$0xff]
        %v1202 = vld [vmem:[%s906 + $0x10] sm:$0xff]
        %v1203 = vld [vmem:[%s906 + $0x18] sm:$0xff]
        %v1204 = vld [vmem:[%s906 + $0x20] sm:$0xff]
        %v1205 = vld [vmem:[%s906 + $0x28] sm:$0xff]
        %v1206 = vld [vmem:[%s906 + $0x30] sm:$0xff]
        %v1207 = vld [vmem:[%s906 + $0x38] sm:$0xff]
        %v1208 = vld [vmem:[%s906 + $0x40] sm:$0xff]
        %v1209 = vld [vmem:[%s906 + $0x48] sm:$0xff]
        %v1210 = vld [vmem:[%s906 + $0x50] sm:$0xff]
        %v1211 = vld [vmem:[%s906 + $0x58] sm:$0xff]
        %v1212 = vld [vmem:[%s906 + $0x60] sm:$0xff]
        %v1213 = vld [vmem:[%s906 + $0x68] sm:$0xff]
        %v1214 = vld [vmem:[%s906 + $0x70] sm:$0xff]
        %v1215 = vld [vmem:[%s906 + $0x78] sm:$0xff]
        %v1216 = vld [vmem:[%s1084] sm:$0x3]
        %v1217 = vld [vmem:[%s916] sm:$0xf]
        %v1218 = vld [vmem:[%s916 + $0x4] sm:$0xf]
        %v1219 = vld [vmem:[%s916 + $0x8] sm:$0xf]
        %v1220 = vld [vmem:[%s916 + $0xc] sm:$0xf]
        %v1221 = vld [vmem:[%s916 + $0x10] sm:$0xf]
        %v1222 = vld [vmem:[%s916 + $0x14] sm:$0xf]
        %v1223 = vld [vmem:[%s916 + $0x18] sm:$0xf]
        %v1224 = vld [vmem:[%s916 + $0x1c] sm:$0xf]
        %v1225 = vld [vmem:[%s916 + $0x20] sm:$0xf]
        %v1226 = vld [vmem:[%s916 + $0x24] sm:$0xf]
        %v1227 = vld [vmem:[%s916 + $0x28] sm:$0xf]
        %v1228 = vld [vmem:[%s916 + $0x2c] sm:$0xf]
        %v1229 = vld [vmem:[%s916 + $0x30] sm:$0xf]
        %v1230 = vld [vmem:[%s916 + $0x34] sm:$0xf]
        %v1231 = vld [vmem:[%s916 + $0x38] sm:$0xf]
        %v1232 = vld [vmem:[%s916 + $0x3c] sm:$0xf]
        %v1233 = vld [vmem:[%s916 + $0x40] sm:$0xf]
        %v1234 = vld [vmem:[%s916 + $0x44] sm:$0xf]
        %v1235 = vld [vmem:[%s916 + $0x48] sm:$0xf]
        %v1236 = vld [vmem:[%s916 + $0x4c] sm:$0xf]
        %v1237 = vld [vmem:[%s916 + $0x50] sm:$0xf]
        %v1238 = vld [vmem:[%s916 + $0x54] sm:$0xf]
        %v1239 = vld [vmem:[%s916 + $0x58] sm:$0xf]
        %v1240 = vld [vmem:[%s916 + $0x5c] sm:$0xf]
        %v1241 = vld [vmem:[%s916 + $0x60] sm:$0xf]
        %v1242 = vld [vmem:[%s916 + $0x64] sm:$0xf]
        %v1243 = vld [vmem:[%s916 + $0x68] sm:$0xf]
        %v1244 = vld [vmem:[%s916 + $0x6c] sm:$0xf]
        %v1245 = vld [vmem:[%s916 + $0x70] sm:$0xf]
        %v1246 = vld [vmem:[%s916 + $0x74] sm:$0xf]
        %v1247 = vld [vmem:[%s916 + $0x78] sm:$0xf]
        %v1248 = vld [vmem:[%s916 + $0x7c] sm:$0xf]
        %v1249 = vld [vmem:[%s1087] sm:$0x1]
        %v1250 = vld [vmem:[#allocation2] sm:$0xff]
        %v1251 = vld [vmem:[%s1052] sm:$0xf]
        %v1252 = vld [vmem:[%s1058] sm:$0xff]
        %1253 = vadd.xlane.f32.xlu0 %v1250
        %v1254 = vpop.xlane.xlu0 %1253
        %v1255 = vrcp.pop 128.0
        %v1256 = vmul.f32 128.0, %v1255
        %v1257 = vsub.f32 1.0, %v1256
        %v1258 = vmul.f32 %v1255, %v1257
        %v1259 = vadd.f32 %v1255, %v1258
        %vm1260 = vweird.f32 %v1255
        %v1261 = vsel %vm1260, %v1255, %v1259
        %v1262 = vmul.f32 %v1254, %v1261
        %v1263 = vsub.f32 %v1250, %v1262
        %v1264 = vmul.f32 %v1263, %v1263
        %1265 = vadd.xlane.f32.xlu0 %v1264
        %v1266 = vpop.xlane.xlu0 %1265
        %v1267 = vmul.f32 %v1266, %v1261
        %v1268 = vadd.f32 %v1267, 1e-06
        %v1269 = vrsqrt.pop %v1268
        %v1270 = vmul.f32 %v1269, %v1268
        %v1271 = vmul.f32 %v1270, %v1269
        %v1272 = vmul.f32 0.5, %v1271
        %v1273 = vsub.f32 1.5, %v1272
        %v1274 = vmul.f32 %v1269, %v1273
        %vm1275 = vweird.f32 %v1268
        %vm1276 = vweird.f32 %v1269
        %vm1277 = vmor %vm1275, %vm1276
        %v1278 = vsel %vm1277, %v1269, %v1274
        %v1279 = vmul.f32 %v1263, %v1278
        %v1280 = vperm.slane %v1098, 0
        %v1281 = vmul.f32 %v1279, %v1280
        %v1282 = vperm.slane %v1098, 1
        %v1283 = vadd.f32 %v1281, %v1282
        %v1284 = vpack.c.bf16 %v1283, %v1283
        %v1286 = vperm.slane %v1131, 0
        %v1287 = vperm.slane %v1131, 1
        %v1288 = vperm.slane %v1131, 2
        %v1324 = vunpack.c.l.b16 %v1099
        %v1325 = vunpack.c.h.b16 %v1099
        %v1326 = vunpack.c.l.b16 %v1100
        %v1327 = vunpack.c.l.b16 %v1101
        %v1328 = vunpack.c.h.b16 %v1101
        %v1329 = vunpack.c.l.b16 %v1102
        %v1330 = vunpack.c.l.b16 %v1103
        %v1331 = vunpack.c.h.b16 %v1103
        %v1332 = vunpack.c.l.b16 %v1104
        %v1333 = vunpack.c.l.b16 %v1105
        %v1334 = vunpack.c.h.b16 %v1105
        %v1335 = vunpack.c.l.b16 %v1106
        %v1336 = vunpack.c.l.b16 %v1107
        %v1337 = vunpack.c.h.b16 %v1107
        %v1338 = vunpack.c.l.b16 %v1108
        %v1339 = vunpack.c.l.b16 %v1109
        %v1340 = vunpack.c.h.b16 %v1109
        %v1341 = vunpack.c.l.b16 %v1110
        %v1342 = vunpack.c.l.b16 %v1111
        %v1343 = vunpack.c.h.b16 %v1111
        %v1344 = vunpack.c.l.b16 %v1112
        %v1345 = vunpack.c.l.b16 %v1113
        %v1346 = vunpack.c.h.b16 %v1113
        %v1347 = vunpack.c.l.b16 %v1114
        %v1348 = vunpack.c.l.b16 %v1115
        %v1349 = vunpack.c.h.b16 %v1115
        %v1350 = vunpack.c.l.b16 %v1116
        %v1351 = vunpack.c.l.b16 %v1117
        %v1352 = vunpack.c.h.b16 %v1117
        %v1353 = vunpack.c.l.b16 %v1118
        %v1354 = vunpack.c.l.b16 %v1119
        %v1355 = vunpack.c.h.b16 %v1119
        %v1356 = vunpack.c.l.b16 %v1120
        %v1357 = vunpack.c.l.b16 %v1121
        %v1358 = vunpack.c.h.b16 %v1121
        %v1359 = vunpack.c.l.b16 %v1122
        %v1360 = vunpack.c.l.b16 %v1123
        %v1361 = vunpack.c.h.b16 %v1123
        %v1362 = vunpack.c.l.b16 %v1124
        %v1363 = vunpack.c.l.b16 %v1125
        %v1364 = vunpack.c.h.b16 %v1125
        %v1365 = vunpack.c.l.b16 %v1126
        %v1366 = vunpack.c.l.b16 %v1127
        %v1367 = vunpack.c.h.b16 %v1127
        %v1368 = vunpack.c.l.b16 %v1128
        %v1369 = vunpack.c.l.b16 %v1129
        %v1370 = vunpack.c.h.b16 %v1129
        %v1371 = vunpack.c.l.b16 %v1130
        %v1372 = vpack.c.b16 %v1327, %v1324
        %v1373 = vpack.c.b16 %v1328, %v1325
        %v1374 = vpack.c.b16 %v1329, %v1326
        %v1375 = vpack.c.b16 %v1333, %v1330
        %v1376 = vpack.c.b16 %v1334, %v1331
        %v1377 = vpack.c.b16 %v1335, %v1332
        %v1378 = vpack.c.b16 %v1339, %v1336
        %v1379 = vpack.c.b16 %v1340, %v1337
        %v1380 = vpack.c.b16 %v1341, %v1338
        %v1381 = vpack.c.b16 %v1345, %v1342
        %v1382 = vpack.c.b16 %v1346, %v1343
        %v1383 = vpack.c.b16 %v1347, %v1344
        %v1384 = vpack.c.b16 %v1351, %v1348
        %v1385 = vpack.c.b16 %v1352, %v1349
        %v1386 = vpack.c.b16 %v1353, %v1350
        %v1387 = vpack.c.b16 %v1357, %v1354
        %v1388 = vpack.c.b16 %v1358, %v1355
        %v1389 = vpack.c.b16 %v1359, %v1356
        %v1390 = vpack.c.b16 %v1363, %v1360
        %v1391 = vpack.c.b16 %v1364, %v1361
        %v1392 = vpack.c.b16 %v1365, %v1362
        %v1393 = vpack.c.b16 %v1369, %v1366
        %v1394 = vpack.c.b16 %v1370, %v1367
        %v1395 = vpack.c.b16 %v1371, %v1368
        %1420 = vmatpush.bf16.msra.mxu0 %v1393
        %1421 = vmatpush.bf16.msra.mxu0 %v1390
        %1422 = vmatpush.bf16.msra.mxu0 %v1387
        %1423 = vmatpush.bf16.msra.mxu0 %v1384
        %1424 = vmatpush.bf16.msra.mxu0 %v1381
        %1425 = vmatpush.bf16.msra.mxu0 %v1378
        %1426 = vmatpush.bf16.msra.mxu0 %v1375
        %1427 = vmatpush.bf16.msra.mxu0 %v1372
        %1428 = vmatmul.bf16.gmra.mxu0 %v1284
        %v1429 = vpop.f32.mrf.mxu0
        %v1430 = vadd.f32 %v1286, %v1429
        %v1431 = vpop.f32.mrf.mxu0
        %1432 = vdwg.mxu0
        %1433 = vmatpush.bf16.msra.mxu0 %v1394
        %1434 = vmatpush.bf16.msra.mxu0 %v1391
        %1435 = vmatpush.bf16.msra.mxu0 %v1388
        %1436 = vmatpush.bf16.msra.mxu0 %v1385
        %1437 = vmatpush.bf16.msra.mxu0 %v1382
        %1438 = vmatpush.bf16.msra.mxu0 %v1379
        %1439 = vmatpush.bf16.msra.mxu0 %v1376
        %1440 = vmatpush.bf16.msra.mxu0 %v1373
        %1441 = vmatmul.bf16.gmra.mxu0 %v1284
        %v1442 = vpop.f32.mrf.mxu0
        %v1443 = vadd.f32 %v1287, %v1442
        %v1444 = vpop.f32.mrf.mxu0
        %1445 = vdwg.mxu0
        %1446 = vmatpush.bf16.msra.mxu0 %v1395
        %1447 = vmatpush.bf16.msra.mxu0 %v1392
        %1448 = vmatpush.bf16.msra.mxu0 %v1389
        %1449 = vmatpush.bf16.msra.mxu0 %v1386
        %1450 = vmatpush.bf16.msra.mxu0 %v1383
        %1451 = vmatpush.bf16.msra.mxu0 %v1380
        %1452 = vmatpush.bf16.msra.mxu0 %v1377
        %1453 = vmatpush.bf16.msra.mxu0 %v1374
        %1454 = vmatmul.bf16.gmra.mxu0 %v1284
        %v1455 = vpop.f32.mrf.mxu0
        %v1456 = vadd.f32 %v1288, %v1455
        %v1457 = vpop.f32.mrf.mxu0
        %1458 = vdwg.mxu0
        %v1459 = vpack.c.bf16 %v1443, %v1430
        %v1460 = vpack.c.bf16 %v1456, %v1456
        %v1462 = vunpack.c.h.b16 %v1459
        %v1463 = vpack.c.b16 %v1462, %v1462
        %vm1464 = vcmask 261120
        %v1466 = vsel %vm1464, %v1459, 0
        %v1469 = vsel %vm1464, %v1463, 0
        %1471 = vmatpush.bf16.xpose.msra.mxu0 0
        %1472 = vmatpush.bf16.xpose.msra.mxu0 0
        %1473 = vmatpush.bf16.xpose.msra.mxu0 0
        %1474 = vmatpush.bf16.xpose.msra.mxu0 0
        %1475 = vmatpush.bf16.xpose.msra.mxu0 0
        %1476 = vmatpush.bf16.xpose.msra.mxu0 0
        %1477 = vmatpush.bf16.xpose.msra.mxu0 0
        %1478 = vmatpush.bf16.xpose.msra.mxu0 %v1469
        %1479 = vmatmul.bf16.gmra.mxu0 %v1466
        %v1480 = vpop.f32.mrf.mxu0
        %v1481 = vadd.f32 0.0, %v1480
        %v1482 = vpop.f32.mrf.mxu0
        %1483 = vdwg.mxu0
        %vm1484 = vcmask 64512
        %v1485 = vsel %vm1484, %v1481, -inf
        %1486 = vmax.xlane.f32.xlu0 %v1485
        %v1487 = vpop.xlane.xlu0 %1486
        %v1488 = vsub.f32 %v1481, %v1487
        %v1489 = vmul.f32 %v1488, 1.442695
        %v1490 = vpow.pop %v1489
        %v1491 = vsel %vm1484, %v1490, 0.0
        %1492 = vadd.xlane.f32.xlu0 %v1491
        %v1493 = vpop.xlane.xlu0 %1492
        %v1494 = vrcp.pop %v1493
        %v1495 = vmul.f32 %v1490, %v1494
        %v1496 = vpack.c.bf16 %v1495, %v1495
        %v1498 = vsel %vm1484, %v1496, 0
        %vm1500 = vcmask 1043456
        %v1502 = vsel %vm1500, %v1460, 0
        %1504 = vmatpush.bf16.msra.mxu0 0
        %1505 = vmatpush.bf16.msra.mxu0 0
        %1506 = vmatpush.bf16.msra.mxu0 0
        %1507 = vmatpush.bf16.msra.mxu0 0
        %1508 = vmatpush.bf16.msra.mxu0 0
        %1509 = vmatpush.bf16.msra.mxu0 0
        %1510 = vmatpush.bf16.msra.mxu0 0
        %1511 = vmatpush.bf16.msra.mxu0 %v1502
        %1512 = vmatmul.bf16.gmra.mxu0 %v1498
        %v1513 = vpop.f32.mrf.mxu0
        %v1514 = vadd.f32 0.0, %v1513
        %v1515 = vpop.f32.mrf.mxu0
        %1516 = vdwg.mxu0
        %1517 = vst.msk [vmem:[#allocation3] sm:$0xff] %vm1464, %v1514
        %v1518 = vunpack.c.l.b16 %v1459
        %v1519 = vpack.c.b16 %v1518, %v1518
        %1520 = vrot.lane.b32.xlu0 %v1519, 96
        %v1521 = vpop.permute.xlu0 %1520
        %1522 = vrot.lane.b32.xlu0 %v1463, 96
        %v1523 = vpop.permute.xlu0 %1522
        %v1525 = vsel %vm1464, %v1521, 0
        %v1528 = vsel %vm1464, %v1523, 0
        %1530 = vmatpush.bf16.xpose.msra.mxu0 0
        %1531 = vmatpush.bf16.xpose.msra.mxu0 0
        %1532 = vmatpush.bf16.xpose.msra.mxu0 0
        %1533 = vmatpush.bf16.xpose.msra.mxu0 0
        %1534 = vmatpush.bf16.xpose.msra.mxu0 0
        %1535 = vmatpush.bf16.xpose.msra.mxu0 0
        %1536 = vmatpush.bf16.xpose.msra.mxu0 0
        %1537 = vmatpush.bf16.xpose.msra.mxu0 %v1528
        %1538 = vmatmul.bf16.gmra.mxu0 %v1525
        %v1539 = vpop.f32.mrf.mxu0
        %v1540 = vadd.f32 0.0, %v1539
        %v1541 = vpop.f32.mrf.mxu0
        %1542 = vdwg.mxu0
        %v1543 = vsel %vm1484, %v1540, -inf
        %1544 = vmax.xlane.f32.xlu0 %v1543
        %v1545 = vpop.xlane.xlu0 %1544
        %v1546 = vsub.f32 %v1540, %v1545
        %v1547 = vmul.f32 %v1546, 1.442695
        %v1548 = vpow.pop %v1547
        %v1549 = vsel %vm1484, %v1548, 0.0
        %1550 = vadd.xlane.f32.xlu0 %v1549
        %v1551 = vpop.xlane.xlu0 %1550
        %v1552 = vrcp.pop %v1551
        %v1553 = vmul.f32 %v1548, %v1552
        %v1554 = vpack.c.bf16 %v1553, %v1553
        %v1556 = vunpack.c.l.b16 %v1460
        %v1557 = vpack.c.b16 %v1556, %v1556
        %1558 = vrot.lane.b32.xlu0 %v1557, 96
        %v1559 = vpop.permute.xlu0 %1558
        %v1561 = vsel %vm1484, %v1554, 0
        %v1564 = vsel %vm1500, %v1559, 0
        %1566 = vmatpush.bf16.msra.mxu0 0
        %1567 = vmatpush.bf16.msra.mxu0 0
        %1568 = vmatpush.bf16.msra.mxu0 0
        %1569 = vmatpush.bf16.msra.mxu0 0
        %1570 = vmatpush.bf16.msra.mxu0 0
        %1571 = vmatpush.bf16.msra.mxu0 0
        %1572 = vmatpush.bf16.msra.mxu0 0
        %1573 = vmatpush.bf16.msra.mxu0 %v1564
        %1574 = vmatmul.bf16.gmra.mxu0 %v1561
        %v1575 = vpop.f32.mrf.mxu0
        %v1576 = vadd.f32 0.0, %v1575
        %v1577 = vpop.f32.mrf.mxu0
        %1578 = vdwg.mxu0
        %1580 = vrot.lane.b32.xlu0 %v1576, 32
        %v1581 = vpop.permute.xlu0 %1580
        %vm1583 = vcmask 523520
        %1584 = vst.msk [vmem:[#allocation3] sm:$0xff] %vm1583, %v1581
        %1585 = vrot.lane.b32.xlu0 %v1519, 64
        %v1586 = vpop.permute.xlu0 %1585
        %1587 = vrot.lane.b32.xlu0 %v1463, 64
        %v1588 = vpop.permute.xlu0 %1587
        %v1590 = vsel %vm1464, %v1586, 0
        %v1593 = vsel %vm1464, %v1588, 0
        %1595 = vmatpush.bf16.xpose.msra.mxu0 0
        %1596 = vmatpush.bf16.xpose.msra.mxu0 0
        %1597 = vmatpush.bf16.xpose.msra.mxu0 0
        %1598 = vmatpush.bf16.xpose.msra.mxu0 0
        %1599 = vmatpush.bf16.xpose.msra.mxu0 0
        %1600 = vmatpush.bf16.xpose.msra.mxu0 0
        %1601 = vmatpush.bf16.xpose.msra.mxu0 0
        %1602 = vmatpush.bf16.xpose.msra.mxu0 %v1593
        %1603 = vmatmul.bf16.gmra.mxu0 %v1590
        %v1604 = vpop.f32.mrf.mxu0
        %v1605 = vadd.f32 0.0, %v1604
        %v1606 = vpop.f32.mrf.mxu0
        %1607 = vdwg.mxu0
        %v1608 = vsel %vm1484, %v1605, -inf
        %1609 = vmax.xlane.f32.xlu0 %v1608
        %v1610 = vpop.xlane.xlu0 %1609
        %v1611 = vsub.f32 %v1605, %v1610
        %v1612 = vmul.f32 %v1611, 1.442695
        %v1613 = vpow.pop %v1612
        %v1614 = vsel %vm1484, %v1613, 0.0
        %1615 = vadd.xlane.f32.xlu0 %v1614
        %v1616 = vpop.xlane.xlu0 %1615
        %v1617 = vrcp.pop %v1616
        %v1618 = vmul.f32 %v1613, %v1617
        %v1619 = vpack.c.bf16 %v1618, %v1618
        %1620 = vrot.lane.b32.xlu0 %v1557, 64
        %v1621 = vpop.permute.xlu0 %1620
        %v1623 = vsel %vm1484, %v1619, 0
        %v1626 = vsel %vm1500, %v1621, 0
        %1628 = vmatpush.bf16.msra.mxu0 0
        %1629 = vmatpush.bf16.msra.mxu0 0
        %1630 = vmatpush.bf16.msra.mxu0 0
        %1631 = vmatpush.bf16.msra.mxu0 0
        %1632 = vmatpush.bf16.msra.mxu0 0
        %1633 = vmatpush.bf16.msra.mxu0 0
        %1634 = vmatpush.bf16.msra.mxu0 0
        %1635 = vmatpush.bf16.msra.mxu0 %v1626
        %1636 = vmatmul.bf16.gmra.mxu0 %v1623
        %v1637 = vpop.f32.mrf.mxu0
        %v1638 = vadd.f32 0.0, %v1637
        %v1639 = vpop.f32.mrf.mxu0
        %1640 = vdwg.mxu0
        %1642 = vrot.lane.b32.xlu0 %v1638, 64
        %v1643 = vpop.permute.xlu0 %1642
        %vm1645 = vcmask 785920
        %1646 = vst.msk [vmem:[#allocation3] sm:$0xff] %vm1645, %v1643
        %1647 = vrot.lane.b32.xlu0 %v1519, 32
        %v1648 = vpop.permute.xlu0 %1647
        %1649 = vrot.lane.b32.xlu0 %v1463, 32
        %v1650 = vpop.permute.xlu0 %1649
        %v1652 = vsel %vm1464, %v1648, 0
        %v1655 = vsel %vm1464, %v1650, 0
        %1657 = vmatpush.bf16.xpose.msra.mxu0 0
        %1658 = vmatpush.bf16.xpose.msra.mxu0 0
        %1659 = vmatpush.bf16.xpose.msra.mxu0 0
        %1660 = vmatpush.bf16.xpose.msra.mxu0 0
        %1661 = vmatpush.bf16.xpose.msra.mxu0 0
        %1662 = vmatpush.bf16.xpose.msra.mxu0 0
        %1663 = vmatpush.bf16.xpose.msra.mxu0 0
        %1664 = vmatpush.bf16.xpose.msra.mxu0 %v1655
        %1665 = vmatmul.bf16.gmra.mxu0 %v1652
        %v1666 = vpop.f32.mrf.mxu0
        %v1667 = vadd.f32 0.0, %v1666
        %v1668 = vpop.f32.mrf.mxu0
        %1669 = vdwg.mxu0
        %v1670 = vsel %vm1484, %v1667, -inf
        %1671 = vmax.xlane.f32.xlu0 %v1670
        %v1672 = vpop.xlane.xlu0 %1671
        %v1673 = vsub.f32 %v1667, %v1672
        %v1674 = vmul.f32 %v1673, 1.442695
        %v1675 = vpow.pop %v1674
        %v1676 = vsel %vm1484, %v1675, 0.0
        %1677 = vadd.xlane.f32.xlu0 %v1676
        %v1678 = vpop.xlane.xlu0 %1677
        %v1679 = vrcp.pop %v1678
        %v1680 = vmul.f32 %v1675, %v1679
        %v1681 = vpack.c.bf16 %v1680, %v1680
        %1682 = vrot.lane.b32.xlu0 %v1557, 32
        %v1683 = vpop.permute.xlu0 %1682
        %v1685 = vsel %vm1484, %v1681, 0
        %v1688 = vsel %vm1500, %v1683, 0
        %1690 = vmatpush.bf16.msra.mxu0 0
        %1691 = vmatpush.bf16.msra.mxu0 0
        %1692 = vmatpush.bf16.msra.mxu0 0
        %1693 = vmatpush.bf16.msra.mxu0 0
        %1694 = vmatpush.bf16.msra.mxu0 0
        %1695 = vmatpush.bf16.msra.mxu0 0
        %1696 = vmatpush.bf16.msra.mxu0 0
        %1697 = vmatpush.bf16.msra.mxu0 %v1688
        %1698 = vmatmul.bf16.gmra.mxu0 %v1685
        %v1699 = vpop.f32.mrf.mxu0
        %v1700 = vadd.f32 0.0, %v1699
        %v1701 = vpop.f32.mrf.mxu0
        %1702 = vdwg.mxu0
        %1704 = vrot.lane.b32.xlu0 %v1700, 96
        %v1705 = vpop.permute.xlu0 %1704
        %vm1707 = vcmask 1048320
        %1708 = vst.msk [vmem:[#allocation3] sm:$0xff] %vm1707, %v1705
        %v1709 = vld [vmem:[#allocation3] sm:$0xff]
        %v1710 = vpack.c.bf16 %v1709, %v1709
        %v1727 = vunpack.c.l.b16 %v1132
        %v1728 = vunpack.c.l.b16 %v1133
        %v1729 = vunpack.c.l.b16 %v1134
        %v1730 = vunpack.c.l.b16 %v1135
        %v1731 = vunpack.c.l.b16 %v1136
        %v1732 = vunpack.c.l.b16 %v1137
        %v1733 = vunpack.c.l.b16 %v1138
        %v1734 = vunpack.c.l.b16 %v1139
        %v1735 = vunpack.c.l.b16 %v1140
        %v1736 = vunpack.c.l.b16 %v1141
        %v1737 = vunpack.c.l.b16 %v1142
        %v1738 = vunpack.c.l.b16 %v1143
        %v1739 = vunpack.c.l.b16 %v1144
        %v1740 = vunpack.c.l.b16 %v1145
        %v1741 = vunpack.c.l.b16 %v1146
        %v1742 = vunpack.c.l.b16 %v1147
        %v1743 = vpack.c.b16 %v1728, %v1727
        %v1744 = vpack.c.b16 %v1730, %v1729
        %v1745 = vpack.c.b16 %v1732, %v1731
        %v1746 = vpack.c.b16 %v1734, %v1733
        %v1747 = vpack.c.b16 %v1736, %v1735
        %v1748 = vpack.c.b16 %v1738, %v1737
        %v1749 = vpack.c.b16 %v1740, %v1739
        %v1750 = vpack.c.b16 %v1742, %v1741
        %1759 = vmatpush.bf16.msra.mxu0 %v1750
        %1760 = vmatpush.bf16.msra.mxu0 %v1749
        %1761 = vmatpush.bf16.msra.mxu0 %v1748
        %1762 = vmatpush.bf16.msra.mxu0 %v1747
        %1763 = vmatpush.bf16.msra.mxu0 %v1746
        %1764 = vmatpush.bf16.msra.mxu0 %v1745
        %1765 = vmatpush.bf16.msra.mxu0 %v1744
        %1766 = vmatpush.bf16.msra.mxu0 %v1743
        %1767 = vmatmul.bf16.gmra.mxu0 %v1710
        %v1768 = vpop.f32.mrf.mxu0
        %v1769 = vadd.f32 0.0, %v1768
        %v1770 = vpop.f32.mrf.mxu0
        %1771 = vdwg.mxu0
        %v1772 = vadd.f32 %v1250, %v1769
        %v1774 = vperm.slane %v1148, 0
        %v1776 = vadd.f32 %v1772, %v1774
        %1777 = vadd.xlane.f32.xlu0 %v1776
        %v1778 = vpop.xlane.xlu0 %1777
        %v1779 = vmul.f32 %v1778, %v1261
        %v1780 = vsub.f32 %v1776, %v1779
        %v1781 = vmul.f32 %v1780, %v1780
        %1782 = vadd.xlane.f32.xlu0 %v1781
        %v1783 = vpop.xlane.xlu0 %1782
        %v1784 = vmul.f32 %v1783, %v1261
        %v1785 = vadd.f32 %v1784, 1e-06
        %v1786 = vrsqrt.pop %v1785
        %v1787 = vmul.f32 %v1786, %v1785
        %v1788 = vmul.f32 %v1787, %v1786
        %v1789 = vmul.f32 0.5, %v1788
        %v1790 = vsub.f32 1.5, %v1789
        %v1791 = vmul.f32 %v1786, %v1790
        %vm1792 = vweird.f32 %v1785
        %vm1793 = vweird.f32 %v1786
        %vm1794 = vmor %vm1792, %vm1793
        %v1795 = vsel %vm1794, %v1786, %v1791
        %v1796 = vmul.f32 %v1780, %v1795
        %v1797 = vperm.slane %v1098, 2
        %v1798 = vmul.f32 %v1796, %v1797
        %v1799 = vperm.slane %v1098, 3
        %v1800 = vadd.f32 %v1798, %v1799
        %v1801 = vpack.c.bf16 %v1800, %v1800
        %v1803 = vperm.slane %v1165, 0
        %v1821 = vunpack.c.l.b16 %v1149
        %v1822 = vunpack.c.l.b16 %v1150
        %v1823 = vunpack.c.l.b16 %v1151
        %v1824 = vunpack.c.l.b16 %v1152
        %v1825 = vunpack.c.l.b16 %v1153
        %v1826 = vunpack.c.l.b16 %v1154
        %v1827 = vunpack.c.l.b16 %v1155
        %v1828 = vunpack.c.l.b16 %v1156
        %v1829 = vunpack.c.l.b16 %v1157
        %v1830 = vunpack.c.l.b16 %v1158
        %v1831 = vunpack.c.l.b16 %v1159
        %v1832 = vunpack.c.l.b16 %v1160
        %v1833 = vunpack.c.l.b16 %v1161
        %v1834 = vunpack.c.l.b16 %v1162
        %v1835 = vunpack.c.l.b16 %v1163
        %v1836 = vunpack.c.l.b16 %v1164
        %v1837 = vpack.c.b16 %v1822, %v1821
        %v1838 = vpack.c.b16 %v1824, %v1823
        %v1839 = vpack.c.b16 %v1826, %v1825
        %v1840 = vpack.c.b16 %v1828, %v1827
        %v1841 = vpack.c.b16 %v1830, %v1829
        %v1842 = vpack.c.b16 %v1832, %v1831
        %v1843 = vpack.c.b16 %v1834, %v1833
        %v1844 = vpack.c.b16 %v1836, %v1835
        %1853 = vmatpush.bf16.msra.mxu0 %v1844
        %1854 = vmatpush.bf16.msra.mxu0 %v1843
        %1855 = vmatpush.bf16.msra.mxu0 %v1842
        %1856 = vmatpush.bf16.msra.mxu0 %v1841
        %1857 = vmatpush.bf16.msra.mxu0 %v1840
        %1858 = vmatpush.bf16.msra.mxu0 %v1839
        %1859 = vmatpush.bf16.msra.mxu0 %v1838
        %1860 = vmatpush.bf16.msra.mxu0 %v1837
        %1861 = vmatmul.bf16.gmra.mxu0 %v1801
        %v1862 = vpop.f32.mrf.mxu0
        %v1863 = vadd.f32 %v1803, %v1862
        %v1864 = vpop.f32.mrf.mxu0
        %1865 = vdwg.mxu0
        %v1866 = vpack.c.bf16 %v1863, %v1863
        %v1868 = vperm.slane %v1182, 0
        %v1869 = vperm.slane %v1182, 1
        %v1888 = vunpack.c.l.b16 %v1166
        %v1889 = vunpack.c.h.b16 %v1166
        %v1890 = vunpack.c.l.b16 %v1167
        %v1891 = vunpack.c.h.b16 %v1167
        %v1892 = vunpack.c.l.b16 %v1168
        %v1893 = vunpack.c.h.b16 %v1168
        %v1894 = vunpack.c.l.b16 %v1169
        %v1895 = vunpack.c.h.b16 %v1169
        %v1896 = vunpack.c.l.b16 %v1170
        %v1897 = vunpack.c.h.b16 %v1170
        %v1898 = vunpack.c.l.b16 %v1171
        %v1899 = vunpack.c.h.b16 %v1171
        %v1900 = vunpack.c.l.b16 %v1172
        %v1901 = vunpack.c.h.b16 %v1172
        %v1902 = vunpack.c.l.b16 %v1173
        %v1903 = vunpack.c.h.b16 %v1173
        %v1904 = vunpack.c.l.b16 %v1174
        %v1905 = vunpack.c.h.b16 %v1174
        %v1906 = vunpack.c.l.b16 %v1175
        %v1907 = vunpack.c.h.b16 %v1175
        %v1908 = vunpack.c.l.b16 %v1176
        %v1909 = vunpack.c.h.b16 %v1176
        %v1910 = vunpack.c.l.b16 %v1177
        %v1911 = vunpack.c.h.b16 %v1177
        %v1912 = vunpack.c.l.b16 %v1178
        %v1913 = vunpack.c.h.b16 %v1178
        %v1914 = vunpack.c.l.b16 %v1179
        %v1915 = vunpack.c.h.b16 %v1179
        %v1916 = vunpack.c.l.b16 %v1180
        %v1917 = vunpack.c.h.b16 %v1180
        %v1918 = vunpack.c.l.b16 %v1181
        %v1919 = vunpack.c.h.b16 %v1181
        %v1920 = vpack.c.b16 %v1890, %v1888
        %v1921 = vpack.c.b16 %v1891, %v1889
        %v1922 = vpack.c.b16 %v1894, %v1892
        %v1923 = vpack.c.b16 %v1895, %v1893
        %v1924 = vpack.c.b16 %v1898, %v1896
        %v1925 = vpack.c.b16 %v1899, %v1897
        %v1926 = vpack.c.b16 %v1902, %v1900
        %v1927 = vpack.c.b16 %v1903, %v1901
        %v1928 = vpack.c.b16 %v1906, %v1904
        %v1929 = vpack.c.b16 %v1907, %v1905
        %v1930 = vpack.c.b16 %v1910, %v1908
        %v1931 = vpack.c.b16 %v1911, %v1909
        %v1932 = vpack.c.b16 %v1914, %v1912
        %v1933 = vpack.c.b16 %v1915, %v1913
        %v1934 = vpack.c.b16 %v1918, %v1916
        %v1935 = vpack.c.b16 %v1919, %v1917
        %1952 = vmatpush.bf16.msra.mxu0 %v1934
        %1953 = vmatpush.bf16.msra.mxu0 %v1932
        %1954 = vmatpush.bf16.msra.mxu0 %v1930
        %1955 = vmatpush.bf16.msra.mxu0 %v1928
        %1956 = vmatpush.bf16.msra.mxu0 %v1926
        %1957 = vmatpush.bf16.msra.mxu0 %v1924
        %1958 = vmatpush.bf16.msra.mxu0 %v1922
        %1959 = vmatpush.bf16.msra.mxu0 %v1920
        %1960 = vmatmul.bf16.gmra.mxu0 %v1251
        %v1961 = vpop.f32.mrf.mxu0
        %v1962 = vadd.f32 %v1868, %v1961
        %v1963 = vpop.f32.mrf.mxu0
        %1964 = vdwg.mxu0
        %1965 = vmatpush.bf16.msra.mxu0 %v1935
        %1966 = vmatpush.bf16.msra.mxu0 %v1933
        %1967 = vmatpush.bf16.msra.mxu0 %v1931
        %1968 = vmatpush.bf16.msra.mxu0 %v1929
        %1969 = vmatpush.bf16.msra.mxu0 %v1927
        %1970 = vmatpush.bf16.msra.mxu0 %v1925
        %1971 = vmatpush.bf16.msra.mxu0 %v1923
        %1972 = vmatpush.bf16.msra.mxu0 %v1921
        %1973 = vmatmul.bf16.gmra.mxu0 %v1251
        %v1974 = vpop.f32.mrf.mxu0
        %v1975 = vadd.f32 %v1869, %v1974
        %v1976 = vpop.f32.mrf.mxu0
        %1977 = vdwg.mxu0
        %v1978 = vpack.c.bf16 %v1975, %v1962
        %v1980 = vsel %vm1464, %v1866, 0
        %v1983 = vsel %vm1464, %v1978, 0
        %1985 = vmatpush.bf16.xpose.msra.mxu0 0
        %1986 = vmatpush.bf16.xpose.msra.mxu0 0
        %1987 = vmatpush.bf16.xpose.msra.mxu0 0
        %1988 = vmatpush.bf16.xpose.msra.mxu0 0
        %1989 = vmatpush.bf16.xpose.msra.mxu0 0
        %1990 = vmatpush.bf16.xpose.msra.mxu0 0
        %1991 = vmatpush.bf16.xpose.msra.mxu0 0
        %1992 = vmatpush.bf16.xpose.msra.mxu0 %v1983
        %1993 = vmatmul.bf16.gmra.mxu0 %v1980
        %v1994 = vpop.f32.mrf.mxu0
        %v1995 = vadd.f32 %v1252, %v1994
        %v1996 = vpop.f32.mrf.mxu0
        %1997 = vdwg.mxu0
        %v1998 = vsel %vm1484, %v1995, -inf
        %1999 = vmax.xlane.f32.xlu0 %v1998
        %v2000 = vpop.xlane.xlu0 %1999
        %v2001 = vsub.f32 %v1995, %v2000
        %v2002 = vmul.f32 %v2001, 1.442695
        %v2003 = vpow.pop %v2002
        %v2004 = vsel %vm1484, %v2003, 0.0
        %2005 = vadd.xlane.f32.xlu0 %v2004
        %v2006 = vpop.xlane.xlu0 %2005
        %v2007 = vrcp.pop %v2006
        %v2008 = vmul.f32 %v2003, %v2007
        %v2009 = vpack.c.bf16 %v2008, %v2008
        %v2011 = vunpack.c.h.b16 %v1978
        %v2012 = vpack.c.b16 %v2011, %v2011
        %v2014 = vsel %vm1484, %v2009, 0
        %v2017 = vsel %vm1500, %v2012, 0
        %2019 = vmatpush.bf16.msra.mxu0 0
        %2020 = vmatpush.bf16.msra.mxu0 0
        %2021 = vmatpush.bf16.msra.mxu0 0
        %2022 = vmatpush.bf16.msra.mxu0 0
        %2023 = vmatpush.bf16.msra.mxu0 0
        %2024 = vmatpush.bf16.msra.mxu0 0
        %2025 = vmatpush.bf16.msra.mxu0 0
        %2026 = vmatpush.bf16.msra.mxu0 %v2017
        %2027 = vmatmul.bf16.gmra.mxu0 %v2014
        %v2028 = vpop.f32.mrf.mxu0
        %v2029 = vadd.f32 0.0, %v2028
        %v2030 = vpop.f32.mrf.mxu0
        %2031 = vdwg.mxu0
        %2032 = vst.msk [vmem:[#allocation3] sm:$0xff] %vm1464, %v2029
        %v2034 = vunpack.c.l.b16 %v1866
        %v2035 = vpack.c.b16 %v2034, %v2034
        %2036 = vrot.lane.b32.xlu0 %v2035, 96
        %v2037 = vpop.permute.xlu0 %2036
        %v2038 = vunpack.c.l.b16 %v1978
        %v2039 = vpack.c.b16 %v2038, %v2038
        %2040 = vrot.lane.b32.xlu0 %v2039, 96
        %v2041 = vpop.permute.xlu0 %2040
        %v2043 = vsel %vm1464, %v2037, 0
        %v2046 = vsel %vm1464, %v2041, 0
        %2048 = vmatpush.bf16.xpose.msra.mxu0 0
        %2049 = vmatpush.bf16.xpose.msra.mxu0 0
        %2050 = vmatpush.bf16.xpose.msra.mxu0 0
        %2051 = vmatpush.bf16.xpose.msra.mxu0 0
        %2052 = vmatpush.bf16.xpose.msra.mxu0 0
        %2053 = vmatpush.bf16.xpose.msra.mxu0 0
        %2054 = vmatpush.bf16.xpose.msra.mxu0 0
        %2055 = vmatpush.bf16.xpose.msra.mxu0 %v2046
        %2056 = vmatmul.bf16.gmra.mxu0 %v2043
        %v2057 = vpop.f32.mrf.mxu0
        %v2058 = vadd.f32 %v1252, %v2057
        %v2059 = vpop.f32.mrf.mxu0
        %2060 = vdwg.mxu0
        %v2061 = vsel %vm1484, %v2058, -inf
        %2062 = vmax.xlane.f32.xlu0 %v2061
        %v2063 = vpop.xlane.xlu0 %2062
        %v2064 = vsub.f32 %v2058, %v2063
        %v2065 = vmul.f32 %v2064, 1.442695
        %v2066 = vpow.pop %v2065
        %v2067 = vsel %vm1484, %v2066, 0.0
        %2068 = vadd.xlane.f32.xlu0 %v2067
        %v2069 = vpop.xlane.xlu0 %2068
        %v2070 = vrcp.pop %v2069
        %v2071 = vmul.f32 %v2066, %v2070
        %v2072 = vpack.c.bf16 %v2071, %v2071
        %2073 = vrot.lane.b32.xlu0 %v2012, 96
        %v2074 = vpop.permute.xlu0 %2073
        %v2076 = vsel %vm1484, %v2072, 0
        %v2079 = vsel %vm1500, %v2074, 0
        %2081 = vmatpush.bf16.msra.mxu0 0
        %2082 = vmatpush.bf16.msra.mxu0 0
        %2083 = vmatpush.bf16.msra.mxu0 0
        %2084 = vmatpush.bf16.msra.mxu0 0
        %2085 = vmatpush.bf16.msra.mxu0 0
        %2086 = vmatpush.bf16.msra.mxu0 0
        %2087 = vmatpush.bf16.msra.mxu0 0
        %2088 = vmatpush.bf16.msra.mxu0 %v2079
        %2089 = vmatmul.bf16.gmra.mxu0 %v2076
        %v2090 = vpop.f32.mrf.mxu0
        %v2091 = vadd.f32 0.0, %v2090
        %v2092 = vpop.f32.mrf.mxu0
        %2093 = vdwg.mxu0
        %2095 = vrot.lane.b32.xlu0 %v2091, 32
        %v2096 = vpop.permute.xlu0 %2095
        %2098 = vst.msk [vmem:[#allocation3] sm:$0xff] %vm1583, %v2096
        %2099 = vrot.lane.b32.xlu0 %v2035, 64
        %v2100 = vpop.permute.xlu0 %2099
        %2101 = vrot.lane.b32.xlu0 %v2039, 64
        %v2102 = vpop.permute.xlu0 %2101
        %v2104 = vsel %vm1464, %v2100, 0
        %v2107 = vsel %vm1464, %v2102, 0
        %2109 = vmatpush.bf16.xpose.msra.mxu0 0
        %2110 = vmatpush.bf16.xpose.msra.mxu0 0
        %2111 = vmatpush.bf16.xpose.msra.mxu0 0
        %2112 = vmatpush.bf16.xpose.msra.mxu0 0
        %2113 = vmatpush.bf16.xpose.msra.mxu0 0
        %2114 = vmatpush.bf16.xpose.msra.mxu0 0
        %2115 = vmatpush.bf16.xpose.msra.mxu0 0
        %2116 = vmatpush.bf16.xpose.msra.mxu0 %v2107
        %2117 = vmatmul.bf16.gmra.mxu0 %v2104
        %v2118 = vpop.f32.mrf.mxu0
        %v2119 = vadd.f32 %v1252, %v2118
        %v2120 = vpop.f32.mrf.mxu0
        %2121 = vdwg.mxu0
        %v2122 = vsel %vm1484, %v2119, -inf
        %2123 = vmax.xlane.f32.xlu0 %v2122
        %v2124 = vpop.xlane.xlu0 %2123
        %v2125 = vsub.f32 %v2119, %v2124
        %v2126 = vmul.f32 %v2125, 1.442695
        %v2127 = vpow.pop %v2126
        %v2128 = vsel %vm1484, %v2127, 0.0
        %2129 = vadd.xlane.f32.xlu0 %v2128
        %v2130 = vpop.xlane.xlu0 %2129
        %v2131 = vrcp.pop %v2130
        %v2132 = vmul.f32 %v2127, %v2131
        %v2133 = vpack.c.bf16 %v2132, %v2132
        %2134 = vrot.lane.b32.xlu0 %v2012, 64
        %v2135 = vpop.permute.xlu0 %2134
        %v2137 = vsel %vm1484, %v2133, 0
        %v2140 = vsel %vm1500, %v2135, 0
        %2142 = vmatpush.bf16.msra.mxu0 0
        %2143 = vmatpush.bf16.msra.mxu0 0
        %2144 = vmatpush.bf16.msra.mxu0 0
        %2145 = vmatpush.bf16.msra.mxu0 0
        %2146 = vmatpush.bf16.msra.mxu0 0
        %2147 = vmatpush.bf16.msra.mxu0 0
        %2148 = vmatpush.bf16.msra.mxu0 0
        %2149 = vmatpush.bf16.msra.mxu0 %v2140
        %2150 = vmatmul.bf16.gmra.mxu0 %v2137
        %v2151 = vpop.f32.mrf.mxu0
        %v2152 = vadd.f32 0.0, %v2151
        %v2153 = vpop.f32.mrf.mxu0
        %2154 = vdwg.mxu0
        %2156 = vrot.lane.b32.xlu0 %v2152, 64
        %v2157 = vpop.permute.xlu0 %2156
        %2159 = vst.msk [vmem:[#allocation3] sm:$0xff] %vm1645, %v2157
        %2160 = vrot.lane.b32.xlu0 %v2035, 32
        %v2161 = vpop.permute.xlu0 %2160
        %2162 = vrot.lane.b32.xlu0 %v2039, 32
        %v2163 = vpop.permute.xlu0 %2162
        %v2165 = vsel %vm1464, %v2161, 0
        %v2168 = vsel %vm1464, %v2163, 0
        %2170 = vmatpush.bf16.xpose.msra.mxu0 0
        %2171 = vmatpush.bf16.xpose.msra.mxu0 0
        %2172 = vmatpush.bf16.xpose.msra.mxu0 0
        %2173 = vmatpush.bf16.xpose.msra.mxu0 0
        %2174 = vmatpush.bf16.xpose.msra.mxu0 0
        %2175 = vmatpush.bf16.xpose.msra.mxu0 0
        %2176 = vmatpush.bf16.xpose.msra.mxu0 0
        %2177 = vmatpush.bf16.xpose.msra.mxu0 %v2168
        %2178 = vmatmul.bf16.gmra.mxu0 %v2165
        %v2179 = vpop.f32.mrf.mxu0
        %v2180 = vadd.f32 %v1252, %v2179
        %v2181 = vpop.f32.mrf.mxu0
        %2182 = vdwg.mxu0
        %v2183 = vsel %vm1484, %v2180, -inf
        %2184 = vmax.xlane.f32.xlu0 %v2183
        %v2185 = vpop.xlane.xlu0 %2184
        %v2186 = vsub.f32 %v2180, %v2185
        %v2187 = vmul.f32 %v2186, 1.442695
        %v2188 = vpow.pop %v2187
        %v2189 = vsel %vm1484, %v2188, 0.0
        %2190 = vadd.xlane.f32.xlu0 %v2189
        %v2191 = vpop.xlane.xlu0 %2190
        %v2192 = vrcp.pop %v2191
        %v2193 = vmul.f32 %v2188, %v2192
        %v2194 = vpack.c.bf16 %v2193, %v2193
        %2195 = vrot.lane.b32.xlu0 %v2012, 32
        %v2196 = vpop.permute.xlu0 %2195
        %v2198 = vsel %vm1484, %v2194, 0
        %v2201 = vsel %vm1500, %v2196, 0
        %2203 = vmatpush.bf16.msra.mxu0 0
        %2204 = vmatpush.bf16.msra.mxu0 0
        %2205 = vmatpush.bf16.msra.mxu0 0
        %2206 = vmatpush.bf16.msra.mxu0 0
        %2207 = vmatpush.bf16.msra.mxu0 0
        %2208 = vmatpush.bf16.msra.mxu0 0
        %2209 = vmatpush.bf16.msra.mxu0 0
        %2210 = vmatpush.bf16.msra.mxu0 %v2201
        %2211 = vmatmul.bf16.gmra.mxu0 %v2198
        %v2212 = vpop.f32.mrf.mxu0
        %v2213 = vadd.f32 0.0, %v2212
        %v2214 = vpop.f32.mrf.mxu0
        %2215 = vdwg.mxu0
        %2217 = vrot.lane.b32.xlu0 %v2213, 96
        %v2218 = vpop.permute.xlu0 %2217
        %2220 = vst.msk [vmem:[#allocation3] sm:$0xff] %vm1707, %v2218
        %v2221 = vld [vmem:[#allocation3] sm:$0xff]
        %v2222 = vpack.c.bf16 %v2221, %v2221
        %v2239 = vunpack.c.l.b16 %v1183
        %v2240 = vunpack.c.l.b16 %v1184
        %v2241 = vunpack.c.l.b16 %v1185
        %v2242 = vunpack.c.l.b16 %v1186
        %v2243 = vunpack.c.l.b16 %v1187
        %v2244 = vunpack.c.l.b16 %v1188
        %v2245 = vunpack.c.l.b16 %v1189
        %v2246 = vunpack.c.l.b16 %v1190
        %v2247 = vunpack.c.l.b16 %v1191
        %v2248 = vunpack.c.l.b16 %v1192
        %v2249 = vunpack.c.l.b16 %v1193
        %v2250 = vunpack.c.l.b16 %v1194
        %v2251 = vunpack.c.l.b16 %v1195
        %v2252 = vunpack.c.l.b16 %v1196
        %v2253 = vunpack.c.l.b16 %v1197
        %v2254 = vunpack.c.l.b16 %v1198
        %v2255 = vpack.c.b16 %v2240, %v2239
        %v2256 = vpack.c.b16 %v2242, %v2241
        %v2257 = vpack.c.b16 %v2244, %v2243
        %v2258 = vpack.c.b16 %v2246, %v2245
        %v2259 = vpack.c.b16 %v2248, %v2247
        %v2260 = vpack.c.b16 %v2250, %v2249
        %v2261 = vpack.c.b16 %v2252, %v2251
        %v2262 = vpack.c.b16 %v2254, %v2253
        %2271 = vmatpush.bf16.msra.mxu0 %v2262
        %2272 = vmatpush.bf16.msra.mxu0 %v2261
        %2273 = vmatpush.bf16.msra.mxu0 %v2260
        %2274 = vmatpush.bf16.msra.mxu0 %v2259
        %2275 = vmatpush.bf16.msra.mxu0 %v2258
        %2276 = vmatpush.bf16.msra.mxu0 %v2257
        %2277 = vmatpush.bf16.msra.mxu0 %v2256
        %2278 = vmatpush.bf16.msra.mxu0 %v2255
        %2279 = vmatmul.bf16.gmra.mxu0 %v2222
        %v2280 = vpop.f32.mrf.mxu0
        %v2281 = vadd.f32 0.0, %v2280
        %v2282 = vpop.f32.mrf.mxu0
        %2283 = vdwg.mxu0
        %v2284 = vadd.f32 %v1776, %v2281
        %v2286 = vperm.slane %v1199, 0
        %v2288 = vadd.f32 %v2284, %v2286
        %2289 = vadd.xlane.f32.xlu0 %v2288
        %v2290 = vpop.xlane.xlu0 %2289
        %v2291 = vmul.f32 %v2290, %v1261
        %v2292 = vsub.f32 %v2288, %v2291
        %v2293 = vmul.f32 %v2292, %v2292
        %2294 = vadd.xlane.f32.xlu0 %v2293
        %v2295 = vpop.xlane.xlu0 %2294
        %v2296 = vmul.f32 %v2295, %v1261
        %v2297 = vadd.f32 %v2296, 1e-06
        %v2298 = vrsqrt.pop %v2297
        %v2299 = vmul.f32 %v2298, %v2297
        %v2300 = vmul.f32 %v2299, %v2298
        %v2301 = vmul.f32 0.5, %v2300
        %v2302 = vsub.f32 1.5, %v2301
        %v2303 = vmul.f32 %v2298, %v2302
        %vm2304 = vweird.f32 %v2297
        %vm2305 = vweird.f32 %v2298
        %vm2306 = vmor %vm2304, %vm2305
        %v2307 = vsel %vm2306, %v2298, %v2303
        %v2308 = vmul.f32 %v2292, %v2307
        %v2309 = vperm.slane %v1098, 4
        %v2310 = vmul.f32 %v2308, %v2309
        %v2311 = vperm.slane %v1098, 5
        %v2312 = vadd.f32 %v2310, %v2311
        %v2313 = vpack.c.bf16 %v2312, %v2312
        %v2315 = vperm.slane %v1216, 0
        %v2316 = vperm.slane %v1216, 1
        %v2335 = vunpack.c.l.b16 %v1200
        %v2336 = vunpack.c.h.b16 %v1200
        %v2337 = vunpack.c.l.b16 %v1201
        %v2338 = vunpack.c.h.b16 %v1201
        %v2339 = vunpack.c.l.b16 %v1202
        %v2340 = vunpack.c.h.b16 %v1202
        %v2341 = vunpack.c.l.b16 %v1203
        %v2342 = vunpack.c.h.b16 %v1203
        %v2343 = vunpack.c.l.b16 %v1204
        %v2344 = vunpack.c.h.b16 %v1204
        %v2345 = vunpack.c.l.b16 %v1205
        %v2346 = vunpack.c.h.b16 %v1205
        %v2347 = vunpack.c.l.b16 %v1206
        %v2348 = vunpack.c.h.b16 %v1206
        %v2349 = vunpack.c.l.b16 %v1207
        %v2350 = vunpack.c.h.b16 %v1207
        %v2351 = vunpack.c.l.b16 %v1208
        %v2352 = vunpack.c.h.b16 %v1208
        %v2353 = vunpack.c.l.b16 %v1209
        %v2354 = vunpack.c.h.b16 %v1209
        %v2355 = vunpack.c.l.b16 %v1210
        %v2356 = vunpack.c.h.b16 %v1210
        %v2357 = vunpack.c.l.b16 %v1211
        %v2358 = vunpack.c.h.b16 %v1211
        %v2359 = vunpack.c.l.b16 %v1212
        %v2360 = vunpack.c.h.b16 %v1212
        %v2361 = vunpack.c.l.b16 %v1213
        %v2362 = vunpack.c.h.b16 %v1213
        %v2363 = vunpack.c.l.b16 %v1214
        %v2364 = vunpack.c.h.b16 %v1214
        %v2365 = vunpack.c.l.b16 %v1215
        %v2366 = vunpack.c.h.b16 %v1215
        %v2367 = vpack.c.b16 %v2337, %v2335
        %v2368 = vpack.c.b16 %v2338, %v2336
        %v2369 = vpack.c.b16 %v2341, %v2339
        %v2370 = vpack.c.b16 %v2342, %v2340
        %v2371 = vpack.c.b16 %v2345, %v2343
        %v2372 = vpack.c.b16 %v2346, %v2344
        %v2373 = vpack.c.b16 %v2349, %v2347
        %v2374 = vpack.c.b16 %v2350, %v2348
        %v2375 = vpack.c.b16 %v2353, %v2351
        %v2376 = vpack.c.b16 %v2354, %v2352
        %v2377 = vpack.c.b16 %v2357, %v2355
        %v2378 = vpack.c.b16 %v2358, %v2356
        %v2379 = vpack.c.b16 %v2361, %v2359
        %v2380 = vpack.c.b16 %v2362, %v2360
        %v2381 = vpack.c.b16 %v2365, %v2363
        %v2382 = vpack.c.b16 %v2366, %v2364
        %2399 = vmatpush.bf16.msra.mxu0 %v2381
        %2400 = vmatpush.bf16.msra.mxu0 %v2379
        %2401 = vmatpush.bf16.msra.mxu0 %v2377
        %2402 = vmatpush.bf16.msra.mxu0 %v2375
        %2403 = vmatpush.bf16.msra.mxu0 %v2373
        %2404 = vmatpush.bf16.msra.mxu0 %v2371
        %2405 = vmatpush.bf16.msra.mxu0 %v2369
        %2406 = vmatpush.bf16.msra.mxu0 %v2367
        %2407 = vmatmul.bf16.gmra.mxu0 %v2313
        %v2408 = vpop.f32.mrf.mxu0
        %v2409 = vadd.f32 %v2315, %v2408
        %v2410 = vpop.f32.mrf.mxu0
        %2411 = vdwg.mxu0
        %2412 = vmatpush.bf16.msra.mxu0 %v2382
        %2413 = vmatpush.bf16.msra.mxu0 %v2380
        %2414 = vmatpush.bf16.msra.mxu0 %v2378
        %2415 = vmatpush.bf16.msra.mxu0 %v2376
        %2416 = vmatpush.bf16.msra.mxu0 %v2374
        %2417 = vmatpush.bf16.msra.mxu0 %v2372
        %2418 = vmatpush.bf16.msra.mxu0 %v2370
        %2419 = vmatpush.bf16.msra.mxu0 %v2368
        %2420 = vmatmul.bf16.gmra.mxu0 %v2313
        %v2421 = vpop.f32.mrf.mxu0
        %v2422 = vadd.f32 %v2316, %v2421
        %v2423 = vpop.f32.mrf.mxu0
        %2424 = vdwg.mxu0
        %v2425 = vmax.f32 %v2409, 0.0
        %v2426 = vmax.f32 %v2422, 0.0
        %v2427 = vpack.c.bf16 %v2425, %v2425
        %v2428 = vpack.c.bf16 %v2426, %v2426
        %v2461 = vunpack.c.l.b16 %v1217
        %v2462 = vunpack.c.l.b16 %v1218
        %v2463 = vunpack.c.l.b16 %v1219
        %v2464 = vunpack.c.l.b16 %v1220
        %v2465 = vunpack.c.l.b16 %v1221
        %v2466 = vunpack.c.l.b16 %v1222
        %v2467 = vunpack.c.l.b16 %v1223
        %v2468 = vunpack.c.l.b16 %v1224
        %v2469 = vunpack.c.l.b16 %v1225
        %v2470 = vunpack.c.l.b16 %v1226
        %v2471 = vunpack.c.l.b16 %v1227
        %v2472 = vunpack.c.l.b16 %v1228
        %v2473 = vunpack.c.l.b16 %v1229
        %v2474 = vunpack.c.l.b16 %v1230
        %v2475 = vunpack.c.l.b16 %v1231
        %v2476 = vunpack.c.l.b16 %v1232
        %v2477 = vunpack.c.l.b16 %v1233
        %v2478 = vunpack.c.l.b16 %v1234
        %v2479 = vunpack.c.l.b16 %v1235
        %v2480 = vunpack.c.l.b16 %v1236
        %v2481 = vunpack.c.l.b16 %v1237
        %v2482 = vunpack.c.l.b16 %v1238
        %v2483 = vunpack.c.l.b16 %v1239
        %v2484 = vunpack.c.l.b16 %v1240
        %v2485 = vunpack.c.l.b16 %v1241
        %v2486 = vunpack.c.l.b16 %v1242
        %v2487 = vunpack.c.l.b16 %v1243
        %v2488 = vunpack.c.l.b16 %v1244
        %v2489 = vunpack.c.l.b16 %v1245
        %v2490 = vunpack.c.l.b16 %v1246
        %v2491 = vunpack.c.l.b16 %v1247
        %v2492 = vunpack.c.l.b16 %v1248
        %v2493 = vpack.c.b16 %v2462, %v2461
        %v2494 = vpack.c.b16 %v2464, %v2463
        %v2495 = vpack.c.b16 %v2466, %v2465
        %v2496 = vpack.c.b16 %v2468, %v2467
        %v2497 = vpack.c.b16 %v2470, %v2469
        %v2498 = vpack.c.b16 %v2472, %v2471
        %v2499 = vpack.c.b16 %v2474, %v2473
        %v2500 = vpack.c.b16 %v2476, %v2475
        %v2501 = vpack.c.b16 %v2478, %v2477
        %v2502 = vpack.c.b16 %v2480, %v2479
        %v2503 = vpack.c.b16 %v2482, %v2481
        %v2504 = vpack.c.b16 %v2484, %v2483
        %v2505 = vpack.c.b16 %v2486, %v2485
        %v2506 = vpack.c.b16 %v2488, %v2487
        %v2507 = vpack.c.b16 %v2490, %v2489
        %v2508 = vpack.c.b16 %v2492, %v2491
        %2525 = vmatpush.bf16.msra.mxu0 %v2500
        %2526 = vmatpush.bf16.msra.mxu0 %v2499
        %2527 = vmatpush.bf16.msra.mxu0 %v2498
        %2528 = vmatpush.bf16.msra.mxu0 %v2497
        %2529 = vmatpush.bf16.msra.mxu0 %v2496
        %2530 = vmatpush.bf16.msra.mxu0 %v2495
        %2531 = vmatpush.bf16.msra.mxu0 %v2494
        %2532 = vmatpush.bf16.msra.mxu0 %v2493
        %2533 = vmatmul.bf16.gmra.mxu0 %v2427
        %v2534 = vpop.f32.mrf.mxu0
        %v2535 = vadd.f32 0.0, %v2534
        %v2536 = vpop.f32.mrf.mxu0
        %2537 = vdwg.mxu0
        %2538 = vmatpush.bf16.msra.mxu0 %v2508
        %2539 = vmatpush.bf16.msra.mxu0 %v2507
        %2540 = vmatpush.bf16.msra.mxu0 %v2506
        %2541 = vmatpush.bf16.msra.mxu0 %v2505
        %2542 = vmatpush.bf16.msra.mxu0 %v2504
        %2543 = vmatpush.bf16.msra.mxu0 %v2503
        %2544 = vmatpush.bf16.msra.mxu0 %v2502
        %2545 = vmatpush.bf16.msra.mxu0 %v2501
        %2546 = vmatmul.bf16.gmra.mxu0 %v2428
        %v2547 = vpop.f32.mrf.mxu0
        %v2548 = vadd.f32 %v2535, %v2547
        %v2549 = vpop.f32.mrf.mxu0
        %2550 = vdwg.mxu0
        %v2551 = vadd.f32 %v2288, %v2548
        %v2553 = vperm.slane %v1249, 0
        %v2555 = vadd.f32 %v2551, %v2553
        %2556 = vst [vmem:[#allocation2] sm:$0xff] %v2555
        %p2557 = scmp.eq.s32.totalorder %s49, 1
        // Predicated region
        $region133: #{decoder_forward.1} parent=99 // pred_check
          %p2558 = pneg %p2557
        $region134: #{decoder_forward.1} parent=99 // pred_check_branch
          %2560 = sbr.rel (%p2558) target = $region136
        $region135: #{decoder_forward.1} parent=99 // pred_region
          %v2561 = vld [vmem:[%s18] sm:$0x1]
          %v2562 = vld [vmem:[%s19] sm:$0x1]
          %2563 = vadd.xlane.f32.xlu0 %v2555
          %v2564 = vpop.xlane.xlu0 %2563
          %v2565 = vmul.f32 %v2564, %v1261
          %v2566 = vsub.f32 %v2555, %v2565
          %v2567 = vmul.f32 %v2566, %v2566
          %2568 = vadd.xlane.f32.xlu0 %v2567
          %v2569 = vpop.xlane.xlu0 %2568
          %v2570 = vmul.f32 %v2569, %v1261
          %v2571 = vadd.f32 %v2570, 1e-05
          %v2572 = vrsqrt.pop %v2571
          %v2573 = vmul.f32 %v2572, %v2571
          %v2574 = vmul.f32 %v2573, %v2572
          %v2575 = vmul.f32 0.5, %v2574
          %v2576 = vsub.f32 1.5, %v2575
          %v2577 = vmul.f32 %v2572, %v2576
          %vm2578 = vweird.f32 %v2571
          %vm2579 = vweird.f32 %v2572
          %vm2580 = vmor %vm2578, %vm2579
          %v2581 = vsel %vm2580, %v2572, %v2577
          %v2582 = vmul.f32 %v2566, %v2581
          %v2584 = vperm.slane %v2561, 0
          %v2586 = vmul.f32 %v2582, %v2584
          %v2588 = vperm.slane %v2562, 0
          %v2590 = vadd.f32 %v2586, %v2588
          %2591 = vst [vmem:[#allocation16] sm:$0xff] %v2590
        $region136: #{decoder_forward.1} parent=99 // pred_fallthru
          _
        %s2592 = scalar_lea.vmem [#allocation2], 8
        %v2593 = vld [vmem:[%s2592] sm:$0xff]
        %s2594 = scalar_lea.vmem %s1052, 4
        %v2595 = vld [vmem:[%s2594] sm:$0xf]
        %s2596 = scalar_lea.vmem %s1058, 8
        %v2597 = vld [vmem:[%s2596] sm:$0xff]
        %2598 = vadd.xlane.f32.xlu0 %v2593
        %v2599 = vpop.xlane.xlu0 %2598
        %v2600 = vmul.f32 %v2599, %v1261
        %v2601 = vsub.f32 %v2593, %v2600
        %v2602 = vmul.f32 %v2601, %v2601
        %2603 = vadd.xlane.f32.xlu0 %v2602
        %v2604 = vpop.xlane.xlu0 %2603
        %v2605 = vmul.f32 %v2604, %v1261
        %v2606 = vadd.f32 %v2605, 1e-06
        %v2607 = vrsqrt.pop %v2606
        %v2608 = vmul.f32 %v2607, %v2606
        %v2609 = vmul.f32 %v2608, %v2607
        %v2610 = vmul.f32 0.5, %v2609
        %v2611 = vsub.f32 1.5, %v2610
        %v2612 = vmul.f32 %v2607, %v2611
        %vm2613 = vweird.f32 %v2606
        %vm2614 = vweird.f32 %v2607
        %vm2615 = vmor %vm2613, %vm2614
        %v2616 = vsel %vm2615, %v2607, %v2612
        %v2617 = vmul.f32 %v2601, %v2616
        %v2618 = vmul.f32 %v2617, %v1280
        %v2619 = vadd.f32 %v2618, %v1282
        %v2620 = vpack.c.bf16 %v2619, %v2619
        %2621 = vmatpush.bf16.msra.mxu0 %v1393
        %2622 = vmatpush.bf16.msra.mxu0 %v1390
        %2623 = vmatpush.bf16.msra.mxu0 %v1387
        %2624 = vmatpush.bf16.msra.mxu0 %v1384
        %2625 = vmatpush.bf16.msra.mxu0 %v1381
        %2626 = vmatpush.bf16.msra.mxu0 %v1378
        %2627 = vmatpush.bf16.msra.mxu0 %v1375
        %2628 = vmatpush.bf16.msra.mxu0 %v1372
        %2629 = vmatmul.bf16.gmra.mxu0 %v2620
        %v2630 = vpop.f32.mrf.mxu0
        %v2631 = vadd.f32 %v1286, %v2630
        %v2632 = vpop.f32.mrf.mxu0
        %2633 = vdwg.mxu0
        %2634 = vmatpush.bf16.msra.mxu0 %v1394
        %2635 = vmatpush.bf16.msra.mxu0 %v1391
        %2636 = vmatpush.bf16.msra.mxu0 %v1388
        %2637 = vmatpush.bf16.msra.mxu0 %v1385
        %2638 = vmatpush.bf16.msra.mxu0 %v1382
        %2639 = vmatpush.bf16.msra.mxu0 %v1379
        %2640 = vmatpush.bf16.msra.mxu0 %v1376
        %2641 = vmatpush.bf16.msra.mxu0 %v1373
        %2642 = vmatmul.bf16.gmra.mxu0 %v2620
        %v2643 = vpop.f32.mrf.mxu0
        %v2644 = vadd.f32 %v1287, %v2643
        %v2645 = vpop.f32.mrf.mxu0
        %2646 = vdwg.mxu0
        %2647 = vmatpush.bf16.msra.mxu0 %v1395
        %2648 = vmatpush.bf16.msra.mxu0 %v1392
        %2649 = vmatpush.bf16.msra.mxu0 %v1389
        %2650 = vmatpush.bf16.msra.mxu0 %v1386
        %2651 = vmatpush.bf16.msra.mxu0 %v1383
        %2652 = vmatpush.bf16.msra.mxu0 %v1380
        %2653 = vmatpush.bf16.msra.mxu0 %v1377
        %2654 = vmatpush.bf16.msra.mxu0 %v1374
        %2655 = vmatmul.bf16.gmra.mxu0 %v2620
        %v2656 = vpop.f32.mrf.mxu0
        %v2657 = vadd.f32 %v1288, %v2656
        %v2658 = vpop.f32.mrf.mxu0
        %2659 = vdwg.mxu0
        %v2660 = vpack.c.bf16 %v2644, %v2631
        %v2661 = vpack.c.bf16 %v2657, %v2657
        %v2663 = vunpack.c.h.b16 %v2660
        %v2664 = vpack.c.b16 %v2663, %v2663
        %v2666 = vsel %vm1464, %v2660, 0
        %v2669 = vsel %vm1464, %v2664, 0
        %2671 = vmatpush.bf16.xpose.msra.mxu0 0
        %2672 = vmatpush.bf16.xpose.msra.mxu0 0
        %2673 = vmatpush.bf16.xpose.msra.mxu0 0
        %2674 = vmatpush.bf16.xpose.msra.mxu0 0
        %2675 = vmatpush.bf16.xpose.msra.mxu0 0
        %2676 = vmatpush.bf16.xpose.msra.mxu0 0
        %2677 = vmatpush.bf16.xpose.msra.mxu0 0
        %2678 = vmatpush.bf16.xpose.msra.mxu0 %v2669
        %2679 = vmatmul.bf16.gmra.mxu0 %v2666
        %v2680 = vpop.f32.mrf.mxu0
        %v2681 = vadd.f32 0.0, %v2680
        %v2682 = vpop.f32.mrf.mxu0
        %2683 = vdwg.mxu0
        %v2684 = vsel %vm1484, %v2681, -inf
        %2685 = vmax.xlane.f32.xlu0 %v2684
        %v2686 = vpop.xlane.xlu0 %2685
        %v2687 = vsub.f32 %v2681, %v2686
        %v2688 = vmul.f32 %v2687, 1.442695
        %v2689 = vpow.pop %v2688
        %v2690 = vsel %vm1484, %v2689, 0.0
        %2691 = vadd.xlane.f32.xlu0 %v2690
        %v2692 = vpop.xlane.xlu0 %2691
        %v2693 = vrcp.pop %v2692
        %v2694 = vmul.f32 %v2689, %v2693
        %v2695 = vpack.c.bf16 %v2694, %v2694
        %v2697 = vsel %vm1484, %v2695, 0
        %v2700 = vsel %vm1500, %v2661, 0
        %2702 = vmatpush.bf16.msra.mxu0 0
        %2703 = vmatpush.bf16.msra.mxu0 0
        %2704 = vmatpush.bf16.msra.mxu0 0
        %2705 = vmatpush.bf16.msra.mxu0 0
        %2706 = vmatpush.bf16.msra.mxu0 0
        %2707 = vmatpush.bf16.msra.mxu0 0
        %2708 = vmatpush.bf16.msra.mxu0 0
        %2709 = vmatpush.bf16.msra.mxu0 %v2700
        %2710 = vmatmul.bf16.gmra.mxu0 %v2697
        %v2711 = vpop.f32.mrf.mxu0
        %v2712 = vadd.f32 0.0, %v2711
        %v2713 = vpop.f32.mrf.mxu0
        %2714 = vdwg.mxu0
        %2715 = vst.msk [vmem:[#allocation3] sm:$0xff] %vm1464, %v2712
        %v2716 = vunpack.c.l.b16 %v2660
        %v2717 = vpack.c.b16 %v2716, %v2716
        %2718 = vrot.lane.b32.xlu0 %v2717, 96
        %v2719 = vpop.permute.xlu0 %2718
        %2720 = vrot.lane.b32.xlu0 %v2664, 96
        %v2721 = vpop.permute.xlu0 %2720
        %v2723 = vsel %vm1464, %v2719, 0
        %v2726 = vsel %vm1464, %v2721, 0
        %2728 = vmatpush.bf16.xpose.msra.mxu0 0
        %2729 = vmatpush.bf16.xpose.msra.mxu0 0
        %2730 = vmatpush.bf16.xpose.msra.mxu0 0
        %2731 = vmatpush.bf16.xpose.msra.mxu0 0
        %2732 = vmatpush.bf16.xpose.msra.mxu0 0
        %2733 = vmatpush.bf16.xpose.msra.mxu0 0
        %2734 = vmatpush.bf16.xpose.msra.mxu0 0
        %2735 = vmatpush.bf16.xpose.msra.mxu0 %v2726
        %2736 = vmatmul.bf16.gmra.mxu0 %v2723
        %v2737 = vpop.f32.mrf.mxu0
        %v2738 = vadd.f32 0.0, %v2737
        %v2739 = vpop.f32.mrf.mxu0
        %2740 = vdwg.mxu0
        %v2741 = vsel %vm1484, %v2738, -inf
        %2742 = vmax.xlane.f32.xlu0 %v2741
        %v2743 = vpop.xlane.xlu0 %2742
        %v2744 = vsub.f32 %v2738, %v2743
        %v2745 = vmul.f32 %v2744, 1.442695
        %v2746 = vpow.pop %v2745
        %v2747 = vsel %vm1484, %v2746, 0.0
        %2748 = vadd.xlane.f32.xlu0 %v2747
        %v2749 = vpop.xlane.xlu0 %2748
        %v2750 = vrcp.pop %v2749
        %v2751 = vmul.f32 %v2746, %v2750
        %v2752 = vpack.c.bf16 %v2751, %v2751
        %v2754 = vunpack.c.l.b16 %v2661
        %v2755 = vpack.c.b16 %v2754, %v2754
        %2756 = vrot.lane.b32.xlu0 %v2755, 96
        %v2757 = vpop.permute.xlu0 %2756
        %v2759 = vsel %vm1484, %v2752, 0
        %v2762 = vsel %vm1500, %v2757, 0
        %2764 = vmatpush.bf16.msra.mxu0 0
        %2765 = vmatpush.bf16.msra.mxu0 0
        %2766 = vmatpush.bf16.msra.mxu0 0
        %2767 = vmatpush.bf16.msra.mxu0 0
        %2768 = vmatpush.bf16.msra.mxu0 0
        %2769 = vmatpush.bf16.msra.mxu0 0
        %2770 = vmatpush.bf16.msra.mxu0 0
        %2771 = vmatpush.bf16.msra.mxu0 %v2762
        %2772 = vmatmul.bf16.gmra.mxu0 %v2759
        %v2773 = vpop.f32.mrf.mxu0
        %v2774 = vadd.f32 0.0, %v2773
        %v2775 = vpop.f32.mrf.mxu0
        %2776 = vdwg.mxu0
        %2778 = vrot.lane.b32.xlu0 %v2774, 32
        %v2779 = vpop.permute.xlu0 %2778
        %2781 = vst.msk [vmem:[#allocation3] sm:$0xff] %vm1583, %v2779
        %2782 = vrot.lane.b32.xlu0 %v2717, 64
        %v2783 = vpop.permute.xlu0 %2782
        %2784 = vrot.lane.b32.xlu0 %v2664, 64
        %v2785 = vpop.permute.xlu0 %2784
        %v2787 = vsel %vm1464, %v2783, 0
        %v2790 = vsel %vm1464, %v2785, 0
        %2792 = vmatpush.bf16.xpose.msra.mxu0 0
        %2793 = vmatpush.bf16.xpose.msra.mxu0 0
        %2794 = vmatpush.bf16.xpose.msra.mxu0 0
        %2795 = vmatpush.bf16.xpose.msra.mxu0 0
        %2796 = vmatpush.bf16.xpose.msra.mxu0 0
        %2797 = vmatpush.bf16.xpose.msra.mxu0 0
        %2798 = vmatpush.bf16.xpose.msra.mxu0 0
        %2799 = vmatpush.bf16.xpose.msra.mxu0 %v2790
        %2800 = vmatmul.bf16.gmra.mxu0 %v2787
        %v2801 = vpop.f32.mrf.mxu0
        %v2802 = vadd.f32 0.0, %v2801
        %v2803 = vpop.f32.mrf.mxu0
        %2804 = vdwg.mxu0
        %v2805 = vsel %vm1484, %v2802, -inf
        %2806 = vmax.xlane.f32.xlu0 %v2805
        %v2807 = vpop.xlane.xlu0 %2806
        %v2808 = vsub.f32 %v2802, %v2807
        %v2809 = vmul.f32 %v2808, 1.442695
        %v2810 = vpow.pop %v2809
        %v2811 = vsel %vm1484, %v2810, 0.0
        %2812 = vadd.xlane.f32.xlu0 %v2811
        %v2813 = vpop.xlane.xlu0 %2812
        %v2814 = vrcp.pop %v2813
        %v2815 = vmul.f32 %v2810, %v2814
        %v2816 = vpack.c.bf16 %v2815, %v2815
        %2817 = vrot.lane.b32.xlu0 %v2755, 64
        %v2818 = vpop.permute.xlu0 %2817
        %v2820 = vsel %vm1484, %v2816, 0
        %v2823 = vsel %vm1500, %v2818, 0
        %2825 = vmatpush.bf16.msra.mxu0 0
        %2826 = vmatpush.bf16.msra.mxu0 0
        %2827 = vmatpush.bf16.msra.mxu0 0
        %2828 = vmatpush.bf16.msra.mxu0 0
        %2829 = vmatpush.bf16.msra.mxu0 0
        %2830 = vmatpush.bf16.msra.mxu0 0
        %2831 = vmatpush.bf16.msra.mxu0 0
        %2832 = vmatpush.bf16.msra.mxu0 %v2823
        %2833 = vmatmul.bf16.gmra.mxu0 %v2820
        %v2834 = vpop.f32.mrf.mxu0
        %v2835 = vadd.f32 0.0, %v2834
        %v2836 = vpop.f32.mrf.mxu0
        %2837 = vdwg.mxu0
        %2839 = vrot.lane.b32.xlu0 %v2835, 64
        %v2840 = vpop.permute.xlu0 %2839
        %2842 = vst.msk [vmem:[#allocation3] sm:$0xff] %vm1645, %v2840
        %2843 = vrot.lane.b32.xlu0 %v2717, 32
        %v2844 = vpop.permute.xlu0 %2843
        %2845 = vrot.lane.b32.xlu0 %v2664, 32
        %v2846 = vpop.permute.xlu0 %2845
        %v2848 = vsel %vm1464, %v2844, 0
        %v2851 = vsel %vm1464, %v2846, 0
        %2853 = vmatpush.bf16.xpose.msra.mxu0 0
        %2854 = vmatpush.bf16.xpose.msra.mxu0 0
        %2855 = vmatpush.bf16.xpose.msra.mxu0 0
        %2856 = vmatpush.bf16.xpose.msra.mxu0 0
        %2857 = vmatpush.bf16.xpose.msra.mxu0 0
        %2858 = vmatpush.bf16.xpose.msra.mxu0 0
        %2859 = vmatpush.bf16.xpose.msra.mxu0 0
        %2860 = vmatpush.bf16.xpose.msra.mxu0 %v2851
        %2861 = vmatmul.bf16.gmra.mxu0 %v2848
        %v2862 = vpop.f32.mrf.mxu0
        %v2863 = vadd.f32 0.0, %v2862
        %v2864 = vpop.f32.mrf.mxu0
        %2865 = vdwg.mxu0
        %v2866 = vsel %vm1484, %v2863, -inf
        %2867 = vmax.xlane.f32.xlu0 %v2866
        %v2868 = vpop.xlane.xlu0 %2867
        %v2869 = vsub.f32 %v2863, %v2868
        %v2870 = vmul.f32 %v2869, 1.442695
        %v2871 = vpow.pop %v2870
        %v2872 = vsel %vm1484, %v2871, 0.0
        %2873 = vadd.xlane.f32.xlu0 %v2872
        %v2874 = vpop.xlane.xlu0 %2873
        %v2875 = vrcp.pop %v2874
        %v2876 = vmul.f32 %v2871, %v2875
        %v2877 = vpack.c.bf16 %v2876, %v2876
        %2878 = vrot.lane.b32.xlu0 %v2755, 32
        %v2879 = vpop.permute.xlu0 %2878
        %v2881 = vsel %vm1484, %v2877, 0
        %v2884 = vsel %vm1500, %v2879, 0
        %2886 = vmatpush.bf16.msra.mxu0 0
        %2887 = vmatpush.bf16.msra.mxu0 0
        %2888 = vmatpush.bf16.msra.mxu0 0
        %2889 = vmatpush.bf16.msra.mxu0 0
        %2890 = vmatpush.bf16.msra.mxu0 0
        %2891 = vmatpush.bf16.msra.mxu0 0
        %2892 = vmatpush.bf16.msra.mxu0 0
        %2893 = vmatpush.bf16.msra.mxu0 %v2884
        %2894 = vmatmul.bf16.gmra.mxu0 %v2881
        %v2895 = vpop.f32.mrf.mxu0
        %v2896 = vadd.f32 0.0, %v2895
        %v2897 = vpop.f32.mrf.mxu0
        %2898 = vdwg.mxu0
        %2900 = vrot.lane.b32.xlu0 %v2896, 96
        %v2901 = vpop.permute.xlu0 %2900
        %2903 = vst.msk [vmem:[#allocation3] sm:$0xff] %vm1707, %v2901
        %v2904 = vld [vmem:[#allocation3] sm:$0xff]
        %v2905 = vpack.c.bf16 %v2904, %v2904
        %2906 = vmatpush.bf16.msra.mxu0 %v1750
        %2907 = vmatpush.bf16.msra.mxu0 %v1749
        %2908 = vmatpush.bf16.msra.mxu0 %v1748
        %2909 = vmatpush.bf16.msra.mxu0 %v1747
        %2910 = vmatpush.bf16.msra.mxu0 %v1746
        %2911 = vmatpush.bf16.msra.mxu0 %v1745
        %2912 = vmatpush.bf16.msra.mxu0 %v1744
        %2913 = vmatpush.bf16.msra.mxu0 %v1743
        %2914 = vmatmul.bf16.gmra.mxu0 %v2905
        %v2915 = vpop.f32.mrf.mxu0
        %v2916 = vadd.f32 0.0, %v2915
        %v2917 = vpop.f32.mrf.mxu0
        %2918 = vdwg.mxu0
        %v2919 = vadd.f32 %v2593, %v2916
        %v2920 = vadd.f32 %v2919, %v1774
        %2921 = vadd.xlane.f32.xlu0 %v2920
        %v2922 = vpop.xlane.xlu0 %2921
        %v2923 = vmul.f32 %v2922, %v1261
        %v2924 = vsub.f32 %v2920, %v2923
        %v2925 = vmul.f32 %v2924, %v2924
        %2926 = vadd.xlane.f32.xlu0 %v2925
        %v2927 = vpop.xlane.xlu0 %2926
        %v2928 = vmul.f32 %v2927, %v1261
        %v2929 = vadd.f32 %v2928, 1e-06
        %v2930 = vrsqrt.pop %v2929
        %v2931 = vmul.f32 %v2930, %v2929
        %v2932 = vmul.f32 %v2931, %v2930
        %v2933 = vmul.f32 0.5, %v2932
        %v2934 = vsub.f32 1.5, %v2933
        %v2935 = vmul.f32 %v2930, %v2934
        %vm2936 = vweird.f32 %v2929
        %vm2937 = vweird.f32 %v2930
        %vm2938 = vmor %vm2936, %vm2937
        %v2939 = vsel %vm2938, %v2930, %v2935
        %v2940 = vmul.f32 %v2924, %v2939
        %v2941 = vmul.f32 %v2940, %v1797
        %v2942 = vadd.f32 %v2941, %v1799
        %v2943 = vpack.c.bf16 %v2942, %v2942
        %2944 = vmatpush.bf16.msra.mxu0 %v1844
        %2945 = vmatpush.bf16.msra.mxu0 %v1843
        %2946 = vmatpush.bf16.msra.mxu0 %v1842
        %2947 = vmatpush.bf16.msra.mxu0 %v1841
        %2948 = vmatpush.bf16.msra.mxu0 %v1840
        %2949 = vmatpush.bf16.msra.mxu0 %v1839
        %2950 = vmatpush.bf16.msra.mxu0 %v1838
        %2951 = vmatpush.bf16.msra.mxu0 %v1837
        %2952 = vmatmul.bf16.gmra.mxu0 %v2943
        %v2953 = vpop.f32.mrf.mxu0
        %v2954 = vadd.f32 %v1803, %v2953
        %v2955 = vpop.f32.mrf.mxu0
        %2956 = vdwg.mxu0
        %v2957 = vpack.c.bf16 %v2954, %v2954
        %2958 = vmatpush.bf16.msra.mxu0 %v1934
        %2959 = vmatpush.bf16.msra.mxu0 %v1932
        %2960 = vmatpush.bf16.msra.mxu0 %v1930
        %2961 = vmatpush.bf16.msra.mxu0 %v1928
        %2962 = vmatpush.bf16.msra.mxu0 %v1926
        %2963 = vmatpush.bf16.msra.mxu0 %v1924
        %2964 = vmatpush.bf16.msra.mxu0 %v1922
        %2965 = vmatpush.bf16.msra.mxu0 %v1920
        %2966 = vmatmul.bf16.gmra.mxu0 %v2595
        %v2967 = vpop.f32.mrf.mxu0
        %v2968 = vadd.f32 %v1868, %v2967
        %v2969 = vpop.f32.mrf.mxu0
        %2970 = vdwg.mxu0
        %2971 = vmatpush.bf16.msra.mxu0 %v1935
        %2972 = vmatpush.bf16.msra.mxu0 %v1933
        %2973 = vmatpush.bf16.msra.mxu0 %v1931
        %2974 = vmatpush.bf16.msra.mxu0 %v1929
        %2975 = vmatpush.bf16.msra.mxu0 %v1927
        %2976 = vmatpush.bf16.msra.mxu0 %v1925
        %2977 = vmatpush.bf16.msra.mxu0 %v1923
        %2978 = vmatpush.bf16.msra.mxu0 %v1921
        %2979 = vmatmul.bf16.gmra.mxu0 %v2595
        %v2980 = vpop.f32.mrf.mxu0
        %v2981 = vadd.f32 %v1869, %v2980
        %v2982 = vpop.f32.mrf.mxu0
        %2983 = vdwg.mxu0
        %v2984 = vpack.c.bf16 %v2981, %v2968
        %v2986 = vsel %vm1464, %v2957, 0
        %v2989 = vsel %vm1464, %v2984, 0
        %2991 = vmatpush.bf16.xpose.msra.mxu0 0
        %2992 = vmatpush.bf16.xpose.msra.mxu0 0
        %2993 = vmatpush.bf16.xpose.msra.mxu0 0
        %2994 = vmatpush.bf16.xpose.msra.mxu0 0
        %2995 = vmatpush.bf16.xpose.msra.mxu0 0
        %2996 = vmatpush.bf16.xpose.msra.mxu0 0
        %2997 = vmatpush.bf16.xpose.msra.mxu0 0
        %2998 = vmatpush.bf16.xpose.msra.mxu0 %v2989
        %2999 = vmatmul.bf16.gmra.mxu0 %v2986
        %v3000 = vpop.f32.mrf.mxu0
        %v3001 = vadd.f32 %v2597, %v3000
        %v3002 = vpop.f32.mrf.mxu0
        %3003 = vdwg.mxu0
        %v3004 = vsel %vm1484, %v3001, -inf
        %3005 = vmax.xlane.f32.xlu0 %v3004
        %v3006 = vpop.xlane.xlu0 %3005
        %v3007 = vsub.f32 %v3001, %v3006
        %v3008 = vmul.f32 %v3007, 1.442695
        %v3009 = vpow.pop %v3008
        %v3010 = vsel %vm1484, %v3009, 0.0
        %3011 = vadd.xlane.f32.xlu0 %v3010
        %v3012 = vpop.xlane.xlu0 %3011
        %v3013 = vrcp.pop %v3012
        %v3014 = vmul.f32 %v3009, %v3013
        %v3015 = vpack.c.bf16 %v3014, %v3014
        %v3017 = vunpack.c.h.b16 %v2984
        %v3018 = vpack.c.b16 %v3017, %v3017
        %v3020 = vsel %vm1484, %v3015, 0
        %v3023 = vsel %vm1500, %v3018, 0
        %3025 = vmatpush.bf16.msra.mxu0 0
        %3026 = vmatpush.bf16.msra.mxu0 0
        %3027 = vmatpush.bf16.msra.mxu0 0
        %3028 = vmatpush.bf16.msra.mxu0 0
        %3029 = vmatpush.bf16.msra.mxu0 0
        %3030 = vmatpush.bf16.msra.mxu0 0
        %3031 = vmatpush.bf16.msra.mxu0 0
        %3032 = vmatpush.bf16.msra.mxu0 %v3023
        %3033 = vmatmul.bf16.gmra.mxu0 %v3020
        %v3034 = vpop.f32.mrf.mxu0
        %v3035 = vadd.f32 0.0, %v3034
        %v3036 = vpop.f32.mrf.mxu0
        %3037 = vdwg.mxu0
        %3038 = vst.msk [vmem:[#allocation3] sm:$0xff] %vm1464, %v3035
        %v3040 = vunpack.c.l.b16 %v2957
        %v3041 = vpack.c.b16 %v3040, %v3040
        %3042 = vrot.lane.b32.xlu0 %v3041, 96
        %v3043 = vpop.permute.xlu0 %3042
        %v3044 = vunpack.c.l.b16 %v2984
        %v3045 = vpack.c.b16 %v3044, %v3044
        %3046 = vrot.lane.b32.xlu0 %v3045, 96
        %v3047 = vpop.permute.xlu0 %3046
        %v3049 = vsel %vm1464, %v3043, 0
        %v3052 = vsel %vm1464, %v3047, 0
        %3054 = vmatpush.bf16.xpose.msra.mxu0 0
        %3055 = vmatpush.bf16.xpose.msra.mxu0 0
        %3056 = vmatpush.bf16.xpose.msra.mxu0 0
        %3057 = vmatpush.bf16.xpose.msra.mxu0 0
        %3058 = vmatpush.bf16.xpose.msra.mxu0 0
        %3059 = vmatpush.bf16.xpose.msra.mxu0 0
        %3060 = vmatpush.bf16.xpose.msra.mxu0 0
        %3061 = vmatpush.bf16.xpose.msra.mxu0 %v3052
        %3062 = vmatmul.bf16.gmra.mxu0 %v3049
        %v3063 = vpop.f32.mrf.mxu0
        %v3064 = vadd.f32 %v2597, %v3063
        %v3065 = vpop.f32.mrf.mxu0
        %3066 = vdwg.mxu0
        %v3067 = vsel %vm1484, %v3064, -inf
        %3068 = vmax.xlane.f32.xlu0 %v3067
        %v3069 = vpop.xlane.xlu0 %3068
        %v3070 = vsub.f32 %v3064, %v3069
        %v3071 = vmul.f32 %v3070, 1.442695
        %v3072 = vpow.pop %v3071
        %v3073 = vsel %vm1484, %v3072, 0.0
        %3074 = vadd.xlane.f32.xlu0 %v3073
        %v3075 = vpop.xlane.xlu0 %3074
        %v3076 = vrcp.pop %v3075
        %v3077 = vmul.f32 %v3072, %v3076
        %v3078 = vpack.c.bf16 %v3077, %v3077
        %3079 = vrot.lane.b32.xlu0 %v3018, 96
        %v3080 = vpop.permute.xlu0 %3079
        %v3082 = vsel %vm1484, %v3078, 0
        %v3085 = vsel %vm1500, %v3080, 0
        %3087 = vmatpush.bf16.msra.mxu0 0
        %3088 = vmatpush.bf16.msra.mxu0 0
        %3089 = vmatpush.bf16.msra.mxu0 0
        %3090 = vmatpush.bf16.msra.mxu0 0
        %3091 = vmatpush.bf16.msra.mxu0 0
        %3092 = vmatpush.bf16.msra.mxu0 0
        %3093 = vmatpush.bf16.msra.mxu0 0
        %3094 = vmatpush.bf16.msra.mxu0 %v3085
        %3095 = vmatmul.bf16.gmra.mxu0 %v3082
        %v3096 = vpop.f32.mrf.mxu0
        %v3097 = vadd.f32 0.0, %v3096
        %v3098 = vpop.f32.mrf.mxu0
        %3099 = vdwg.mxu0
        %3101 = vrot.lane.b32.xlu0 %v3097, 32
        %v3102 = vpop.permute.xlu0 %3101
        %3104 = vst.msk [vmem:[#allocation3] sm:$0xff] %vm1583, %v3102
        %3105 = vrot.lane.b32.xlu0 %v3041, 64
        %v3106 = vpop.permute.xlu0 %3105
        %3107 = vrot.lane.b32.xlu0 %v3045, 64
        %v3108 = vpop.permute.xlu0 %3107
        %v3110 = vsel %vm1464, %v3106, 0
        %v3113 = vsel %vm1464, %v3108, 0
        %3115 = vmatpush.bf16.xpose.msra.mxu0 0
        %3116 = vmatpush.bf16.xpose.msra.mxu0 0
        %3117 = vmatpush.bf16.xpose.msra.mxu0 0
        %3118 = vmatpush.bf16.xpose.msra.mxu0 0
        %3119 = vmatpush.bf16.xpose.msra.mxu0 0
        %3120 = vmatpush.bf16.xpose.msra.mxu0 0
        %3121 = vmatpush.bf16.xpose.msra.mxu0 0
        %3122 = vmatpush.bf16.xpose.msra.mxu0 %v3113
        %3123 = vmatmul.bf16.gmra.mxu0 %v3110
        %v3124 = vpop.f32.mrf.mxu0
        %v3125 = vadd.f32 %v2597, %v3124
        %v3126 = vpop.f32.mrf.mxu0
        %3127 = vdwg.mxu0
        %v3128 = vsel %vm1484, %v3125, -inf
        %3129 = vmax.xlane.f32.xlu0 %v3128
        %v3130 = vpop.xlane.xlu0 %3129
        %v3131 = vsub.f32 %v3125, %v3130
        %v3132 = vmul.f32 %v3131, 1.442695
        %v3133 = vpow.pop %v3132
        %v3134 = vsel %vm1484, %v3133, 0.0
        %3135 = vadd.xlane.f32.xlu0 %v3134
        %v3136 = vpop.xlane.xlu0 %3135
        %v3137 = vrcp.pop %v3136
        %v3138 = vmul.f32 %v3133, %v3137
        %v3139 = vpack.c.bf16 %v3138, %v3138
        %3140 = vrot.lane.b32.xlu0 %v3018, 64
        %v3141 = vpop.permute.xlu0 %3140
        %v3143 = vsel %vm1484, %v3139, 0
        %v3146 = vsel %vm1500, %v3141, 0
        %3148 = vmatpush.bf16.msra.mxu0 0
        %3149 = vmatpush.bf16.msra.mxu0 0
        %3150 = vmatpush.bf16.msra.mxu0 0
        %3151 = vmatpush.bf16.msra.mxu0 0
        %3152 = vmatpush.bf16.msra.mxu0 0
        %3153 = vmatpush.bf16.msra.mxu0 0
        %3154 = vmatpush.bf16.msra.mxu0 0
        %3155 = vmatpush.bf16.msra.mxu0 %v3146
        %3156 = vmatmul.bf16.gmra.mxu0 %v3143
        %v3157 = vpop.f32.mrf.mxu0
        %v3158 = vadd.f32 0.0, %v3157
        %v3159 = vpop.f32.mrf.mxu0
        %3160 = vdwg.mxu0
        %3162 = vrot.lane.b32.xlu0 %v3158, 64
        %v3163 = vpop.permute.xlu0 %3162
        %3165 = vst.msk [vmem:[#allocation3] sm:$0xff] %vm1645, %v3163
        %3166 = vrot.lane.b32.xlu0 %v3041, 32
        %v3167 = vpop.permute.xlu0 %3166
        %3168 = vrot.lane.b32.xlu0 %v3045, 32
        %v3169 = vpop.permute.xlu0 %3168
        %v3171 = vsel %vm1464, %v3167, 0
        %v3174 = vsel %vm1464, %v3169, 0
        %3176 = vmatpush.bf16.xpose.msra.mxu0 0
        %3177 = vmatpush.bf16.xpose.msra.mxu0 0
        %3178 = vmatpush.bf16.xpose.msra.mxu0 0
        %3179 = vmatpush.bf16.xpose.msra.mxu0 0
        %3180 = vmatpush.bf16.xpose.msra.mxu0 0
        %3181 = vmatpush.bf16.xpose.msra.mxu0 0
        %3182 = vmatpush.bf16.xpose.msra.mxu0 0
        %3183 = vmatpush.bf16.xpose.msra.mxu0 %v3174
        %3184 = vmatmul.bf16.gmra.mxu0 %v3171
        %v3185 = vpop.f32.mrf.mxu0
        %v3186 = vadd.f32 %v2597, %v3185
        %v3187 = vpop.f32.mrf.mxu0
        %3188 = vdwg.mxu0
        %v3189 = vsel %vm1484, %v3186, -inf
        %3190 = vmax.xlane.f32.xlu0 %v3189
        %v3191 = vpop.xlane.xlu0 %3190
        %v3192 = vsub.f32 %v3186, %v3191
        %v3193 = vmul.f32 %v3192, 1.442695
        %v3194 = vpow.pop %v3193
        %v3195 = vsel %vm1484, %v3194, 0.0
        %3196 = vadd.xlane.f32.xlu0 %v3195
        %v3197 = vpop.xlane.xlu0 %3196
        %v3198 = vrcp.pop %v3197
        %v3199 = vmul.f32 %v3194, %v3198
        %v3200 = vpack.c.bf16 %v3199, %v3199
        %3201 = vrot.lane.b32.xlu0 %v3018, 32
        %v3202 = vpop.permute.xlu0 %3201
        %v3204 = vsel %vm1484, %v3200, 0
        %v3207 = vsel %vm1500, %v3202, 0
        %3209 = vmatpush.bf16.msra.mxu0 0
        %3210 = vmatpush.bf16.msra.mxu0 0
        %3211 = vmatpush.bf16.msra.mxu0 0
        %3212 = vmatpush.bf16.msra.mxu0 0
        %3213 = vmatpush.bf16.msra.mxu0 0
        %3214 = vmatpush.bf16.msra.mxu0 0
        %3215 = vmatpush.bf16.msra.mxu0 0
        %3216 = vmatpush.bf16.msra.mxu0 %v3207
        %3217 = vmatmul.bf16.gmra.mxu0 %v3204
        %v3218 = vpop.f32.mrf.mxu0
        %v3219 = vadd.f32 0.0, %v3218
        %v3220 = vpop.f32.mrf.mxu0
        %3221 = vdwg.mxu0
        %3223 = vrot.lane.b32.xlu0 %v3219, 96
        %v3224 = vpop.permute.xlu0 %3223
        %3226 = vst.msk [vmem:[#allocation3] sm:$0xff] %vm1707, %v3224
        %v3227 = vld [vmem:[#allocation3] sm:$0xff]
        %v3228 = vpack.c.bf16 %v3227, %v3227
        %3229 = vmatpush.bf16.msra.mxu0 %v2262
        %3230 = vmatpush.bf16.msra.mxu0 %v2261
        %3231 = vmatpush.bf16.msra.mxu0 %v2260
        %3232 = vmatpush.bf16.msra.mxu0 %v2259
        %3233 = vmatpush.bf16.msra.mxu0 %v2258
        %3234 = vmatpush.bf16.msra.mxu0 %v2257
        %3235 = vmatpush.bf16.msra.mxu0 %v2256
        %3236 = vmatpush.bf16.msra.mxu0 %v2255
        %3237 = vmatmul.bf16.gmra.mxu0 %v3228
        %v3238 = vpop.f32.mrf.mxu0
        %v3239 = vadd.f32 0.0, %v3238
        %v3240 = vpop.f32.mrf.mxu0
        %3241 = vdwg.mxu0
        %v3242 = vadd.f32 %v2920, %v3239
        %v3243 = vadd.f32 %v3242, %v2286
        %3244 = vadd.xlane.f32.xlu0 %v3243
        %v3245 = vpop.xlane.xlu0 %3244
        %v3246 = vmul.f32 %v3245, %v1261
        %v3247 = vsub.f32 %v3243, %v3246
        %v3248 = vmul.f32 %v3247, %v3247
        %3249 = vadd.xlane.f32.xlu0 %v3248
        %v3250 = vpop.xlane.xlu0 %3249
        %v3251 = vmul.f32 %v3250, %v1261
        %v3252 = vadd.f32 %v3251, 1e-06
        %v3253 = vrsqrt.pop %v3252
        %v3254 = vmul.f32 %v3253, %v3252
        %v3255 = vmul.f32 %v3254, %v3253
        %v3256 = vmul.f32 0.5, %v3255
        %v3257 = vsub.f32 1.5, %v3256
        %v3258 = vmul.f32 %v3253, %v3257
        %vm3259 = vweird.f32 %v3252
        %vm3260 = vweird.f32 %v3253
        %vm3261 = vmor %vm3259, %vm3260
        %v3262 = vsel %vm3261, %v3253, %v3258
        %v3263 = vmul.f32 %v3247, %v3262
        %v3264 = vmul.f32 %v3263, %v2309
        %v3265 = vadd.f32 %v3264, %v2311
        %v3266 = vpack.c.bf16 %v3265, %v3265
        %3267 = vmatpush.bf16.msra.mxu0 %v2381
        %3268 = vmatpush.bf16.msra.mxu0 %v2379
        %3269 = vmatpush.bf16.msra.mxu0 %v2377
        %3270 = vmatpush.bf16.msra.mxu0 %v2375
        %3271 = vmatpush.bf16.msra.mxu0 %v2373
        %3272 = vmatpush.bf16.msra.mxu0 %v2371
        %3273 = vmatpush.bf16.msra.mxu0 %v2369
        %3274 = vmatpush.bf16.msra.mxu0 %v2367
        %3275 = vmatmul.bf16.gmra.mxu0 %v3266
        %v3276 = vpop.f32.mrf.mxu0
        %v3277 = vadd.f32 %v2315, %v3276
        %v3278 = vpop.f32.mrf.mxu0
        %3279 = vdwg.mxu0
        %3280 = vmatpush.bf16.msra.mxu0 %v2382
        %3281 = vmatpush.bf16.msra.mxu0 %v2380
        %3282 = vmatpush.bf16.msra.mxu0 %v2378
        %3283 = vmatpush.bf16.msra.mxu0 %v2376
        %3284 = vmatpush.bf16.msra.mxu0 %v2374
        %3285 = vmatpush.bf16.msra.mxu0 %v2372
        %3286 = vmatpush.bf16.msra.mxu0 %v2370
        %3287 = vmatpush.bf16.msra.mxu0 %v2368
        %3288 = vmatmul.bf16.gmra.mxu0 %v3266
        %v3289 = vpop.f32.mrf.mxu0
        %v3290 = vadd.f32 %v2316, %v3289
        %v3291 = vpop.f32.mrf.mxu0
        %3292 = vdwg.mxu0
        %v3293 = vmax.f32 %v3277, 0.0
        %v3294 = vmax.f32 %v3290, 0.0
        %v3295 = vpack.c.bf16 %v3293, %v3293
        %v3296 = vpack.c.bf16 %v3294, %v3294
        %3297 = vmatpush.bf16.msra.mxu0 %v2500
        %3298 = vmatpush.bf16.msra.mxu0 %v2499
        %3299 = vmatpush.bf16.msra.mxu0 %v2498
        %3300 = vmatpush.bf16.msra.mxu0 %v2497
        %3301 = vmatpush.bf16.msra.mxu0 %v2496
        %3302 = vmatpush.bf16.msra.mxu0 %v2495
        %3303 = vmatpush.bf16.msra.mxu0 %v2494
        %3304 = vmatpush.bf16.msra.mxu0 %v2493
        %3305 = vmatmul.bf16.gmra.mxu0 %v3295
        %v3306 = vpop.f32.mrf.mxu0
        %v3307 = vadd.f32 0.0, %v3306
        %v3308 = vpop.f32.mrf.mxu0
        %3309 = vdwg.mxu0
        %3310 = vmatpush.bf16.msra.mxu0 %v2508
        %3311 = vmatpush.bf16.msra.mxu0 %v2507
        %3312 = vmatpush.bf16.msra.mxu0 %v2506
        %3313 = vmatpush.bf16.msra.mxu0 %v2505
        %3314 = vmatpush.bf16.msra.mxu0 %v2504
        %3315 = vmatpush.bf16.msra.mxu0 %v2503
        %3316 = vmatpush.bf16.msra.mxu0 %v2502
        %3317 = vmatpush.bf16.msra.mxu0 %v2501
        %3318 = vmatmul.bf16.gmra.mxu0 %v3296
        %v3319 = vpop.f32.mrf.mxu0
        %v3320 = vadd.f32 %v3307, %v3319
        %v3321 = vpop.f32.mrf.mxu0
        %3322 = vdwg.mxu0
        %v3323 = vadd.f32 %v3243, %v3320
        %v3324 = vadd.f32 %v3323, %v2553
        %3325 = vst [vmem:[%s2592] sm:$0xff] %v3324
        // Predicated region
        $region137: #{decoder_forward.1} parent=99 // pred_check
          %p3326 = pneg %p2557
        $region138: #{decoder_forward.1} parent=99 // pred_check_branch
          %3328 = sbr.rel (%p3326) target = $region140
        $region139: #{decoder_forward.1} parent=99 // pred_region
          %v3329 = vld [vmem:[%s18] sm:$0x1]
          %v3330 = vld [vmem:[%s19] sm:$0x1]
          %3331 = vadd.xlane.f32.xlu0 %v3324
          %v3332 = vpop.xlane.xlu0 %3331
          %v3333 = vmul.f32 %v3332, %v1261
          %v3334 = vsub.f32 %v3324, %v3333
          %v3335 = vmul.f32 %v3334, %v3334
          %3336 = vadd.xlane.f32.xlu0 %v3335
          %v3337 = vpop.xlane.xlu0 %3336
          %v3338 = vmul.f32 %v3337, %v1261
          %v3339 = vadd.f32 %v3338, 1e-05
          %v3340 = vrsqrt.pop %v3339
          %v3341 = vmul.f32 %v3340, %v3339
          %v3342 = vmul.f32 %v3341, %v3340
          %v3343 = vmul.f32 0.5, %v3342
          %v3344 = vsub.f32 1.5, %v3343
          %v3345 = vmul.f32 %v3340, %v3344
          %vm3346 = vweird.f32 %v3339
          %vm3347 = vweird.f32 %v3340
          %vm3348 = vmor %vm3346, %vm3347
          %v3349 = vsel %vm3348, %v3340, %v3345
          %v3350 = vmul.f32 %v3334, %v3349
          %v3352 = vperm.slane %v3329, 0
          %v3354 = vmul.f32 %v3350, %v3352
          %v3356 = vperm.slane %v3330, 0
          %v3358 = vadd.f32 %v3354, %v3356
          %s3359 = scalar_lea.vmem [#allocation16], 8
          %3360 = vst [vmem:[%s3359] sm:$0xff] %v3358
        $region140: #{decoder_forward.1} parent=99 // pred_fallthru
          _
        // Predicated region
        $region141: #{decoder_forward.1} parent=99 // pred_check
          %p3361 = pneg %p584
        $region142: #{decoder_forward.1} parent=99 // pred_check_branch
          %3363 = sbr.rel (%p3361) target = $region144
        $region143: #{decoder_forward.1} parent=99 // pred_region
          %s3364 = smul.u32 2, %s48
          %3366 = vsyncadd [#allocation6], 0
          %s3367 = smul.addr %s3364, 8
          %s3368 = scalar_lea.hbm %s20, %s3367
          %s3369 = sshll.u32 [#allocation16], 4
          %s3370 = int_to_ptr.vmem [resolvable:$true] %s3369
          %s3371 = sshll.u32 %s3368, 4
          %s3372 = int_to_ptr.hbm [resolvable:$true] %s3371
          %3377 = dma.vmem_to_hbm [thread:$0]  %s3370, 256, %s3372, [#allocation6], 128, 128, 8
        $region144: #{decoder_forward.1} parent=99 // pred_fallthru
          _
        // Predicated region
        $region145: #{decoder_forward.1} parent=99 // pred_check
          %p3378 = pneg %p584
        $region146: #{decoder_forward.1} parent=99 // pred_check_branch
          %3380 = sbr.rel (%p3378) target = $region148
        $region147: #{decoder_forward.1} parent=99 // pred_region
          %3382 = dma.done [#allocation6], 256
        $region148: #{decoder_forward.1} parent=99 // pred_fallthru
          _
      $region100: #{decoder_forward.1} parent=5 // pred_fallthru
        _
      %p3383 = scmp.le.s32.totalorder 2, %s39
      // Predicated region
      $region149: #{decoder_forward.1} parent=5 // pred_check
        %p3384 = pneg %p3383
      $region150: #{decoder_forward.1} parent=5 // pred_check_branch
        %3386 = sbr.rel (%p3384) target = $region152
      $region151: #{decoder_forward.1} parent=5 // pred_region
        %s3387 = ssub.s32 %s39, 2
      $region152: #{decoder_forward.1} parent=5 // pred_fallthru
        _
    $region6: #{decoder_forward.1} parent=1 // loop_footer
      %s43 = sadd.s32 1, %s39
    $region7: #{decoder_forward.1} parent=1 // loop_footer_branch
      %38 = sbr.rel target = $region3
    $region8: #{decoder_forward.1} parent=1 // loop_exit
      _
    %3388 = vsyncpa [#allocation5], 1
    %s3389 = scalar_lea.sflag [#allocation5], 1
    %3390 = vsyncpa %s3389, 1
    %3391 = vsyncpa [#allocation8], 1
    %s3392 = scalar_lea.sflag [#allocation8], 1
    %3393 = vsyncpa %s3392, 1
    %3394 = vsyncpa [#allocation11], 1
    %s3395 = scalar_lea.sflag [#allocation11], 1
    %3396 = vsyncpa %s3395, 1
    %3397 = vsyncpa [#allocation14], 1
    %s3398 = scalar_lea.sflag [#allocation14], 1
    %3399 = vsyncpa %s3398, 1
    %3400 = vsyncpa [#allocation6], 1
    %s3401 = scalar_lea.sflag [#allocation6], 1
    %3402 = vsyncpa %s3401, 1

</llo_original>
